<compile_context>
chip_gen: v5e
topology: v5e:2x2
jax: 0.10.0
libtpu: 0.0.40
codegen_flags: <defaults>
</compile_context>

<pallas_src>
import functools

import jax
import jax.numpy as jnp
import numpy as np
from jax.experimental import pallas as pl
from jax.experimental.pallas import tpu as pltpu

LN_EPS = 1e-5


# ----------------------------- small math helpers -----------------------------
def _gelu(x):
    # tanh-approximate GELU (EUP-friendly; avoids erf lowering)
    return 0.5 * x * (1.0 + jnp.tanh(0.7978845608028654 * (x + 0.044715 * x * x * x)))


def _layer_norm(x, gamma, beta, eps=LN_EPS):
    mu = jnp.mean(x, axis=-1, keepdims=True)
    var = jnp.mean((x - mu) ** 2, axis=-1, keepdims=True)
    return (x - mu) * jax.lax.rsqrt(var + eps) * gamma + beta


# Order in which the folded/flattened parameter arrays are passed to the kernel.
FOLDED_ORDER = ("M", "TA", "tb1", "TB", "tb2", "CA", "cb1", "CB", "cb2", "WH", "bh")


# --------------------------------- the kernel ---------------------------------
def mixbeats_kernel(
    x_ref, m_ref,
    ta_ref, tb1_ref, tbw_ref, tb2_ref,
    ca_ref, cb1_ref, cbw_ref, cb2_ref,
    wh_ref, bh_ref,
    acc_ref,
    *, num_blocks, L,
):
    M = m_ref[...]                                  # (L, L) f32 grouped-mean matrix
    backcast = x_ref[...]                           # (Bt, L) f32, lane-dense
    acc = jnp.zeros(acc_ref.shape, jnp.float32)     # (Bt, L+F): [sum bc | sum fc]

    for blk in range(num_blocks):                   # blocks are sequential -> unrolled
        # ---- LN over each patch, as lane-dense matmuls (affine folded into TA) ----
        mu = jnp.dot(backcast, M, preferred_element_type=jnp.float32)
        ex2 = jnp.dot(backcast * backcast, M, preferred_element_type=jnp.float32)
        y = (backcast - mu) * jax.lax.rsqrt(ex2 - mu * mu + LN_EPS)

        # ---- token mixing (over num_patches) with block-diagonal flat weights ----
        h = jnp.dot(y.astype(jnp.bfloat16), ta_ref[blk],
                    preferred_element_type=jnp.float32) + tb1_ref[blk]
        h = _gelu(h)
        u = backcast + jnp.dot(h.astype(jnp.bfloat16), tbw_ref[blk],
                               preferred_element_type=jnp.float32) + tb2_ref[blk]

        # ---- LN + channel mixing (within each patch) ----
        mu2 = jnp.dot(u, M, preferred_element_type=jnp.float32)
        ex22 = jnp.dot(u * u, M, preferred_element_type=jnp.float32)
        z = (u - mu2) * jax.lax.rsqrt(ex22 - mu2 * mu2 + LN_EPS)
        c = jnp.dot(z.astype(jnp.bfloat16), ca_ref[blk],
                    preferred_element_type=jnp.float32) + cb1_ref[blk]
        c = _gelu(c)
        xm = u + jnp.dot(c.astype(jnp.bfloat16), cbw_ref[blk],
                         preferred_element_type=jnp.float32) + cb2_ref[blk]

        # ---- folded N-BEATS heads: single matmul -> [backcast_delta | forecast_delta]
        head = jnp.dot(xm.astype(jnp.bfloat16), wh_ref[blk],
                       preferred_element_type=jnp.float32) + bh_ref[blk]
        backcast = backcast - head[:, :L]           # lane-offset-0 slice only
        acc = acc + head                            # forecast accumulates in acc[:, L:]

    acc_ref[...] = acc


# ------------------------ host-side parameter folding -------------------------
def fold_params(p, *, P, S, L, F):
    """Fold raw MixBEATS params (f32) into flat, lane-dense kernel weights."""
    NB = p["tW1"].shape[0]
    f32 = jnp.float32
    eyeS = jnp.eye(S, dtype=f32)
    eyeP = jnp.eye(P, dtype=f32)
    H = p["tW1"].shape[-1]

    # grouped-mean matrix shared by both LayerNorms of every block
    M = jnp.kron(jnp.eye(P, dtype=f32), jnp.ones((S, S), f32)) / S

    # LN affine params expanded onto the flat index l = p*S + s  (value = param[s])
    g1 = jnp.tile(p["ln1g"], (1, P))
    b1 = jnp.tile(p["ln1b"], (1, P))
    g2 = jnp.tile(p["ln2g"], (1, P))
    b2 = jnp.tile(p["ln2b"], (1, P))

    # token mixing: TA[l=p*S+s, j=s'*H+h] = tW1[p,h] * d(s==s')
    TA = (p["tW1"][:, :, None, None, :] * eyeS[None, None, :, :, None]).reshape(NB, L, S * H)
    tb1 = jnp.tile(p["tb1"], (1, S)) + jnp.einsum("nl,nlj->nj", b1, TA)   # beta fold (pre-scale)
    TA = g1[:, :, None] * TA                                              # gamma fold
    # TB[j=s'*H+h, l=p*S+s] = tW2[h,p] * d(s==s')
    TB = (eyeS[None, :, None, None, :] * p["tW2"][:, None, :, :, None]).reshape(NB, S * H, L)
    tb2 = jnp.repeat(p["tb2"], S, axis=1)

    # channel mixing: CA[l=p'*S+s, j=p*H+h] = cW1[s,h] * d(p'==p)
    CA = (eyeP[None, :, None, :, None] * p["cW1"][:, None, :, None, :]).reshape(NB, L, P * H)
    cb1 = jnp.tile(p["cb1"], (1, P)) + jnp.einsum("nl,nlj->nj", b2, CA)
    CA = g2[:, :, None] * CA
    # CB[j=p'*H+h, l=p*S+s] = cW2[h,s] * d(p'==p)
    CB = (eyeP[None, :, None, :, None] * p["cW2"][:, None, :, None, :]).reshape(NB, P * H, L)
    cb2 = jnp.tile(p["cb2"], (1, P))

    # N-BEATS heads folded (exact, done in f32): one (L, L+F) map per block
    WH = jnp.concatenate(
        [jnp.einsum("nlt,ntk->nlk", p["thbW"], p["bcW"]),
         jnp.einsum("nlt,ntf->nlf", p["thfW"], p["fcW"])], axis=-1)
    bh = jnp.concatenate([p["bcb"], p["fcb"]], axis=-1)

    bf16 = jnp.bfloat16
    return dict(
        M=M,
        TA=TA.astype(bf16), tb1=tb1, TB=TB.astype(bf16), tb2=tb2,
        CA=CA.astype(bf16), cb1=cb1, CB=CB.astype(bf16), cb2=cb2,
        WH=WH.astype(bf16), bh=bh,
    )


# ------------------------------ host-side wrapper ------------------------------
def mixbeats_forecast(x, fp, *, num_blocks, L, F, batch_tile=None):
    """x: (B, L) f32 -> accumulated heads (B, L+F) f32 (forecast = out[:, L:])."""
    B = x.shape[0]
    bt = B if batch_tile is None else batch_tile
    arrays = [fp[k] for k in FOLDED_ORDER]

    def full_spec(a):
        return pl.BlockSpec(a.shape, lambda i, n=a.ndim: (0,) * n)

    in_specs = [pl.BlockSpec((bt, L), lambda i: (i, 0))] + [full_spec(a) for a in arrays]
    out_spec = pl.BlockSpec((bt, L + F), lambda i: (i, 0))

    # advisory cost hint for XLA scheduling
    SH = fp["TA"].shape[-1]
    PH = fp["CA"].shape[-1]
    mm_flops = num_blocks * B * (8 * L * L + 4 * L * SH + 4 * L * PH + 2 * L * (L + F))
    bytes_acc = sum(int(np.prod(a.shape)) * a.dtype.itemsize for a in arrays)
    bytes_acc += int(x.size) * x.dtype.itemsize + B * (L + F) * 4
    cost = pl.CostEstimate(
        flops=int(mm_flops),
        transcendentals=int(num_blocks * B * (SH + PH + 2 * L)),
        bytes_accessed=int(bytes_acc),
    )

    kern = functools.partial(mixbeats_kernel, num_blocks=num_blocks, L=L)
    return pl.pallas_call(
        kern,
        out_shape=jax.ShapeDtypeStruct((B, L + F), jnp.float32),
        grid=(pl.cdiv(B, bt),),
        in_specs=in_specs,
        out_specs=out_spec,
        compiler_params=pltpu.CompilerParams(dimension_semantics=("parallel",)),
        cost_estimate=cost,
    )(x, *arrays)


def model_forward(params, x_enc, x_mark_enc, x_dec, x_mark_dec, mask=None, *, cfg):
    """Matches Model.forward for task_name == 'short_term_forecast'."""
    if cfg["task_name"] != "short_term_forecast":
        return None
    L = cfg["seq_len"]
    S = cfg["patch_size"]
    P = L // S
    F = cfg["pred_len"]
    NB = 3 * cfg["num_blocks_per_stack"]          # 3 generic stacks
    folded = fold_params(params, P=P, S=S, L=L, F=F)
    backcast = jnp.squeeze(x_enc, -1)             # (B, L)
    acc = mixbeats_forecast(backcast, folded, num_blocks=NB, L=L, F=F)
    forecast = acc[:, L:]                         # (B, F)
    return forecast[..., None]                    # (B, F, 1)


# -------------------------- deterministic parameter init --------------------------
def make_params(key, NB, P, S, H, L, T, F):
    ks = jax.random.split(key, 14)

    def nrm(k, shape, scale=0.1):
        return jax.random.normal(k, shape, jnp.float32) * scale

    return dict(
        ln1g=jnp.ones((NB, S), jnp.float32), ln1b=jnp.zeros((NB, S), jnp.float32),
        tW1=nrm(ks[0], (NB, P, H)), tb1=nrm(ks[1], (NB, H), 0.01),
        tW2=nrm(ks[2], (NB, H, P)), tb2=nrm(ks[3], (NB, P), 0.01),
        ln2g=jnp.ones((NB, S), jnp.float32), ln2b=jnp.zeros((NB, S), jnp.float32),
        cW1=nrm(ks[4], (NB, S, H)), cb1=nrm(ks[5], (NB, H), 0.01),
        cW2=nrm(ks[6], (NB, H, S)), cb2=nrm(ks[7], (NB, S), 0.01),
        thbW=nrm(ks[8], (NB, L, T)), thfW=nrm(ks[9], (NB, L, T)),
        bcW=nrm(ks[10], (NB, T, L)), bcb=nrm(ks[11], (NB, L), 0.01),
        fcW=nrm(ks[12], (NB, T, F)), fcb=nrm(ks[13], (NB, F), 0.01),
    )


# ------------------------------ pure-JAX reference ------------------------------
def reference_forward(params, x, *, num_blocks, B, P, S, F):
    L = P * S
    backcast = x
    forecast = jnp.zeros((B, F), jnp.float32)
    for blk in range(num_blocks):
        u = backcast.reshape(B, P, S)
        y = _layer_norm(u, params["ln1g"][blk], params["ln1b"][blk])
        yt = jnp.transpose(y, (0, 2, 1)).reshape(B * S, P)
        h = _gelu(yt @ params["tW1"][blk] + params["tb1"][blk])
        h = h @ params["tW2"][blk] + params["tb2"][blk]
        u = u + jnp.transpose(h.reshape(B, S, P), (0, 2, 1))
        z = _layer_norm(u, params["ln2g"][blk], params["ln2b"][blk])
        c = _gelu(z.reshape(B * P, S) @ params["cW1"][blk] + params["cb1"][blk])
        c = c @ params["cW2"][blk] + params["cb2"][blk]
        u = u + c.reshape(B, P, S)
        xm = u.reshape(B, L)
        theta_b = xm @ params["thbW"][blk]
        theta_f = xm @ params["thfW"][blk]
        backcast = backcast - (theta_b @ params["bcW"][blk] + params["bcb"][blk])
        forecast = forecast + (theta_f @ params["fcW"][blk] + params["fcb"][blk])
    return forecast[..., None]


# ------------------------------------ main ------------------------------------
if __name__ == "__main__":
    cfg = dict(
        task_name="short_term_forecast",
        seq_len=32, pred_len=16,
        patch_size=8, hidden_dim=32,
        thetas_dim=16, num_blocks_per_stack=2,
        scaling=False,
    )
    B = 4
    L, F = cfg["seq_len"], cfg["pred_len"]
    S = cfg["patch_size"]
    P = L // S
    H, T = cfg["hidden_dim"], cfg["thetas_dim"]
    NB = 3 * cfg["num_blocks_per_stack"]

    key = jax.random.PRNGKey(0)
    kx, kp = jax.random.split(key)
    x_enc = jax.random.normal(kx, (B, L, 1), jnp.float32)
    x_mark_enc = jnp.zeros((B, L, 1), jnp.float32)   # unused by this task
    x_dec = jnp.zeros((B, F, 1), jnp.float32)        # unused by this task
    x_mark_dec = jnp.zeros((B, F, 1), jnp.float32)   # unused by this task

    params = make_params(kp, NB, P, S, H, L, T, F)

    out = model_forward(params, x_enc, x_mark_enc, x_dec, x_mark_dec, cfg=cfg)
    out = jax.block_until_ready(out)

    ref = reference_forward(
        params, jnp.squeeze(x_enc, -1), num_blocks=NB, B=B, P=P, S=S, F=F
    )
    np.testing.assert_allclose(np.asarray(out), np.asarray(ref), rtol=2e-2, atol=2e-2)

    print("KERNEL_OK")
</pallas_src>

<mosaic_0001>
module attributes {stable_mosaic.version = 11 : i64} {
  func.func @mixbeats_kernel(%arg0: i32, %arg1: memref<4x32xf32, #tpu.memory_space<vmem>>, %arg2: memref<32x32xf32, #tpu.memory_space<vmem>>, %arg3: memref<6x32x256xbf16, #tpu.memory_space<vmem>>, %arg4: memref<6x256xf32, #tpu.memory_space<vmem>>, %arg5: memref<6x256x32xbf16, #tpu.memory_space<vmem>>, %arg6: memref<6x32xf32, #tpu.memory_space<vmem>>, %arg7: memref<6x32x128xbf16, #tpu.memory_space<vmem>>, %arg8: memref<6x128xf32, #tpu.memory_space<vmem>>, %arg9: memref<6x128x32xbf16, #tpu.memory_space<vmem>>, %arg10: memref<6x32xf32, #tpu.memory_space<vmem>>, %arg11: memref<6x32x48xbf16, #tpu.memory_space<vmem>>, %arg12: memref<6x48xf32, #tpu.memory_space<vmem>>, %arg13: memref<4x48xf32, #tpu.memory_space<vmem>>) attributes {dimension_semantics = [#tpu.dimension_semantics<parallel>], iteration_bounds = array<i64: 1>, scalar_prefetch = 0 : i64, scratch_operands = 0 : i64, tpu.core_type = #tpu.core_type<tc>, window_params = [{transform_indices = @transform_0, window_bounds = array<i64: 4, 32>}, {pipeline_mode = #tpu.pipeline_mode<synchronous>, transform_indices = @transform_1, window_bounds = array<i64: 32, 32>}, {pipeline_mode = #tpu.pipeline_mode<synchronous>, transform_indices = @transform_2, window_bounds = array<i64: 6, 32, 256>}, {pipeline_mode = #tpu.pipeline_mode<synchronous>, transform_indices = @transform_3, window_bounds = array<i64: 6, 256>}, {pipeline_mode = #tpu.pipeline_mode<synchronous>, transform_indices = @transform_4, window_bounds = array<i64: 6, 256, 32>}, {pipeline_mode = #tpu.pipeline_mode<synchronous>, transform_indices = @transform_5, window_bounds = array<i64: 6, 32>}, {pipeline_mode = #tpu.pipeline_mode<synchronous>, transform_indices = @transform_6, window_bounds = array<i64: 6, 32, 128>}, {pipeline_mode = #tpu.pipeline_mode<synchronous>, transform_indices = @transform_7, window_bounds = array<i64: 6, 128>}, {pipeline_mode = #tpu.pipeline_mode<synchronous>, transform_indices = @transform_8, window_bounds = array<i64: 6, 128, 32>}, {pipeline_mode = #tpu.pipeline_mode<synchronous>, transform_indices = @transform_9, window_bounds = array<i64: 6, 32>}, {pipeline_mode = #tpu.pipeline_mode<synchronous>, transform_indices = @transform_10, window_bounds = array<i64: 6, 32, 48>}, {pipeline_mode = #tpu.pipeline_mode<synchronous>, transform_indices = @transform_11, window_bounds = array<i64: 6, 48>}, {transform_indices = @transform_12, window_bounds = array<i64: 4, 48>}]} {
    %c0 = arith.constant 0 : index
    %c0_0 = arith.constant 0 : index
    %0 = vector.load %arg2[%c0, %c0_0] : memref<32x32xf32, #tpu.memory_space<vmem>>, vector<32x32xf32>
    %c0_1 = arith.constant 0 : index
    %c0_2 = arith.constant 0 : index
    %1 = vector.load %arg1[%c0_1, %c0_2] : memref<4x32xf32, #tpu.memory_space<vmem>>, vector<4x32xf32>
    %cst = arith.constant 0.000000e+00 : f32
    %2 = vector.broadcast %cst : f32 to vector<4x48xf32>
    %cst_3 = arith.constant dense<0.000000e+00> : vector<4x32xf32>
    %3 = tpu.matmul %1, %0, %cst_3 {dimension_numbers = #tpu.dot_dimension_numbers<[1], [0], [0], [1], [0, 0, 1, 1], [], []>} : vector<4x32xf32>, vector<32x32xf32>, vector<4x32xf32> -> vector<4x32xf32>
    %4 = arith.mulf %1, %1 : vector<4x32xf32>
    %cst_4 = arith.constant dense<0.000000e+00> : vector<4x32xf32>
    %5 = tpu.matmul %4, %0, %cst_4 {dimension_numbers = #tpu.dot_dimension_numbers<[1], [0], [0], [1], [0, 0, 1, 1], [], []>} : vector<4x32xf32>, vector<32x32xf32>, vector<4x32xf32> -> vector<4x32xf32>
    %6 = arith.subf %1, %3 : vector<4x32xf32>
    %7 = arith.mulf %3, %3 : vector<4x32xf32>
    %8 = arith.subf %5, %7 : vector<4x32xf32>
    %cst_5 = arith.constant 9.99999974E-6 : f32
    %9 = vector.broadcast %cst_5 : f32 to vector<4x32xf32>
    %10 = arith.addf %8, %9 : vector<4x32xf32>
    %11 = math.rsqrt %10 : vector<4x32xf32>
    %12 = arith.mulf %6, %11 : vector<4x32xf32>
    %13 = arith.truncf %12 : vector<4x32xf32> to vector<4x32xbf16>
    %c0_6 = arith.constant 0 : index
    %c0_7 = arith.constant 0 : index
    %c0_8 = arith.constant 0 : index
    %14 = vector.load %arg3[%c0_6, %c0_7, %c0_8] : memref<6x32x256xbf16, #tpu.memory_space<vmem>>, vector<1x32x256xbf16>
    %15 = vector.shape_cast %14 : vector<1x32x256xbf16> to vector<32x256xbf16>
    %cst_9 = arith.constant dense<0.000000e+00> : vector<4x256xf32>
    %16 = tpu.matmul %13, %15, %cst_9 {dimension_numbers = #tpu.dot_dimension_numbers<[1], [0], [0], [1], [0, 0, 1, 1], [], []>} : vector<4x32xbf16>, vector<32x256xbf16>, vector<4x256xf32> -> vector<4x256xf32>
    %c0_10 = arith.constant 0 : index
    %c0_11 = arith.constant 0 : index
    %17 = vector.load %arg4[%c0_10, %c0_11] : memref<6x256xf32, #tpu.memory_space<vmem>>, vector<1x256xf32>
    %18 = vector.shape_cast %17 : vector<1x256xf32> to vector<256xf32>
    %19 = vector.shape_cast %18 : vector<256xf32> to vector<1x256xf32>
    %20 = vector.broadcast %19 : vector<1x256xf32> to vector<4x256xf32>
    %21 = arith.addf %16, %20 : vector<4x256xf32>
    %cst_12 = arith.constant 5.000000e-01 : f32
    %22 = vector.broadcast %cst_12 : f32 to vector<4x256xf32>
    %23 = arith.mulf %22, %21 : vector<4x256xf32>
    %cst_13 = arith.constant 4.471500e-02 : f32
    %24 = vector.broadcast %cst_13 : f32 to vector<4x256xf32>
    %25 = arith.mulf %24, %21 : vector<4x256xf32>
    %26 = arith.mulf %25, %21 : vector<4x256xf32>
    %27 = arith.mulf %26, %21 : vector<4x256xf32>
    %28 = arith.addf %21, %27 : vector<4x256xf32>
    %cst_14 = arith.constant 0.797884583 : f32
    %29 = vector.broadcast %cst_14 : f32 to vector<4x256xf32>
    %30 = arith.mulf %29, %28 : vector<4x256xf32>
    %31 = math.tanh %30 : vector<4x256xf32>
    %cst_15 = arith.constant 1.000000e+00 : f32
    %32 = vector.broadcast %cst_15 : f32 to vector<4x256xf32>
    %33 = arith.addf %32, %31 : vector<4x256xf32>
    %34 = arith.mulf %23, %33 : vector<4x256xf32>
    %35 = arith.truncf %34 : vector<4x256xf32> to vector<4x256xbf16>
    %c0_16 = arith.constant 0 : index
    %c0_17 = arith.constant 0 : index
    %c0_18 = arith.constant 0 : index
    %36 = vector.load %arg5[%c0_16, %c0_17, %c0_18] : memref<6x256x32xbf16, #tpu.memory_space<vmem>>, vector<1x256x32xbf16>
    %37 = vector.shape_cast %36 : vector<1x256x32xbf16> to vector<256x32xbf16>
    %cst_19 = arith.constant dense<0.000000e+00> : vector<4x32xf32>
    %38 = tpu.matmul %35, %37, %cst_19 {dimension_numbers = #tpu.dot_dimension_numbers<[1], [0], [0], [1], [0, 0, 1, 1], [], []>} : vector<4x256xbf16>, vector<256x32xbf16>, vector<4x32xf32> -> vector<4x32xf32>
    %39 = arith.addf %1, %38 : vector<4x32xf32>
    %c0_20 = arith.constant 0 : index
    %c0_21 = arith.constant 0 : index
    %40 = vector.load %arg6[%c0_20, %c0_21] : memref<6x32xf32, #tpu.memory_space<vmem>>, vector<1x32xf32>
    %41 = vector.shape_cast %40 : vector<1x32xf32> to vector<32xf32>
    %42 = vector.shape_cast %41 : vector<32xf32> to vector<1x32xf32>
    %43 = vector.broadcast %42 : vector<1x32xf32> to vector<4x32xf32>
    %44 = arith.addf %39, %43 : vector<4x32xf32>
    %cst_22 = arith.constant dense<0.000000e+00> : vector<4x32xf32>
    %45 = tpu.matmul %44, %0, %cst_22 {dimension_numbers = #tpu.dot_dimension_numbers<[1], [0], [0], [1], [0, 0, 1, 1], [], []>} : vector<4x32xf32>, vector<32x32xf32>, vector<4x32xf32> -> vector<4x32xf32>
    %46 = arith.mulf %44, %44 : vector<4x32xf32>
    %cst_23 = arith.constant dense<0.000000e+00> : vector<4x32xf32>
    %47 = tpu.matmul %46, %0, %cst_23 {dimension_numbers = #tpu.dot_dimension_numbers<[1], [0], [0], [1], [0, 0, 1, 1], [], []>} : vector<4x32xf32>, vector<32x32xf32>, vector<4x32xf32> -> vector<4x32xf32>
    %48 = arith.subf %44, %45 : vector<4x32xf32>
    %49 = arith.mulf %45, %45 : vector<4x32xf32>
    %50 = arith.subf %47, %49 : vector<4x32xf32>
    %cst_24 = arith.constant 9.99999974E-6 : f32
    %51 = vector.broadcast %cst_24 : f32 to vector<4x32xf32>
    %52 = arith.addf %50, %51 : vector<4x32xf32>
    %53 = math.rsqrt %52 : vector<4x32xf32>
    %54 = arith.mulf %48, %53 : vector<4x32xf32>
    %55 = arith.truncf %54 : vector<4x32xf32> to vector<4x32xbf16>
    %c0_25 = arith.constant 0 : index
    %c0_26 = arith.constant 0 : index
    %c0_27 = arith.constant 0 : index
    %56 = vector.load %arg7[%c0_25, %c0_26, %c0_27] : memref<6x32x128xbf16, #tpu.memory_space<vmem>>, vector<1x32x128xbf16>
    %57 = vector.shape_cast %56 : vector<1x32x128xbf16> to vector<32x128xbf16>
    %cst_28 = arith.constant dense<0.000000e+00> : vector<4x128xf32>
    %58 = tpu.matmul %55, %57, %cst_28 {dimension_numbers = #tpu.dot_dimension_numbers<[1], [0], [0], [1], [0, 0, 1, 1], [], []>} : vector<4x32xbf16>, vector<32x128xbf16>, vector<4x128xf32> -> vector<4x128xf32>
    %c0_29 = arith.constant 0 : index
    %c0_30 = arith.constant 0 : index
    %59 = vector.load %arg8[%c0_29, %c0_30] : memref<6x128xf32, #tpu.memory_space<vmem>>, vector<1x128xf32>
    %60 = vector.shape_cast %59 : vector<1x128xf32> to vector<128xf32>
    %61 = vector.shape_cast %60 : vector<128xf32> to vector<1x128xf32>
    %62 = vector.broadcast %61 : vector<1x128xf32> to vector<4x128xf32>
    %63 = arith.addf %58, %62 : vector<4x128xf32>
    %cst_31 = arith.constant 5.000000e-01 : f32
    %64 = vector.broadcast %cst_31 : f32 to vector<4x128xf32>
    %65 = arith.mulf %64, %63 : vector<4x128xf32>
    %cst_32 = arith.constant 4.471500e-02 : f32
    %66 = vector.broadcast %cst_32 : f32 to vector<4x128xf32>
    %67 = arith.mulf %66, %63 : vector<4x128xf32>
    %68 = arith.mulf %67, %63 : vector<4x128xf32>
    %69 = arith.mulf %68, %63 : vector<4x128xf32>
    %70 = arith.addf %63, %69 : vector<4x128xf32>
    %cst_33 = arith.constant 0.797884583 : f32
    %71 = vector.broadcast %cst_33 : f32 to vector<4x128xf32>
    %72 = arith.mulf %71, %70 : vector<4x128xf32>
    %73 = math.tanh %72 : vector<4x128xf32>
    %cst_34 = arith.constant 1.000000e+00 : f32
    %74 = vector.broadcast %cst_34 : f32 to vector<4x128xf32>
    %75 = arith.addf %74, %73 : vector<4x128xf32>
    %76 = arith.mulf %65, %75 : vector<4x128xf32>
    %77 = arith.truncf %76 : vector<4x128xf32> to vector<4x128xbf16>
    %c0_35 = arith.constant 0 : index
    %c0_36 = arith.constant 0 : index
    %c0_37 = arith.constant 0 : index
    %78 = vector.load %arg9[%c0_35, %c0_36, %c0_37] : memref<6x128x32xbf16, #tpu.memory_space<vmem>>, vector<1x128x32xbf16>
    %79 = vector.shape_cast %78 : vector<1x128x32xbf16> to vector<128x32xbf16>
    %cst_38 = arith.constant dense<0.000000e+00> : vector<4x32xf32>
    %80 = tpu.matmul %77, %79, %cst_38 {dimension_numbers = #tpu.dot_dimension_numbers<[1], [0], [0], [1], [0, 0, 1, 1], [], []>} : vector<4x128xbf16>, vector<128x32xbf16>, vector<4x32xf32> -> vector<4x32xf32>
    %81 = arith.addf %44, %80 : vector<4x32xf32>
    %c0_39 = arith.constant 0 : index
    %c0_40 = arith.constant 0 : index
    %82 = vector.load %arg10[%c0_39, %c0_40] : memref<6x32xf32, #tpu.memory_space<vmem>>, vector<1x32xf32>
    %83 = vector.shape_cast %82 : vector<1x32xf32> to vector<32xf32>
    %84 = vector.shape_cast %83 : vector<32xf32> to vector<1x32xf32>
    %85 = vector.broadcast %84 : vector<1x32xf32> to vector<4x32xf32>
    %86 = arith.addf %81, %85 : vector<4x32xf32>
    %87 = arith.truncf %86 : vector<4x32xf32> to vector<4x32xbf16>
    %c0_41 = arith.constant 0 : index
    %c0_42 = arith.constant 0 : index
    %c0_43 = arith.constant 0 : index
    %88 = vector.load %arg11[%c0_41, %c0_42, %c0_43] : memref<6x32x48xbf16, #tpu.memory_space<vmem>>, vector<1x32x48xbf16>
    %89 = vector.shape_cast %88 : vector<1x32x48xbf16> to vector<32x48xbf16>
    %cst_44 = arith.constant dense<0.000000e+00> : vector<4x48xf32>
    %90 = tpu.matmul %87, %89, %cst_44 {dimension_numbers = #tpu.dot_dimension_numbers<[1], [0], [0], [1], [0, 0, 1, 1], [], []>} : vector<4x32xbf16>, vector<32x48xbf16>, vector<4x48xf32> -> vector<4x48xf32>
    %c0_45 = arith.constant 0 : index
    %c0_46 = arith.constant 0 : index
    %91 = vector.load %arg12[%c0_45, %c0_46] : memref<6x48xf32, #tpu.memory_space<vmem>>, vector<1x48xf32>
    %92 = vector.shape_cast %91 : vector<1x48xf32> to vector<48xf32>
    %93 = vector.shape_cast %92 : vector<48xf32> to vector<1x48xf32>
    %94 = vector.broadcast %93 : vector<1x48xf32> to vector<4x48xf32>
    %95 = arith.addf %90, %94 : vector<4x48xf32>
    %96 = vector.extract_strided_slice %95 {offsets = [0, 0], sizes = [4, 32], strides = [1, 1]} : vector<4x48xf32> to vector<4x32xf32>
    %97 = arith.subf %1, %96 : vector<4x32xf32>
    %98 = arith.addf %2, %95 : vector<4x48xf32>
    %cst_47 = arith.constant dense<0.000000e+00> : vector<4x32xf32>
    %99 = tpu.matmul %97, %0, %cst_47 {dimension_numbers = #tpu.dot_dimension_numbers<[1], [0], [0], [1], [0, 0, 1, 1], [], []>} : vector<4x32xf32>, vector<32x32xf32>, vector<4x32xf32> -> vector<4x32xf32>
    %100 = arith.mulf %97, %97 : vector<4x32xf32>
    %cst_48 = arith.constant dense<0.000000e+00> : vector<4x32xf32>
    %101 = tpu.matmul %100, %0, %cst_48 {dimension_numbers = #tpu.dot_dimension_numbers<[1], [0], [0], [1], [0, 0, 1, 1], [], []>} : vector<4x32xf32>, vector<32x32xf32>, vector<4x32xf32> -> vector<4x32xf32>
    %102 = arith.subf %97, %99 : vector<4x32xf32>
    %103 = arith.mulf %99, %99 : vector<4x32xf32>
    %104 = arith.subf %101, %103 : vector<4x32xf32>
    %cst_49 = arith.constant 9.99999974E-6 : f32
    %105 = vector.broadcast %cst_49 : f32 to vector<4x32xf32>
    %106 = arith.addf %104, %105 : vector<4x32xf32>
    %107 = math.rsqrt %106 : vector<4x32xf32>
    %108 = arith.mulf %102, %107 : vector<4x32xf32>
    %109 = arith.truncf %108 : vector<4x32xf32> to vector<4x32xbf16>
    %c1 = arith.constant 1 : index
    %c0_50 = arith.constant 0 : index
    %c0_51 = arith.constant 0 : index
    %110 = vector.load %arg3[%c1, %c0_50, %c0_51] : memref<6x32x256xbf16, #tpu.memory_space<vmem>>, vector<1x32x256xbf16>
    %111 = vector.shape_cast %110 : vector<1x32x256xbf16> to vector<32x256xbf16>
    %cst_52 = arith.constant dense<0.000000e+00> : vector<4x256xf32>
    %112 = tpu.matmul %109, %111, %cst_52 {dimension_numbers = #tpu.dot_dimension_numbers<[1], [0], [0], [1], [0, 0, 1, 1], [], []>} : vector<4x32xbf16>, vector<32x256xbf16>, vector<4x256xf32> -> vector<4x256xf32>
    %c1_53 = arith.constant 1 : index
    %c0_54 = arith.constant 0 : index
    %113 = vector.load %arg4[%c1_53, %c0_54] : memref<6x256xf32, #tpu.memory_space<vmem>>, vector<1x256xf32>
    %114 = vector.shape_cast %113 : vector<1x256xf32> to vector<256xf32>
    %115 = vector.shape_cast %114 : vector<256xf32> to vector<1x256xf32>
    %116 = vector.broadcast %115 : vector<1x256xf32> to vector<4x256xf32>
    %117 = arith.addf %112, %116 : vector<4x256xf32>
    %cst_55 = arith.constant 5.000000e-01 : f32
    %118 = vector.broadcast %cst_55 : f32 to vector<4x256xf32>
    %119 = arith.mulf %118, %117 : vector<4x256xf32>
    %cst_56 = arith.constant 4.471500e-02 : f32
    %120 = vector.broadcast %cst_56 : f32 to vector<4x256xf32>
    %121 = arith.mulf %120, %117 : vector<4x256xf32>
    %122 = arith.mulf %121, %117 : vector<4x256xf32>
    %123 = arith.mulf %122, %117 : vector<4x256xf32>
    %124 = arith.addf %117, %123 : vector<4x256xf32>
    %cst_57 = arith.constant 0.797884583 : f32
    %125 = vector.broadcast %cst_57 : f32 to vector<4x256xf32>
    %126 = arith.mulf %125, %124 : vector<4x256xf32>
    %127 = math.tanh %126 : vector<4x256xf32>
    %cst_58 = arith.constant 1.000000e+00 : f32
    %128 = vector.broadcast %cst_58 : f32 to vector<4x256xf32>
    %129 = arith.addf %128, %127 : vector<4x256xf32>
    %130 = arith.mulf %119, %129 : vector<4x256xf32>
    %131 = arith.truncf %130 : vector<4x256xf32> to vector<4x256xbf16>
    %c1_59 = arith.constant 1 : index
    %c0_60 = arith.constant 0 : index
    %c0_61 = arith.constant 0 : index
    %132 = vector.load %arg5[%c1_59, %c0_60, %c0_61] : memref<6x256x32xbf16, #tpu.memory_space<vmem>>, vector<1x256x32xbf16>
    %133 = vector.shape_cast %132 : vector<1x256x32xbf16> to vector<256x32xbf16>
    %cst_62 = arith.constant dense<0.000000e+00> : vector<4x32xf32>
    %134 = tpu.matmul %131, %133, %cst_62 {dimension_numbers = #tpu.dot_dimension_numbers<[1], [0], [0], [1], [0, 0, 1, 1], [], []>} : vector<4x256xbf16>, vector<256x32xbf16>, vector<4x32xf32> -> vector<4x32xf32>
    %135 = arith.addf %97, %134 : vector<4x32xf32>
    %c1_63 = arith.constant 1 : index
    %c0_64 = arith.constant 0 : index
    %136 = vector.load %arg6[%c1_63, %c0_64] : memref<6x32xf32, #tpu.memory_space<vmem>>, vector<1x32xf32>
    %137 = vector.shape_cast %136 : vector<1x32xf32> to vector<32xf32>
    %138 = vector.shape_cast %137 : vector<32xf32> to vector<1x32xf32>
    %139 = vector.broadcast %138 : vector<1x32xf32> to vector<4x32xf32>
    %140 = arith.addf %135, %139 : vector<4x32xf32>
    %cst_65 = arith.constant dense<0.000000e+00> : vector<4x32xf32>
    %141 = tpu.matmul %140, %0, %cst_65 {dimension_numbers = #tpu.dot_dimension_numbers<[1], [0], [0], [1], [0, 0, 1, 1], [], []>} : vector<4x32xf32>, vector<32x32xf32>, vector<4x32xf32> -> vector<4x32xf32>
    %142 = arith.mulf %140, %140 : vector<4x32xf32>
    %cst_66 = arith.constant dense<0.000000e+00> : vector<4x32xf32>
    %143 = tpu.matmul %142, %0, %cst_66 {dimension_numbers = #tpu.dot_dimension_numbers<[1], [0], [0], [1], [0, 0, 1, 1], [], []>} : vector<4x32xf32>, vector<32x32xf32>, vector<4x32xf32> -> vector<4x32xf32>
    %144 = arith.subf %140, %141 : vector<4x32xf32>
    %145 = arith.mulf %141, %141 : vector<4x32xf32>
    %146 = arith.subf %143, %145 : vector<4x32xf32>
    %cst_67 = arith.constant 9.99999974E-6 : f32
    %147 = vector.broadcast %cst_67 : f32 to vector<4x32xf32>
    %148 = arith.addf %146, %147 : vector<4x32xf32>
    %149 = math.rsqrt %148 : vector<4x32xf32>
    %150 = arith.mulf %144, %149 : vector<4x32xf32>
    %151 = arith.truncf %150 : vector<4x32xf32> to vector<4x32xbf16>
    %c1_68 = arith.constant 1 : index
    %c0_69 = arith.constant 0 : index
    %c0_70 = arith.constant 0 : index
    %152 = vector.load %arg7[%c1_68, %c0_69, %c0_70] : memref<6x32x128xbf16, #tpu.memory_space<vmem>>, vector<1x32x128xbf16>
    %153 = vector.shape_cast %152 : vector<1x32x128xbf16> to vector<32x128xbf16>
    %cst_71 = arith.constant dense<0.000000e+00> : vector<4x128xf32>
    %154 = tpu.matmul %151, %153, %cst_71 {dimension_numbers = #tpu.dot_dimension_numbers<[1], [0], [0], [1], [0, 0, 1, 1], [], []>} : vector<4x32xbf16>, vector<32x128xbf16>, vector<4x128xf32> -> vector<4x128xf32>
    %c1_72 = arith.constant 1 : index
    %c0_73 = arith.constant 0 : index
    %155 = vector.load %arg8[%c1_72, %c0_73] : memref<6x128xf32, #tpu.memory_space<vmem>>, vector<1x128xf32>
    %156 = vector.shape_cast %155 : vector<1x128xf32> to vector<128xf32>
    %157 = vector.shape_cast %156 : vector<128xf32> to vector<1x128xf32>
    %158 = vector.broadcast %157 : vector<1x128xf32> to vector<4x128xf32>
    %159 = arith.addf %154, %158 : vector<4x128xf32>
    %cst_74 = arith.constant 5.000000e-01 : f32
    %160 = vector.broadcast %cst_74 : f32 to vector<4x128xf32>
    %161 = arith.mulf %160, %159 : vector<4x128xf32>
    %cst_75 = arith.constant 4.471500e-02 : f32
    %162 = vector.broadcast %cst_75 : f32 to vector<4x128xf32>
    %163 = arith.mulf %162, %159 : vector<4x128xf32>
    %164 = arith.mulf %163, %159 : vector<4x128xf32>
    %165 = arith.mulf %164, %159 : vector<4x128xf32>
    %166 = arith.addf %159, %165 : vector<4x128xf32>
    %cst_76 = arith.constant 0.797884583 : f32
    %167 = vector.broadcast %cst_76 : f32 to vector<4x128xf32>
    %168 = arith.mulf %167, %166 : vector<4x128xf32>
    %169 = math.tanh %168 : vector<4x128xf32>
    %cst_77 = arith.constant 1.000000e+00 : f32
    %170 = vector.broadcast %cst_77 : f32 to vector<4x128xf32>
    %171 = arith.addf %170, %169 : vector<4x128xf32>
    %172 = arith.mulf %161, %171 : vector<4x128xf32>
    %173 = arith.truncf %172 : vector<4x128xf32> to vector<4x128xbf16>
    %c1_78 = arith.constant 1 : index
    %c0_79 = arith.constant 0 : index
    %c0_80 = arith.constant 0 : index
    %174 = vector.load %arg9[%c1_78, %c0_79, %c0_80] : memref<6x128x32xbf16, #tpu.memory_space<vmem>>, vector<1x128x32xbf16>
    %175 = vector.shape_cast %174 : vector<1x128x32xbf16> to vector<128x32xbf16>
    %cst_81 = arith.constant dense<0.000000e+00> : vector<4x32xf32>
    %176 = tpu.matmul %173, %175, %cst_81 {dimension_numbers = #tpu.dot_dimension_numbers<[1], [0], [0], [1], [0, 0, 1, 1], [], []>} : vector<4x128xbf16>, vector<128x32xbf16>, vector<4x32xf32> -> vector<4x32xf32>
    %177 = arith.addf %140, %176 : vector<4x32xf32>
    %c1_82 = arith.constant 1 : index
    %c0_83 = arith.constant 0 : index
    %178 = vector.load %arg10[%c1_82, %c0_83] : memref<6x32xf32, #tpu.memory_space<vmem>>, vector<1x32xf32>
    %179 = vector.shape_cast %178 : vector<1x32xf32> to vector<32xf32>
    %180 = vector.shape_cast %179 : vector<32xf32> to vector<1x32xf32>
    %181 = vector.broadcast %180 : vector<1x32xf32> to vector<4x32xf32>
    %182 = arith.addf %177, %181 : vector<4x32xf32>
    %183 = arith.truncf %182 : vector<4x32xf32> to vector<4x32xbf16>
    %c1_84 = arith.constant 1 : index
    %c0_85 = arith.constant 0 : index
    %c0_86 = arith.constant 0 : index
    %184 = vector.load %arg11[%c1_84, %c0_85, %c0_86] : memref<6x32x48xbf16, #tpu.memory_space<vmem>>, vector<1x32x48xbf16>
    %185 = vector.shape_cast %184 : vector<1x32x48xbf16> to vector<32x48xbf16>
    %cst_87 = arith.constant dense<0.000000e+00> : vector<4x48xf32>
    %186 = tpu.matmul %183, %185, %cst_87 {dimension_numbers = #tpu.dot_dimension_numbers<[1], [0], [0], [1], [0, 0, 1, 1], [], []>} : vector<4x32xbf16>, vector<32x48xbf16>, vector<4x48xf32> -> vector<4x48xf32>
    %c1_88 = arith.constant 1 : index
    %c0_89 = arith.constant 0 : index
    %187 = vector.load %arg12[%c1_88, %c0_89] : memref<6x48xf32, #tpu.memory_space<vmem>>, vector<1x48xf32>
    %188 = vector.shape_cast %187 : vector<1x48xf32> to vector<48xf32>
    %189 = vector.shape_cast %188 : vector<48xf32> to vector<1x48xf32>
    %190 = vector.broadcast %189 : vector<1x48xf32> to vector<4x48xf32>
    %191 = arith.addf %186, %190 : vector<4x48xf32>
    %192 = vector.extract_strided_slice %191 {offsets = [0, 0], sizes = [4, 32], strides = [1, 1]} : vector<4x48xf32> to vector<4x32xf32>
    %193 = arith.subf %97, %192 : vector<4x32xf32>
    %194 = arith.addf %98, %191 : vector<4x48xf32>
    %cst_90 = arith.constant dense<0.000000e+00> : vector<4x32xf32>
    %195 = tpu.matmul %193, %0, %cst_90 {dimension_numbers = #tpu.dot_dimension_numbers<[1], [0], [0], [1], [0, 0, 1, 1], [], []>} : vector<4x32xf32>, vector<32x32xf32>, vector<4x32xf32> -> vector<4x32xf32>
    %196 = arith.mulf %193, %193 : vector<4x32xf32>
    %cst_91 = arith.constant dense<0.000000e+00> : vector<4x32xf32>
    %197 = tpu.matmul %196, %0, %cst_91 {dimension_numbers = #tpu.dot_dimension_numbers<[1], [0], [0], [1], [0, 0, 1, 1], [], []>} : vector<4x32xf32>, vector<32x32xf32>, vector<4x32xf32> -> vector<4x32xf32>
    %198 = arith.subf %193, %195 : vector<4x32xf32>
    %199 = arith.mulf %195, %195 : vector<4x32xf32>
    %200 = arith.subf %197, %199 : vector<4x32xf32>
    %cst_92 = arith.constant 9.99999974E-6 : f32
    %201 = vector.broadcast %cst_92 : f32 to vector<4x32xf32>
    %202 = arith.addf %200, %201 : vector<4x32xf32>
    %203 = math.rsqrt %202 : vector<4x32xf32>
    %204 = arith.mulf %198, %203 : vector<4x32xf32>
    %205 = arith.truncf %204 : vector<4x32xf32> to vector<4x32xbf16>
    %c2 = arith.constant 2 : index
    %c0_93 = arith.constant 0 : index
    %c0_94 = arith.constant 0 : index
    %206 = vector.load %arg3[%c2, %c0_93, %c0_94] : memref<6x32x256xbf16, #tpu.memory_space<vmem>>, vector<1x32x256xbf16>
    %207 = vector.shape_cast %206 : vector<1x32x256xbf16> to vector<32x256xbf16>
    %cst_95 = arith.constant dense<0.000000e+00> : vector<4x256xf32>
    %208 = tpu.matmul %205, %207, %cst_95 {dimension_numbers = #tpu.dot_dimension_numbers<[1], [0], [0], [1], [0, 0, 1, 1], [], []>} : vector<4x32xbf16>, vector<32x256xbf16>, vector<4x256xf32> -> vector<4x256xf32>
    %c2_96 = arith.constant 2 : index
    %c0_97 = arith.constant 0 : index
    %209 = vector.load %arg4[%c2_96, %c0_97] : memref<6x256xf32, #tpu.memory_space<vmem>>, vector<1x256xf32>
    %210 = vector.shape_cast %209 : vector<1x256xf32> to vector<256xf32>
    %211 = vector.shape_cast %210 : vector<256xf32> to vector<1x256xf32>
    %212 = vector.broadcast %211 : vector<1x256xf32> to vector<4x256xf32>
    %213 = arith.addf %208, %212 : vector<4x256xf32>
    %cst_98 = arith.constant 5.000000e-01 : f32
    %214 = vector.broadcast %cst_98 : f32 to vector<4x256xf32>
    %215 = arith.mulf %214, %213 : vector<4x256xf32>
    %cst_99 = arith.constant 4.471500e-02 : f32
    %216 = vector.broadcast %cst_99 : f32 to vector<4x256xf32>
    %217 = arith.mulf %216, %213 : vector<4x256xf32>
    %218 = arith.mulf %217, %213 : vector<4x256xf32>
    %219 = arith.mulf %218, %213 : vector<4x256xf32>
    %220 = arith.addf %213, %219 : vector<4x256xf32>
    %cst_100 = arith.constant 0.797884583 : f32
    %221 = vector.broadcast %cst_100 : f32 to vector<4x256xf32>
    %222 = arith.mulf %221, %220 : vector<4x256xf32>
    %223 = math.tanh %222 : vector<4x256xf32>
    %cst_101 = arith.constant 1.000000e+00 : f32
    %224 = vector.broadcast %cst_101 : f32 to vector<4x256xf32>
    %225 = arith.addf %224, %223 : vector<4x256xf32>
    %226 = arith.mulf %215, %225 : vector<4x256xf32>
    %227 = arith.truncf %226 : vector<4x256xf32> to vector<4x256xbf16>
    %c2_102 = arith.constant 2 : index
    %c0_103 = arith.constant 0 : index
    %c0_104 = arith.constant 0 : index
    %228 = vector.load %arg5[%c2_102, %c0_103, %c0_104] : memref<6x256x32xbf16, #tpu.memory_space<vmem>>, vector<1x256x32xbf16>
    %229 = vector.shape_cast %228 : vector<1x256x32xbf16> to vector<256x32xbf16>
    %cst_105 = arith.constant dense<0.000000e+00> : vector<4x32xf32>
    %230 = tpu.matmul %227, %229, %cst_105 {dimension_numbers = #tpu.dot_dimension_numbers<[1], [0], [0], [1], [0, 0, 1, 1], [], []>} : vector<4x256xbf16>, vector<256x32xbf16>, vector<4x32xf32> -> vector<4x32xf32>
    %231 = arith.addf %193, %230 : vector<4x32xf32>
    %c2_106 = arith.constant 2 : index
    %c0_107 = arith.constant 0 : index
    %232 = vector.load %arg6[%c2_106, %c0_107] : memref<6x32xf32, #tpu.memory_space<vmem>>, vector<1x32xf32>
    %233 = vector.shape_cast %232 : vector<1x32xf32> to vector<32xf32>
    %234 = vector.shape_cast %233 : vector<32xf32> to vector<1x32xf32>
    %235 = vector.broadcast %234 : vector<1x32xf32> to vector<4x32xf32>
    %236 = arith.addf %231, %235 : vector<4x32xf32>
    %cst_108 = arith.constant dense<0.000000e+00> : vector<4x32xf32>
    %237 = tpu.matmul %236, %0, %cst_108 {dimension_numbers = #tpu.dot_dimension_numbers<[1], [0], [0], [1], [0, 0, 1, 1], [], []>} : vector<4x32xf32>, vector<32x32xf32>, vector<4x32xf32> -> vector<4x32xf32>
    %238 = arith.mulf %236, %236 : vector<4x32xf32>
    %cst_109 = arith.constant dense<0.000000e+00> : vector<4x32xf32>
    %239 = tpu.matmul %238, %0, %cst_109 {dimension_numbers = #tpu.dot_dimension_numbers<[1], [0], [0], [1], [0, 0, 1, 1], [], []>} : vector<4x32xf32>, vector<32x32xf32>, vector<4x32xf32> -> vector<4x32xf32>
    %240 = arith.subf %236, %237 : vector<4x32xf32>
    %241 = arith.mulf %237, %237 : vector<4x32xf32>
    %242 = arith.subf %239, %241 : vector<4x32xf32>
    %cst_110 = arith.constant 9.99999974E-6 : f32
    %243 = vector.broadcast %cst_110 : f32 to vector<4x32xf32>
    %244 = arith.addf %242, %243 : vector<4x32xf32>
    %245 = math.rsqrt %244 : vector<4x32xf32>
    %246 = arith.mulf %240, %245 : vector<4x32xf32>
    %247 = arith.truncf %246 : vector<4x32xf32> to vector<4x32xbf16>
    %c2_111 = arith.constant 2 : index
    %c0_112 = arith.constant 0 : index
    %c0_113 = arith.constant 0 : index
    %248 = vector.load %arg7[%c2_111, %c0_112, %c0_113] : memref<6x32x128xbf16, #tpu.memory_space<vmem>>, vector<1x32x128xbf16>
    %249 = vector.shape_cast %248 : vector<1x32x128xbf16> to vector<32x128xbf16>
    %cst_114 = arith.constant dense<0.000000e+00> : vector<4x128xf32>
    %250 = tpu.matmul %247, %249, %cst_114 {dimension_numbers = #tpu.dot_dimension_numbers<[1], [0], [0], [1], [0, 0, 1, 1], [], []>} : vector<4x32xbf16>, vector<32x128xbf16>, vector<4x128xf32> -> vector<4x128xf32>
    %c2_115 = arith.constant 2 : index
    %c0_116 = arith.constant 0 : index
    %251 = vector.load %arg8[%c2_115, %c0_116] : memref<6x128xf32, #tpu.memory_space<vmem>>, vector<1x128xf32>
    %252 = vector.shape_cast %251 : vector<1x128xf32> to vector<128xf32>
    %253 = vector.shape_cast %252 : vector<128xf32> to vector<1x128xf32>
    %254 = vector.broadcast %253 : vector<1x128xf32> to vector<4x128xf32>
    %255 = arith.addf %250, %254 : vector<4x128xf32>
    %cst_117 = arith.constant 5.000000e-01 : f32
    %256 = vector.broadcast %cst_117 : f32 to vector<4x128xf32>
    %257 = arith.mulf %256, %255 : vector<4x128xf32>
    %cst_118 = arith.constant 4.471500e-02 : f32
    %258 = vector.broadcast %cst_118 : f32 to vector<4x128xf32>
    %259 = arith.mulf %258, %255 : vector<4x128xf32>
    %260 = arith.mulf %259, %255 : vector<4x128xf32>
    %261 = arith.mulf %260, %255 : vector<4x128xf32>
    %262 = arith.addf %255, %261 : vector<4x128xf32>
    %cst_119 = arith.constant 0.797884583 : f32
    %263 = vector.broadcast %cst_119 : f32 to vector<4x128xf32>
    %264 = arith.mulf %263, %262 : vector<4x128xf32>
    %265 = math.tanh %264 : vector<4x128xf32>
    %cst_120 = arith.constant 1.000000e+00 : f32
    %266 = vector.broadcast %cst_120 : f32 to vector<4x128xf32>
    %267 = arith.addf %266, %265 : vector<4x128xf32>
    %268 = arith.mulf %257, %267 : vector<4x128xf32>
    %269 = arith.truncf %268 : vector<4x128xf32> to vector<4x128xbf16>
    %c2_121 = arith.constant 2 : index
    %c0_122 = arith.constant 0 : index
    %c0_123 = arith.constant 0 : index
    %270 = vector.load %arg9[%c2_121, %c0_122, %c0_123] : memref<6x128x32xbf16, #tpu.memory_space<vmem>>, vector<1x128x32xbf16>
    %271 = vector.shape_cast %270 : vector<1x128x32xbf16> to vector<128x32xbf16>
    %cst_124 = arith.constant dense<0.000000e+00> : vector<4x32xf32>
    %272 = tpu.matmul %269, %271, %cst_124 {dimension_numbers = #tpu.dot_dimension_numbers<[1], [0], [0], [1], [0, 0, 1, 1], [], []>} : vector<4x128xbf16>, vector<128x32xbf16>, vector<4x32xf32> -> vector<4x32xf32>
    %273 = arith.addf %236, %272 : vector<4x32xf32>
    %c2_125 = arith.constant 2 : index
    %c0_126 = arith.constant 0 : index
    %274 = vector.load %arg10[%c2_125, %c0_126] : memref<6x32xf32, #tpu.memory_space<vmem>>, vector<1x32xf32>
    %275 = vector.shape_cast %274 : vector<1x32xf32> to vector<32xf32>
    %276 = vector.shape_cast %275 : vector<32xf32> to vector<1x32xf32>
    %277 = vector.broadcast %276 : vector<1x32xf32> to vector<4x32xf32>
    %278 = arith.addf %273, %277 : vector<4x32xf32>
    %279 = arith.truncf %278 : vector<4x32xf32> to vector<4x32xbf16>
    %c2_127 = arith.constant 2 : index
    %c0_128 = arith.constant 0 : index
    %c0_129 = arith.constant 0 : index
    %280 = vector.load %arg11[%c2_127, %c0_128, %c0_129] : memref<6x32x48xbf16, #tpu.memory_space<vmem>>, vector<1x32x48xbf16>
    %281 = vector.shape_cast %280 : vector<1x32x48xbf16> to vector<32x48xbf16>
    %cst_130 = arith.constant dense<0.000000e+00> : vector<4x48xf32>
    %282 = tpu.matmul %279, %281, %cst_130 {dimension_numbers = #tpu.dot_dimension_numbers<[1], [0], [0], [1], [0, 0, 1, 1], [], []>} : vector<4x32xbf16>, vector<32x48xbf16>, vector<4x48xf32> -> vector<4x48xf32>
    %c2_131 = arith.constant 2 : index
    %c0_132 = arith.constant 0 : index
    %283 = vector.load %arg12[%c2_131, %c0_132] : memref<6x48xf32, #tpu.memory_space<vmem>>, vector<1x48xf32>
    %284 = vector.shape_cast %283 : vector<1x48xf32> to vector<48xf32>
    %285 = vector.shape_cast %284 : vector<48xf32> to vector<1x48xf32>
    %286 = vector.broadcast %285 : vector<1x48xf32> to vector<4x48xf32>
    %287 = arith.addf %282, %286 : vector<4x48xf32>
    %288 = vector.extract_strided_slice %287 {offsets = [0, 0], sizes = [4, 32], strides = [1, 1]} : vector<4x48xf32> to vector<4x32xf32>
    %289 = arith.subf %193, %288 : vector<4x32xf32>
    %290 = arith.addf %194, %287 : vector<4x48xf32>
    %cst_133 = arith.constant dense<0.000000e+00> : vector<4x32xf32>
    %291 = tpu.matmul %289, %0, %cst_133 {dimension_numbers = #tpu.dot_dimension_numbers<[1], [0], [0], [1], [0, 0, 1, 1], [], []>} : vector<4x32xf32>, vector<32x32xf32>, vector<4x32xf32> -> vector<4x32xf32>
    %292 = arith.mulf %289, %289 : vector<4x32xf32>
    %cst_134 = arith.constant dense<0.000000e+00> : vector<4x32xf32>
    %293 = tpu.matmul %292, %0, %cst_134 {dimension_numbers = #tpu.dot_dimension_numbers<[1], [0], [0], [1], [0, 0, 1, 1], [], []>} : vector<4x32xf32>, vector<32x32xf32>, vector<4x32xf32> -> vector<4x32xf32>
    %294 = arith.subf %289, %291 : vector<4x32xf32>
    %295 = arith.mulf %291, %291 : vector<4x32xf32>
    %296 = arith.subf %293, %295 : vector<4x32xf32>
    %cst_135 = arith.constant 9.99999974E-6 : f32
    %297 = vector.broadcast %cst_135 : f32 to vector<4x32xf32>
    %298 = arith.addf %296, %297 : vector<4x32xf32>
    %299 = math.rsqrt %298 : vector<4x32xf32>
    %300 = arith.mulf %294, %299 : vector<4x32xf32>
    %301 = arith.truncf %300 : vector<4x32xf32> to vector<4x32xbf16>
    %c3 = arith.constant 3 : index
    %c0_136 = arith.constant 0 : index
    %c0_137 = arith.constant 0 : index
    %302 = vector.load %arg3[%c3, %c0_136, %c0_137] : memref<6x32x256xbf16, #tpu.memory_space<vmem>>, vector<1x32x256xbf16>
    %303 = vector.shape_cast %302 : vector<1x32x256xbf16> to vector<32x256xbf16>
    %cst_138 = arith.constant dense<0.000000e+00> : vector<4x256xf32>
    %304 = tpu.matmul %301, %303, %cst_138 {dimension_numbers = #tpu.dot_dimension_numbers<[1], [0], [0], [1], [0, 0, 1, 1], [], []>} : vector<4x32xbf16>, vector<32x256xbf16>, vector<4x256xf32> -> vector<4x256xf32>
    %c3_139 = arith.constant 3 : index
    %c0_140 = arith.constant 0 : index
    %305 = vector.load %arg4[%c3_139, %c0_140] : memref<6x256xf32, #tpu.memory_space<vmem>>, vector<1x256xf32>
    %306 = vector.shape_cast %305 : vector<1x256xf32> to vector<256xf32>
    %307 = vector.shape_cast %306 : vector<256xf32> to vector<1x256xf32>
    %308 = vector.broadcast %307 : vector<1x256xf32> to vector<4x256xf32>
    %309 = arith.addf %304, %308 : vector<4x256xf32>
    %cst_141 = arith.constant 5.000000e-01 : f32
    %310 = vector.broadcast %cst_141 : f32 to vector<4x256xf32>
    %311 = arith.mulf %310, %309 : vector<4x256xf32>
    %cst_142 = arith.constant 4.471500e-02 : f32
    %312 = vector.broadcast %cst_142 : f32 to vector<4x256xf32>
    %313 = arith.mulf %312, %309 : vector<4x256xf32>
    %314 = arith.mulf %313, %309 : vector<4x256xf32>
    %315 = arith.mulf %314, %309 : vector<4x256xf32>
    %316 = arith.addf %309, %315 : vector<4x256xf32>
    %cst_143 = arith.constant 0.797884583 : f32
    %317 = vector.broadcast %cst_143 : f32 to vector<4x256xf32>
    %318 = arith.mulf %317, %316 : vector<4x256xf32>
    %319 = math.tanh %318 : vector<4x256xf32>
    %cst_144 = arith.constant 1.000000e+00 : f32
    %320 = vector.broadcast %cst_144 : f32 to vector<4x256xf32>
    %321 = arith.addf %320, %319 : vector<4x256xf32>
    %322 = arith.mulf %311, %321 : vector<4x256xf32>
    %323 = arith.truncf %322 : vector<4x256xf32> to vector<4x256xbf16>
    %c3_145 = arith.constant 3 : index
    %c0_146 = arith.constant 0 : index
    %c0_147 = arith.constant 0 : index
    %324 = vector.load %arg5[%c3_145, %c0_146, %c0_147] : memref<6x256x32xbf16, #tpu.memory_space<vmem>>, vector<1x256x32xbf16>
    %325 = vector.shape_cast %324 : vector<1x256x32xbf16> to vector<256x32xbf16>
    %cst_148 = arith.constant dense<0.000000e+00> : vector<4x32xf32>
    %326 = tpu.matmul %323, %325, %cst_148 {dimension_numbers = #tpu.dot_dimension_numbers<[1], [0], [0], [1], [0, 0, 1, 1], [], []>} : vector<4x256xbf16>, vector<256x32xbf16>, vector<4x32xf32> -> vector<4x32xf32>
    %327 = arith.addf %289, %326 : vector<4x32xf32>
    %c3_149 = arith.constant 3 : index
    %c0_150 = arith.constant 0 : index
    %328 = vector.load %arg6[%c3_149, %c0_150] : memref<6x32xf32, #tpu.memory_space<vmem>>, vector<1x32xf32>
    %329 = vector.shape_cast %328 : vector<1x32xf32> to vector<32xf32>
    %330 = vector.shape_cast %329 : vector<32xf32> to vector<1x32xf32>
    %331 = vector.broadcast %330 : vector<1x32xf32> to vector<4x32xf32>
    %332 = arith.addf %327, %331 : vector<4x32xf32>
    %cst_151 = arith.constant dense<0.000000e+00> : vector<4x32xf32>
    %333 = tpu.matmul %332, %0, %cst_151 {dimension_numbers = #tpu.dot_dimension_numbers<[1], [0], [0], [1], [0, 0, 1, 1], [], []>} : vector<4x32xf32>, vector<32x32xf32>, vector<4x32xf32> -> vector<4x32xf32>
    %334 = arith.mulf %332, %332 : vector<4x32xf32>
    %cst_152 = arith.constant dense<0.000000e+00> : vector<4x32xf32>
    %335 = tpu.matmul %334, %0, %cst_152 {dimension_numbers = #tpu.dot_dimension_numbers<[1], [0], [0], [1], [0, 0, 1, 1], [], []>} : vector<4x32xf32>, vector<32x32xf32>, vector<4x32xf32> -> vector<4x32xf32>
    %336 = arith.subf %332, %333 : vector<4x32xf32>
    %337 = arith.mulf %333, %333 : vector<4x32xf32>
    %338 = arith.subf %335, %337 : vector<4x32xf32>
    %cst_153 = arith.constant 9.99999974E-6 : f32
    %339 = vector.broadcast %cst_153 : f32 to vector<4x32xf32>
    %340 = arith.addf %338, %339 : vector<4x32xf32>
    %341 = math.rsqrt %340 : vector<4x32xf32>
    %342 = arith.mulf %336, %341 : vector<4x32xf32>
    %343 = arith.truncf %342 : vector<4x32xf32> to vector<4x32xbf16>
    %c3_154 = arith.constant 3 : index
    %c0_155 = arith.constant 0 : index
    %c0_156 = arith.constant 0 : index
    %344 = vector.load %arg7[%c3_154, %c0_155, %c0_156] : memref<6x32x128xbf16, #tpu.memory_space<vmem>>, vector<1x32x128xbf16>
    %345 = vector.shape_cast %344 : vector<1x32x128xbf16> to vector<32x128xbf16>
    %cst_157 = arith.constant dense<0.000000e+00> : vector<4x128xf32>
    %346 = tpu.matmul %343, %345, %cst_157 {dimension_numbers = #tpu.dot_dimension_numbers<[1], [0], [0], [1], [0, 0, 1, 1], [], []>} : vector<4x32xbf16>, vector<32x128xbf16>, vector<4x128xf32> -> vector<4x128xf32>
    %c3_158 = arith.constant 3 : index
    %c0_159 = arith.constant 0 : index
    %347 = vector.load %arg8[%c3_158, %c0_159] : memref<6x128xf32, #tpu.memory_space<vmem>>, vector<1x128xf32>
    %348 = vector.shape_cast %347 : vector<1x128xf32> to vector<128xf32>
    %349 = vector.shape_cast %348 : vector<128xf32> to vector<1x128xf32>
    %350 = vector.broadcast %349 : vector<1x128xf32> to vector<4x128xf32>
    %351 = arith.addf %346, %350 : vector<4x128xf32>
    %cst_160 = arith.constant 5.000000e-01 : f32
    %352 = vector.broadcast %cst_160 : f32 to vector<4x128xf32>
    %353 = arith.mulf %352, %351 : vector<4x128xf32>
    %cst_161 = arith.constant 4.471500e-02 : f32
    %354 = vector.broadcast %cst_161 : f32 to vector<4x128xf32>
    %355 = arith.mulf %354, %351 : vector<4x128xf32>
    %356 = arith.mulf %355, %351 : vector<4x128xf32>
    %357 = arith.mulf %356, %351 : vector<4x128xf32>
    %358 = arith.addf %351, %357 : vector<4x128xf32>
    %cst_162 = arith.constant 0.797884583 : f32
    %359 = vector.broadcast %cst_162 : f32 to vector<4x128xf32>
    %360 = arith.mulf %359, %358 : vector<4x128xf32>
    %361 = math.tanh %360 : vector<4x128xf32>
    %cst_163 = arith.constant 1.000000e+00 : f32
    %362 = vector.broadcast %cst_163 : f32 to vector<4x128xf32>
    %363 = arith.addf %362, %361 : vector<4x128xf32>
    %364 = arith.mulf %353, %363 : vector<4x128xf32>
    %365 = arith.truncf %364 : vector<4x128xf32> to vector<4x128xbf16>
    %c3_164 = arith.constant 3 : index
    %c0_165 = arith.constant 0 : index
    %c0_166 = arith.constant 0 : index
    %366 = vector.load %arg9[%c3_164, %c0_165, %c0_166] : memref<6x128x32xbf16, #tpu.memory_space<vmem>>, vector<1x128x32xbf16>
    %367 = vector.shape_cast %366 : vector<1x128x32xbf16> to vector<128x32xbf16>
    %cst_167 = arith.constant dense<0.000000e+00> : vector<4x32xf32>
    %368 = tpu.matmul %365, %367, %cst_167 {dimension_numbers = #tpu.dot_dimension_numbers<[1], [0], [0], [1], [0, 0, 1, 1], [], []>} : vector<4x128xbf16>, vector<128x32xbf16>, vector<4x32xf32> -> vector<4x32xf32>
    %369 = arith.addf %332, %368 : vector<4x32xf32>
    %c3_168 = arith.constant 3 : index
    %c0_169 = arith.constant 0 : index
    %370 = vector.load %arg10[%c3_168, %c0_169] : memref<6x32xf32, #tpu.memory_space<vmem>>, vector<1x32xf32>
    %371 = vector.shape_cast %370 : vector<1x32xf32> to vector<32xf32>
    %372 = vector.shape_cast %371 : vector<32xf32> to vector<1x32xf32>
    %373 = vector.broadcast %372 : vector<1x32xf32> to vector<4x32xf32>
    %374 = arith.addf %369, %373 : vector<4x32xf32>
    %375 = arith.truncf %374 : vector<4x32xf32> to vector<4x32xbf16>
    %c3_170 = arith.constant 3 : index
    %c0_171 = arith.constant 0 : index
    %c0_172 = arith.constant 0 : index
    %376 = vector.load %arg11[%c3_170, %c0_171, %c0_172] : memref<6x32x48xbf16, #tpu.memory_space<vmem>>, vector<1x32x48xbf16>
    %377 = vector.shape_cast %376 : vector<1x32x48xbf16> to vector<32x48xbf16>
    %cst_173 = arith.constant dense<0.000000e+00> : vector<4x48xf32>
    %378 = tpu.matmul %375, %377, %cst_173 {dimension_numbers = #tpu.dot_dimension_numbers<[1], [0], [0], [1], [0, 0, 1, 1], [], []>} : vector<4x32xbf16>, vector<32x48xbf16>, vector<4x48xf32> -> vector<4x48xf32>
    %c3_174 = arith.constant 3 : index
    %c0_175 = arith.constant 0 : index
    %379 = vector.load %arg12[%c3_174, %c0_175] : memref<6x48xf32, #tpu.memory_space<vmem>>, vector<1x48xf32>
    %380 = vector.shape_cast %379 : vector<1x48xf32> to vector<48xf32>
    %381 = vector.shape_cast %380 : vector<48xf32> to vector<1x48xf32>
    %382 = vector.broadcast %381 : vector<1x48xf32> to vector<4x48xf32>
    %383 = arith.addf %378, %382 : vector<4x48xf32>
    %384 = vector.extract_strided_slice %383 {offsets = [0, 0], sizes = [4, 32], strides = [1, 1]} : vector<4x48xf32> to vector<4x32xf32>
    %385 = arith.subf %289, %384 : vector<4x32xf32>
    %386 = arith.addf %290, %383 : vector<4x48xf32>
    %cst_176 = arith.constant dense<0.000000e+00> : vector<4x32xf32>
    %387 = tpu.matmul %385, %0, %cst_176 {dimension_numbers = #tpu.dot_dimension_numbers<[1], [0], [0], [1], [0, 0, 1, 1], [], []>} : vector<4x32xf32>, vector<32x32xf32>, vector<4x32xf32> -> vector<4x32xf32>
    %388 = arith.mulf %385, %385 : vector<4x32xf32>
    %cst_177 = arith.constant dense<0.000000e+00> : vector<4x32xf32>
    %389 = tpu.matmul %388, %0, %cst_177 {dimension_numbers = #tpu.dot_dimension_numbers<[1], [0], [0], [1], [0, 0, 1, 1], [], []>} : vector<4x32xf32>, vector<32x32xf32>, vector<4x32xf32> -> vector<4x32xf32>
    %390 = arith.subf %385, %387 : vector<4x32xf32>
    %391 = arith.mulf %387, %387 : vector<4x32xf32>
    %392 = arith.subf %389, %391 : vector<4x32xf32>
    %cst_178 = arith.constant 9.99999974E-6 : f32
    %393 = vector.broadcast %cst_178 : f32 to vector<4x32xf32>
    %394 = arith.addf %392, %393 : vector<4x32xf32>
    %395 = math.rsqrt %394 : vector<4x32xf32>
    %396 = arith.mulf %390, %395 : vector<4x32xf32>
    %397 = arith.truncf %396 : vector<4x32xf32> to vector<4x32xbf16>
    %c4 = arith.constant 4 : index
    %c0_179 = arith.constant 0 : index
    %c0_180 = arith.constant 0 : index
    %398 = vector.load %arg3[%c4, %c0_179, %c0_180] : memref<6x32x256xbf16, #tpu.memory_space<vmem>>, vector<1x32x256xbf16>
    %399 = vector.shape_cast %398 : vector<1x32x256xbf16> to vector<32x256xbf16>
    %cst_181 = arith.constant dense<0.000000e+00> : vector<4x256xf32>
    %400 = tpu.matmul %397, %399, %cst_181 {dimension_numbers = #tpu.dot_dimension_numbers<[1], [0], [0], [1], [0, 0, 1, 1], [], []>} : vector<4x32xbf16>, vector<32x256xbf16>, vector<4x256xf32> -> vector<4x256xf32>
    %c4_182 = arith.constant 4 : index
    %c0_183 = arith.constant 0 : index
    %401 = vector.load %arg4[%c4_182, %c0_183] : memref<6x256xf32, #tpu.memory_space<vmem>>, vector<1x256xf32>
    %402 = vector.shape_cast %401 : vector<1x256xf32> to vector<256xf32>
    %403 = vector.shape_cast %402 : vector<256xf32> to vector<1x256xf32>
    %404 = vector.broadcast %403 : vector<1x256xf32> to vector<4x256xf32>
    %405 = arith.addf %400, %404 : vector<4x256xf32>
    %cst_184 = arith.constant 5.000000e-01 : f32
    %406 = vector.broadcast %cst_184 : f32 to vector<4x256xf32>
    %407 = arith.mulf %406, %405 : vector<4x256xf32>
    %cst_185 = arith.constant 4.471500e-02 : f32
    %408 = vector.broadcast %cst_185 : f32 to vector<4x256xf32>
    %409 = arith.mulf %408, %405 : vector<4x256xf32>
    %410 = arith.mulf %409, %405 : vector<4x256xf32>
    %411 = arith.mulf %410, %405 : vector<4x256xf32>
    %412 = arith.addf %405, %411 : vector<4x256xf32>
    %cst_186 = arith.constant 0.797884583 : f32
    %413 = vector.broadcast %cst_186 : f32 to vector<4x256xf32>
    %414 = arith.mulf %413, %412 : vector<4x256xf32>
    %415 = math.tanh %414 : vector<4x256xf32>
    %cst_187 = arith.constant 1.000000e+00 : f32
    %416 = vector.broadcast %cst_187 : f32 to vector<4x256xf32>
    %417 = arith.addf %416, %415 : vector<4x256xf32>
    %418 = arith.mulf %407, %417 : vector<4x256xf32>
    %419 = arith.truncf %418 : vector<4x256xf32> to vector<4x256xbf16>
    %c4_188 = arith.constant 4 : index
    %c0_189 = arith.constant 0 : index
    %c0_190 = arith.constant 0 : index
    %420 = vector.load %arg5[%c4_188, %c0_189, %c0_190] : memref<6x256x32xbf16, #tpu.memory_space<vmem>>, vector<1x256x32xbf16>
    %421 = vector.shape_cast %420 : vector<1x256x32xbf16> to vector<256x32xbf16>
    %cst_191 = arith.constant dense<0.000000e+00> : vector<4x32xf32>
    %422 = tpu.matmul %419, %421, %cst_191 {dimension_numbers = #tpu.dot_dimension_numbers<[1], [0], [0], [1], [0, 0, 1, 1], [], []>} : vector<4x256xbf16>, vector<256x32xbf16>, vector<4x32xf32> -> vector<4x32xf32>
    %423 = arith.addf %385, %422 : vector<4x32xf32>
    %c4_192 = arith.constant 4 : index
    %c0_193 = arith.constant 0 : index
    %424 = vector.load %arg6[%c4_192, %c0_193] : memref<6x32xf32, #tpu.memory_space<vmem>>, vector<1x32xf32>
    %425 = vector.shape_cast %424 : vector<1x32xf32> to vector<32xf32>
    %426 = vector.shape_cast %425 : vector<32xf32> to vector<1x32xf32>
    %427 = vector.broadcast %426 : vector<1x32xf32> to vector<4x32xf32>
    %428 = arith.addf %423, %427 : vector<4x32xf32>
    %cst_194 = arith.constant dense<0.000000e+00> : vector<4x32xf32>
    %429 = tpu.matmul %428, %0, %cst_194 {dimension_numbers = #tpu.dot_dimension_numbers<[1], [0], [0], [1], [0, 0, 1, 1], [], []>} : vector<4x32xf32>, vector<32x32xf32>, vector<4x32xf32> -> vector<4x32xf32>
    %430 = arith.mulf %428, %428 : vector<4x32xf32>
    %cst_195 = arith.constant dense<0.000000e+00> : vector<4x32xf32>
    %431 = tpu.matmul %430, %0, %cst_195 {dimension_numbers = #tpu.dot_dimension_numbers<[1], [0], [0], [1], [0, 0, 1, 1], [], []>} : vector<4x32xf32>, vector<32x32xf32>, vector<4x32xf32> -> vector<4x32xf32>
    %432 = arith.subf %428, %429 : vector<4x32xf32>
    %433 = arith.mulf %429, %429 : vector<4x32xf32>
    %434 = arith.subf %431, %433 : vector<4x32xf32>
    %cst_196 = arith.constant 9.99999974E-6 : f32
    %435 = vector.broadcast %cst_196 : f32 to vector<4x32xf32>
    %436 = arith.addf %434, %435 : vector<4x32xf32>
    %437 = math.rsqrt %436 : vector<4x32xf32>
    %438 = arith.mulf %432, %437 : vector<4x32xf32>
    %439 = arith.truncf %438 : vector<4x32xf32> to vector<4x32xbf16>
    %c4_197 = arith.constant 4 : index
    %c0_198 = arith.constant 0 : index
    %c0_199 = arith.constant 0 : index
    %440 = vector.load %arg7[%c4_197, %c0_198, %c0_199] : memref<6x32x128xbf16, #tpu.memory_space<vmem>>, vector<1x32x128xbf16>
    %441 = vector.shape_cast %440 : vector<1x32x128xbf16> to vector<32x128xbf16>
    %cst_200 = arith.constant dense<0.000000e+00> : vector<4x128xf32>
    %442 = tpu.matmul %439, %441, %cst_200 {dimension_numbers = #tpu.dot_dimension_numbers<[1], [0], [0], [1], [0, 0, 1, 1], [], []>} : vector<4x32xbf16>, vector<32x128xbf16>, vector<4x128xf32> -> vector<4x128xf32>
    %c4_201 = arith.constant 4 : index
    %c0_202 = arith.constant 0 : index
    %443 = vector.load %arg8[%c4_201, %c0_202] : memref<6x128xf32, #tpu.memory_space<vmem>>, vector<1x128xf32>
    %444 = vector.shape_cast %443 : vector<1x128xf32> to vector<128xf32>
    %445 = vector.shape_cast %444 : vector<128xf32> to vector<1x128xf32>
    %446 = vector.broadcast %445 : vector<1x128xf32> to vector<4x128xf32>
    %447 = arith.addf %442, %446 : vector<4x128xf32>
    %cst_203 = arith.constant 5.000000e-01 : f32
    %448 = vector.broadcast %cst_203 : f32 to vector<4x128xf32>
    %449 = arith.mulf %448, %447 : vector<4x128xf32>
    %cst_204 = arith.constant 4.471500e-02 : f32
    %450 = vector.broadcast %cst_204 : f32 to vector<4x128xf32>
    %451 = arith.mulf %450, %447 : vector<4x128xf32>
    %452 = arith.mulf %451, %447 : vector<4x128xf32>
    %453 = arith.mulf %452, %447 : vector<4x128xf32>
    %454 = arith.addf %447, %453 : vector<4x128xf32>
    %cst_205 = arith.constant 0.797884583 : f32
    %455 = vector.broadcast %cst_205 : f32 to vector<4x128xf32>
    %456 = arith.mulf %455, %454 : vector<4x128xf32>
    %457 = math.tanh %456 : vector<4x128xf32>
    %cst_206 = arith.constant 1.000000e+00 : f32
    %458 = vector.broadcast %cst_206 : f32 to vector<4x128xf32>
    %459 = arith.addf %458, %457 : vector<4x128xf32>
    %460 = arith.mulf %449, %459 : vector<4x128xf32>
    %461 = arith.truncf %460 : vector<4x128xf32> to vector<4x128xbf16>
    %c4_207 = arith.constant 4 : index
    %c0_208 = arith.constant 0 : index
    %c0_209 = arith.constant 0 : index
    %462 = vector.load %arg9[%c4_207, %c0_208, %c0_209] : memref<6x128x32xbf16, #tpu.memory_space<vmem>>, vector<1x128x32xbf16>
    %463 = vector.shape_cast %462 : vector<1x128x32xbf16> to vector<128x32xbf16>
    %cst_210 = arith.constant dense<0.000000e+00> : vector<4x32xf32>
    %464 = tpu.matmul %461, %463, %cst_210 {dimension_numbers = #tpu.dot_dimension_numbers<[1], [0], [0], [1], [0, 0, 1, 1], [], []>} : vector<4x128xbf16>, vector<128x32xbf16>, vector<4x32xf32> -> vector<4x32xf32>
    %465 = arith.addf %428, %464 : vector<4x32xf32>
    %c4_211 = arith.constant 4 : index
    %c0_212 = arith.constant 0 : index
    %466 = vector.load %arg10[%c4_211, %c0_212] : memref<6x32xf32, #tpu.memory_space<vmem>>, vector<1x32xf32>
    %467 = vector.shape_cast %466 : vector<1x32xf32> to vector<32xf32>
    %468 = vector.shape_cast %467 : vector<32xf32> to vector<1x32xf32>
    %469 = vector.broadcast %468 : vector<1x32xf32> to vector<4x32xf32>
    %470 = arith.addf %465, %469 : vector<4x32xf32>
    %471 = arith.truncf %470 : vector<4x32xf32> to vector<4x32xbf16>
    %c4_213 = arith.constant 4 : index
    %c0_214 = arith.constant 0 : index
    %c0_215 = arith.constant 0 : index
    %472 = vector.load %arg11[%c4_213, %c0_214, %c0_215] : memref<6x32x48xbf16, #tpu.memory_space<vmem>>, vector<1x32x48xbf16>
    %473 = vector.shape_cast %472 : vector<1x32x48xbf16> to vector<32x48xbf16>
    %cst_216 = arith.constant dense<0.000000e+00> : vector<4x48xf32>
    %474 = tpu.matmul %471, %473, %cst_216 {dimension_numbers = #tpu.dot_dimension_numbers<[1], [0], [0], [1], [0, 0, 1, 1], [], []>} : vector<4x32xbf16>, vector<32x48xbf16>, vector<4x48xf32> -> vector<4x48xf32>
    %c4_217 = arith.constant 4 : index
    %c0_218 = arith.constant 0 : index
    %475 = vector.load %arg12[%c4_217, %c0_218] : memref<6x48xf32, #tpu.memory_space<vmem>>, vector<1x48xf32>
    %476 = vector.shape_cast %475 : vector<1x48xf32> to vector<48xf32>
    %477 = vector.shape_cast %476 : vector<48xf32> to vector<1x48xf32>
    %478 = vector.broadcast %477 : vector<1x48xf32> to vector<4x48xf32>
    %479 = arith.addf %474, %478 : vector<4x48xf32>
    %480 = vector.extract_strided_slice %479 {offsets = [0, 0], sizes = [4, 32], strides = [1, 1]} : vector<4x48xf32> to vector<4x32xf32>
    %481 = arith.subf %385, %480 : vector<4x32xf32>
    %482 = arith.addf %386, %479 : vector<4x48xf32>
    %cst_219 = arith.constant dense<0.000000e+00> : vector<4x32xf32>
    %483 = tpu.matmul %481, %0, %cst_219 {dimension_numbers = #tpu.dot_dimension_numbers<[1], [0], [0], [1], [0, 0, 1, 1], [], []>} : vector<4x32xf32>, vector<32x32xf32>, vector<4x32xf32> -> vector<4x32xf32>
    %484 = arith.mulf %481, %481 : vector<4x32xf32>
    %cst_220 = arith.constant dense<0.000000e+00> : vector<4x32xf32>
    %485 = tpu.matmul %484, %0, %cst_220 {dimension_numbers = #tpu.dot_dimension_numbers<[1], [0], [0], [1], [0, 0, 1, 1], [], []>} : vector<4x32xf32>, vector<32x32xf32>, vector<4x32xf32> -> vector<4x32xf32>
    %486 = arith.subf %481, %483 : vector<4x32xf32>
    %487 = arith.mulf %483, %483 : vector<4x32xf32>
    %488 = arith.subf %485, %487 : vector<4x32xf32>
    %cst_221 = arith.constant 9.99999974E-6 : f32
    %489 = vector.broadcast %cst_221 : f32 to vector<4x32xf32>
    %490 = arith.addf %488, %489 : vector<4x32xf32>
    %491 = math.rsqrt %490 : vector<4x32xf32>
    %492 = arith.mulf %486, %491 : vector<4x32xf32>
    %493 = arith.truncf %492 : vector<4x32xf32> to vector<4x32xbf16>
    %c5 = arith.constant 5 : index
    %c0_222 = arith.constant 0 : index
    %c0_223 = arith.constant 0 : index
    %494 = vector.load %arg3[%c5, %c0_222, %c0_223] : memref<6x32x256xbf16, #tpu.memory_space<vmem>>, vector<1x32x256xbf16>
    %495 = vector.shape_cast %494 : vector<1x32x256xbf16> to vector<32x256xbf16>
    %cst_224 = arith.constant dense<0.000000e+00> : vector<4x256xf32>
    %496 = tpu.matmul %493, %495, %cst_224 {dimension_numbers = #tpu.dot_dimension_numbers<[1], [0], [0], [1], [0, 0, 1, 1], [], []>} : vector<4x32xbf16>, vector<32x256xbf16>, vector<4x256xf32> -> vector<4x256xf32>
    %c5_225 = arith.constant 5 : index
    %c0_226 = arith.constant 0 : index
    %497 = vector.load %arg4[%c5_225, %c0_226] : memref<6x256xf32, #tpu.memory_space<vmem>>, vector<1x256xf32>
    %498 = vector.shape_cast %497 : vector<1x256xf32> to vector<256xf32>
    %499 = vector.shape_cast %498 : vector<256xf32> to vector<1x256xf32>
    %500 = vector.broadcast %499 : vector<1x256xf32> to vector<4x256xf32>
    %501 = arith.addf %496, %500 : vector<4x256xf32>
    %cst_227 = arith.constant 5.000000e-01 : f32
    %502 = vector.broadcast %cst_227 : f32 to vector<4x256xf32>
    %503 = arith.mulf %502, %501 : vector<4x256xf32>
    %cst_228 = arith.constant 4.471500e-02 : f32
    %504 = vector.broadcast %cst_228 : f32 to vector<4x256xf32>
    %505 = arith.mulf %504, %501 : vector<4x256xf32>
    %506 = arith.mulf %505, %501 : vector<4x256xf32>
    %507 = arith.mulf %506, %501 : vector<4x256xf32>
    %508 = arith.addf %501, %507 : vector<4x256xf32>
    %cst_229 = arith.constant 0.797884583 : f32
    %509 = vector.broadcast %cst_229 : f32 to vector<4x256xf32>
    %510 = arith.mulf %509, %508 : vector<4x256xf32>
    %511 = math.tanh %510 : vector<4x256xf32>
    %cst_230 = arith.constant 1.000000e+00 : f32
    %512 = vector.broadcast %cst_230 : f32 to vector<4x256xf32>
    %513 = arith.addf %512, %511 : vector<4x256xf32>
    %514 = arith.mulf %503, %513 : vector<4x256xf32>
    %515 = arith.truncf %514 : vector<4x256xf32> to vector<4x256xbf16>
    %c5_231 = arith.constant 5 : index
    %c0_232 = arith.constant 0 : index
    %c0_233 = arith.constant 0 : index
    %516 = vector.load %arg5[%c5_231, %c0_232, %c0_233] : memref<6x256x32xbf16, #tpu.memory_space<vmem>>, vector<1x256x32xbf16>
    %517 = vector.shape_cast %516 : vector<1x256x32xbf16> to vector<256x32xbf16>
    %cst_234 = arith.constant dense<0.000000e+00> : vector<4x32xf32>
    %518 = tpu.matmul %515, %517, %cst_234 {dimension_numbers = #tpu.dot_dimension_numbers<[1], [0], [0], [1], [0, 0, 1, 1], [], []>} : vector<4x256xbf16>, vector<256x32xbf16>, vector<4x32xf32> -> vector<4x32xf32>
    %519 = arith.addf %481, %518 : vector<4x32xf32>
    %c5_235 = arith.constant 5 : index
    %c0_236 = arith.constant 0 : index
    %520 = vector.load %arg6[%c5_235, %c0_236] : memref<6x32xf32, #tpu.memory_space<vmem>>, vector<1x32xf32>
    %521 = vector.shape_cast %520 : vector<1x32xf32> to vector<32xf32>
    %522 = vector.shape_cast %521 : vector<32xf32> to vector<1x32xf32>
    %523 = vector.broadcast %522 : vector<1x32xf32> to vector<4x32xf32>
    %524 = arith.addf %519, %523 : vector<4x32xf32>
    %cst_237 = arith.constant dense<0.000000e+00> : vector<4x32xf32>
    %525 = tpu.matmul %524, %0, %cst_237 {dimension_numbers = #tpu.dot_dimension_numbers<[1], [0], [0], [1], [0, 0, 1, 1], [], []>} : vector<4x32xf32>, vector<32x32xf32>, vector<4x32xf32> -> vector<4x32xf32>
    %526 = arith.mulf %524, %524 : vector<4x32xf32>
    %cst_238 = arith.constant dense<0.000000e+00> : vector<4x32xf32>
    %527 = tpu.matmul %526, %0, %cst_238 {dimension_numbers = #tpu.dot_dimension_numbers<[1], [0], [0], [1], [0, 0, 1, 1], [], []>} : vector<4x32xf32>, vector<32x32xf32>, vector<4x32xf32> -> vector<4x32xf32>
    %528 = arith.subf %524, %525 : vector<4x32xf32>
    %529 = arith.mulf %525, %525 : vector<4x32xf32>
    %530 = arith.subf %527, %529 : vector<4x32xf32>
    %cst_239 = arith.constant 9.99999974E-6 : f32
    %531 = vector.broadcast %cst_239 : f32 to vector<4x32xf32>
    %532 = arith.addf %530, %531 : vector<4x32xf32>
    %533 = math.rsqrt %532 : vector<4x32xf32>
    %534 = arith.mulf %528, %533 : vector<4x32xf32>
    %535 = arith.truncf %534 : vector<4x32xf32> to vector<4x32xbf16>
    %c5_240 = arith.constant 5 : index
    %c0_241 = arith.constant 0 : index
    %c0_242 = arith.constant 0 : index
    %536 = vector.load %arg7[%c5_240, %c0_241, %c0_242] : memref<6x32x128xbf16, #tpu.memory_space<vmem>>, vector<1x32x128xbf16>
    %537 = vector.shape_cast %536 : vector<1x32x128xbf16> to vector<32x128xbf16>
    %cst_243 = arith.constant dense<0.000000e+00> : vector<4x128xf32>
    %538 = tpu.matmul %535, %537, %cst_243 {dimension_numbers = #tpu.dot_dimension_numbers<[1], [0], [0], [1], [0, 0, 1, 1], [], []>} : vector<4x32xbf16>, vector<32x128xbf16>, vector<4x128xf32> -> vector<4x128xf32>
    %c5_244 = arith.constant 5 : index
    %c0_245 = arith.constant 0 : index
    %539 = vector.load %arg8[%c5_244, %c0_245] : memref<6x128xf32, #tpu.memory_space<vmem>>, vector<1x128xf32>
    %540 = vector.shape_cast %539 : vector<1x128xf32> to vector<128xf32>
    %541 = vector.shape_cast %540 : vector<128xf32> to vector<1x128xf32>
    %542 = vector.broadcast %541 : vector<1x128xf32> to vector<4x128xf32>
    %543 = arith.addf %538, %542 : vector<4x128xf32>
    %cst_246 = arith.constant 5.000000e-01 : f32
    %544 = vector.broadcast %cst_246 : f32 to vector<4x128xf32>
    %545 = arith.mulf %544, %543 : vector<4x128xf32>
    %cst_247 = arith.constant 4.471500e-02 : f32
    %546 = vector.broadcast %cst_247 : f32 to vector<4x128xf32>
    %547 = arith.mulf %546, %543 : vector<4x128xf32>
    %548 = arith.mulf %547, %543 : vector<4x128xf32>
    %549 = arith.mulf %548, %543 : vector<4x128xf32>
    %550 = arith.addf %543, %549 : vector<4x128xf32>
    %cst_248 = arith.constant 0.797884583 : f32
    %551 = vector.broadcast %cst_248 : f32 to vector<4x128xf32>
    %552 = arith.mulf %551, %550 : vector<4x128xf32>
    %553 = math.tanh %552 : vector<4x128xf32>
    %cst_249 = arith.constant 1.000000e+00 : f32
    %554 = vector.broadcast %cst_249 : f32 to vector<4x128xf32>
    %555 = arith.addf %554, %553 : vector<4x128xf32>
    %556 = arith.mulf %545, %555 : vector<4x128xf32>
    %557 = arith.truncf %556 : vector<4x128xf32> to vector<4x128xbf16>
    %c5_250 = arith.constant 5 : index
    %c0_251 = arith.constant 0 : index
    %c0_252 = arith.constant 0 : index
    %558 = vector.load %arg9[%c5_250, %c0_251, %c0_252] : memref<6x128x32xbf16, #tpu.memory_space<vmem>>, vector<1x128x32xbf16>
    %559 = vector.shape_cast %558 : vector<1x128x32xbf16> to vector<128x32xbf16>
    %cst_253 = arith.constant dense<0.000000e+00> : vector<4x32xf32>
    %560 = tpu.matmul %557, %559, %cst_253 {dimension_numbers = #tpu.dot_dimension_numbers<[1], [0], [0], [1], [0, 0, 1, 1], [], []>} : vector<4x128xbf16>, vector<128x32xbf16>, vector<4x32xf32> -> vector<4x32xf32>
    %561 = arith.addf %524, %560 : vector<4x32xf32>
    %c5_254 = arith.constant 5 : index
    %c0_255 = arith.constant 0 : index
    %562 = vector.load %arg10[%c5_254, %c0_255] : memref<6x32xf32, #tpu.memory_space<vmem>>, vector<1x32xf32>
    %563 = vector.shape_cast %562 : vector<1x32xf32> to vector<32xf32>
    %564 = vector.shape_cast %563 : vector<32xf32> to vector<1x32xf32>
    %565 = vector.broadcast %564 : vector<1x32xf32> to vector<4x32xf32>
    %566 = arith.addf %561, %565 : vector<4x32xf32>
    %567 = arith.truncf %566 : vector<4x32xf32> to vector<4x32xbf16>
    %c5_256 = arith.constant 5 : index
    %c0_257 = arith.constant 0 : index
    %c0_258 = arith.constant 0 : index
    %568 = vector.load %arg11[%c5_256, %c0_257, %c0_258] : memref<6x32x48xbf16, #tpu.memory_space<vmem>>, vector<1x32x48xbf16>
    %569 = vector.shape_cast %568 : vector<1x32x48xbf16> to vector<32x48xbf16>
    %cst_259 = arith.constant dense<0.000000e+00> : vector<4x48xf32>
    %570 = tpu.matmul %567, %569, %cst_259 {dimension_numbers = #tpu.dot_dimension_numbers<[1], [0], [0], [1], [0, 0, 1, 1], [], []>} : vector<4x32xbf16>, vector<32x48xbf16>, vector<4x48xf32> -> vector<4x48xf32>
    %c5_260 = arith.constant 5 : index
    %c0_261 = arith.constant 0 : index
    %571 = vector.load %arg12[%c5_260, %c0_261] : memref<6x48xf32, #tpu.memory_space<vmem>>, vector<1x48xf32>
    %572 = vector.shape_cast %571 : vector<1x48xf32> to vector<48xf32>
    %573 = vector.shape_cast %572 : vector<48xf32> to vector<1x48xf32>
    %574 = vector.broadcast %573 : vector<1x48xf32> to vector<4x48xf32>
    %575 = arith.addf %570, %574 : vector<4x48xf32>
    %576 = arith.addf %482, %575 : vector<4x48xf32>
    %c0_262 = arith.constant 0 : index
    %c0_263 = arith.constant 0 : index
    %577 = vector.load %arg13[%c0_262, %c0_263] : memref<4x48xf32, #tpu.memory_space<vmem>>, vector<4x48xf32>
    tpu.vector_store %arg13[%c0_262, %c0_263], %576 {strides = array<i32>} : memref<4x48xf32, #tpu.memory_space<vmem>>, vector<4x48xf32>,
    return
  }
  func.func @transform_0(%arg0: i32) -> (i32, i32) {
    %c0_i32 = arith.constant 0 : i32
    %c0_i32_0 = arith.constant 0 : i32
    return %arg0, %c0_i32 : i32, i32
  }
  func.func @transform_1(%arg0: i32) -> (i32, i32) {
    %c0_i32 = arith.constant 0 : i32
    %c0_i32_0 = arith.constant 0 : i32
    %c0_i32_1 = arith.constant 0 : i32
    return %c0_i32, %c0_i32_0 : i32, i32
  }
  func.func @transform_2(%arg0: i32) -> (i32, i32, i32) {
    %c0_i32 = arith.constant 0 : i32
    %c0_i32_0 = arith.constant 0 : i32
    %c0_i32_1 = arith.constant 0 : i32
    %c0_i32_2 = arith.constant 0 : i32
    return %c0_i32, %c0_i32_0, %c0_i32_1 : i32, i32, i32
  }
  func.func @transform_3(%arg0: i32) -> (i32, i32) {
    %c0_i32 = arith.constant 0 : i32
    %c0_i32_0 = arith.constant 0 : i32
    %c0_i32_1 = arith.constant 0 : i32
    return %c0_i32, %c0_i32_0 : i32, i32
  }
  func.func @transform_4(%arg0: i32) -> (i32, i32, i32) {
    %c0_i32 = arith.constant 0 : i32
    %c0_i32_0 = arith.constant 0 : i32
    %c0_i32_1 = arith.constant 0 : i32
    %c0_i32_2 = arith.constant 0 : i32
    return %c0_i32, %c0_i32_0, %c0_i32_1 : i32, i32, i32
  }
  func.func @transform_5(%arg0: i32) -> (i32, i32) {
    %c0_i32 = arith.constant 0 : i32
    %c0_i32_0 = arith.constant 0 : i32
    %c0_i32_1 = arith.constant 0 : i32
    return %c0_i32, %c0_i32_0 : i32, i32
  }
  func.func @transform_6(%arg0: i32) -> (i32, i32, i32) {
    %c0_i32 = arith.constant 0 : i32
    %c0_i32_0 = arith.constant 0 : i32
    %c0_i32_1 = arith.constant 0 : i32
    %c0_i32_2 = arith.constant 0 : i32
    return %c0_i32, %c0_i32_0, %c0_i32_1 : i32, i32, i32
  }
  func.func @transform_7(%arg0: i32) -> (i32, i32) {
    %c0_i32 = arith.constant 0 : i32
    %c0_i32_0 = arith.constant 0 : i32
    %c0_i32_1 = arith.constant 0 : i32
    return %c0_i32, %c0_i32_0 : i32, i32
  }
  func.func @transform_8(%arg0: i32) -> (i32, i32, i32) {
    %c0_i32 = arith.constant 0 : i32
    %c0_i32_0 = arith.constant 0 : i32
    %c0_i32_1 = arith.constant 0 : i32
    %c0_i32_2 = arith.constant 0 : i32
    return %c0_i32, %c0_i32_0, %c0_i32_1 : i32, i32, i32
  }
  func.func @transform_9(%arg0: i32) -> (i32, i32) {
    %c0_i32 = arith.constant 0 : i32
    %c0_i32_0 = arith.constant 0 : i32
    %c0_i32_1 = arith.constant 0 : i32
    return %c0_i32, %c0_i32_0 : i32, i32
  }
  func.func @transform_10(%arg0: i32) -> (i32, i32, i32) {
    %c0_i32 = arith.constant 0 : i32
    %c0_i32_0 = arith.constant 0 : i32
    %c0_i32_1 = arith.constant 0 : i32
    %c0_i32_2 = arith.constant 0 : i32
    return %c0_i32, %c0_i32_0, %c0_i32_1 : i32, i32, i32
  }
  func.func @transform_11(%arg0: i32) -> (i32, i32) {
    %c0_i32 = arith.constant 0 : i32
    %c0_i32_0 = arith.constant 0 : i32
    %c0_i32_1 = arith.constant 0 : i32
    return %c0_i32, %c0_i32_0 : i32, i32
  }
  func.func @transform_12(%arg0: i32) -> (i32, i32) {
    %c0_i32 = arith.constant 0 : i32
    %c0_i32_0 = arith.constant 0 : i32
    return %arg0, %c0_i32 : i32, i32
  }
}

</mosaic_0001>

<llo_original>
// kernel: tpu_custom_call.1
$region0: #{tpu_custom_call.1}
  #allocation0 [shape = 'u32[]', space=smem, size = 0x4, offset = 0x4, fixed_abs, tag = 'smem constant byte address 0x4 - core index']
  #allocation1 [shape = 'u32[72,128]{1,0:T(1,128)}', space=vmem, size = 0x9000, scoped, tag = 'internal scratch']
  %s0 = inlined_call_operand.vmem [shape: f32[4,32], index: 0, kind: input, shape index: {}]
  %s1 = inlined_call_operand.vmem [shape: f32[32,32], index: 1, kind: input, shape index: {}]
  %s2 = inlined_call_operand.vmem [shape: bf16[6,32,256], index: 2, kind: input, shape index: {}]
  %s3 = inlined_call_operand.vmem [shape: f32[6,256], index: 3, kind: input, shape index: {}]
  %s4 = inlined_call_operand.vmem [shape: bf16[6,256,32], index: 4, kind: input, shape index: {}]
  %s5 = inlined_call_operand.vmem [shape: f32[6,32], index: 5, kind: input, shape index: {}]
  %s6 = inlined_call_operand.vmem [shape: bf16[6,32,128], index: 6, kind: input, shape index: {}]
  %s7 = inlined_call_operand.vmem [shape: f32[6,128], index: 7, kind: input, shape index: {}]
  %s8 = inlined_call_operand.vmem [shape: bf16[6,128,32], index: 8, kind: input, shape index: {}]
  %s9 = inlined_call_operand.vmem [shape: f32[6,32], index: 9, kind: input, shape index: {}]
  %s10 = inlined_call_operand.vmem [shape: bf16[6,32,48], index: 10, kind: input, shape index: {}]
  %s11 = inlined_call_operand.vmem [shape: f32[6,48], index: 11, kind: input, shape index: {}]
  %s12 = inlined_call_operand.hbm [shape: f32[4,48], index: 12, kind: output, shape index: {}]
  %s13 = sld [smem:[#allocation0]]
  $region58: #{tpu_custom_call.1} parent=0
    _
  %s15 = ssub.s32 1, %s13
  %s16 = scalar_select 0, %s15, %s13
  $region1: #{tpu_custom_call.1} parent=0
    #allocation2 [shape = 'u8[2048]{0}', space=vmem, size = 0x800, scoped, tag = 'output window, operand 0, single buffered']
    #allocation3 [shape = 's32[1]{0}', space=sflag, size = 0x4, scoped, tag = 'scoped memory for tpu_custom_call.1']
    %17 = vsyncpa [#allocation3], 0
    // Predicated region
    $region2: #{tpu_custom_call.1} parent=1 // pred_check
      _
    $region3: #{tpu_custom_call.1} parent=1 // pred_check_branch
      %19 = sbr.rel (0) target = $region5
    $region4: #{tpu_custom_call.1} parent=1 // pred_region
      _
    $region5: #{tpu_custom_call.1} parent=1 // pred_fallthru
      _
    // Predicated region
    $region6: #{tpu_custom_call.1} parent=1 // pred_check
      _
    $region7: #{tpu_custom_call.1} parent=1 // pred_check_branch
      %21 = sbr.rel (0) target = $region9
    $region8: #{tpu_custom_call.1} parent=1 // pred_region
      _
    $region9: #{tpu_custom_call.1} parent=1 // pred_fallthru
      _
    // Predicated region
    $region10: #{tpu_custom_call.1} parent=1 // pred_check
      _
    $region11: #{tpu_custom_call.1} parent=1 // pred_check_branch
      %23 = sbr.rel (0) target = $region13
    $region12: #{tpu_custom_call.1} parent=1 // pred_region
      _
    $region13: #{tpu_custom_call.1} parent=1 // pred_fallthru
      _
    // Predicated region
    $region14: #{tpu_custom_call.1} parent=1 // pred_check
      _
    $region15: #{tpu_custom_call.1} parent=1 // pred_check_branch
      %25 = sbr.rel (0) target = $region17
    $region16: #{tpu_custom_call.1} parent=1 // pred_region
      _
    $region17: #{tpu_custom_call.1} parent=1 // pred_fallthru
      _
    // Predicated region
    $region18: #{tpu_custom_call.1} parent=1 // pred_check
      _
    $region19: #{tpu_custom_call.1} parent=1 // pred_check_branch
      %27 = sbr.rel (0) target = $region21
    $region20: #{tpu_custom_call.1} parent=1 // pred_region
      _
    $region21: #{tpu_custom_call.1} parent=1 // pred_fallthru
      _
    // Predicated region
    $region22: #{tpu_custom_call.1} parent=1 // pred_check
      _
    $region23: #{tpu_custom_call.1} parent=1 // pred_check_branch
      %29 = sbr.rel (0) target = $region25
    $region24: #{tpu_custom_call.1} parent=1 // pred_region
      _
    $region25: #{tpu_custom_call.1} parent=1 // pred_fallthru
      _
    // Predicated region
    $region26: #{tpu_custom_call.1} parent=1 // pred_check
      _
    $region27: #{tpu_custom_call.1} parent=1 // pred_check_branch
      %31 = sbr.rel (0) target = $region29
    $region28: #{tpu_custom_call.1} parent=1 // pred_region
      _
    $region29: #{tpu_custom_call.1} parent=1 // pred_fallthru
      _
    // Predicated region
    $region30: #{tpu_custom_call.1} parent=1 // pred_check
      _
    $region31: #{tpu_custom_call.1} parent=1 // pred_check_branch
      %33 = sbr.rel (0) target = $region33
    $region32: #{tpu_custom_call.1} parent=1 // pred_region
      _
    $region33: #{tpu_custom_call.1} parent=1 // pred_fallthru
      _
    // Predicated region
    $region34: #{tpu_custom_call.1} parent=1 // pred_check
      _
    $region35: #{tpu_custom_call.1} parent=1 // pred_check_branch
      %35 = sbr.rel (0) target = $region37
    $region36: #{tpu_custom_call.1} parent=1 // pred_region
      _
    $region37: #{tpu_custom_call.1} parent=1 // pred_fallthru
      _
    // Predicated region
    $region38: #{tpu_custom_call.1} parent=1 // pred_check
      _
    $region39: #{tpu_custom_call.1} parent=1 // pred_check_branch
      %37 = sbr.rel (0) target = $region41
    $region40: #{tpu_custom_call.1} parent=1 // pred_region
      _
    $region41: #{tpu_custom_call.1} parent=1 // pred_fallthru
      _
    // Predicated region
    $region42: #{tpu_custom_call.1} parent=1 // pred_check
      _
    $region43: #{tpu_custom_call.1} parent=1 // pred_check_branch
      %39 = sbr.rel (0) target = $region45
    $region44: #{tpu_custom_call.1} parent=1 // pred_region
      _
    $region45: #{tpu_custom_call.1} parent=1 // pred_fallthru
      _
    // Predicated region
    $region46: #{tpu_custom_call.1} parent=1 // pred_check
      _
    $region47: #{tpu_custom_call.1} parent=1 // pred_check_branch
      %41 = sbr.rel (0) target = $region49
    $region48: #{tpu_custom_call.1} parent=1 // pred_region
      _
    $region49: #{tpu_custom_call.1} parent=1 // pred_fallthru
      _
    %v43 = vld [vmem:[%s1] sm:$0xff]
    %v44 = vld [vmem:[%s1 + $0x8] sm:$0xff]
    %v45 = vld [vmem:[%s1 + $0x10] sm:$0xff]
    %v46 = vld [vmem:[%s1 + $0x18] sm:$0xff]
    %v47 = vld [vmem:[%s0] sm:$0xf]
    %vm48 = vcmask 261120
    %v50 = vsel %vm48, %v47, 0
    %52 = vmatpush.msra.mxu0 0.0
    %53 = vmatpush.msra.mxu0 0.0
    %54 = vmatpush.msra.mxu0 0.0
    %55 = vmatpush.msra.mxu0 0.0
    %56 = vmatpush.msra.mxu0 0.0
    %57 = vmatpush.msra.mxu0 0.0
    %58 = vmatpush.msra.mxu0 0.0
    %59 = vmatpush.msra.mxu0 0.0
    %60 = vmatpush.msra.mxu0 0.0
    %61 = vmatpush.msra.mxu0 0.0
    %62 = vmatpush.msra.mxu0 0.0
    %63 = vmatpush.msra.mxu0 0.0
    %64 = vmatpush.msra.mxu0 %v46
    %65 = vmatpush.msra.mxu0 %v45
    %66 = vmatpush.msra.mxu0 %v44
    %67 = vmatpush.msra.mxu0 %v43
    %68 = vmatmul.f32.gmra.mxu0 %v50
    %v69 = vpop.f32.mrf.mxu0
    %v70 = vadd.f32 0.0, %v69
    %71 = vdwg.mxu0
    %v72 = vmul.f32 %v47, %v47
    %v74 = vsel %vm48, %v72, 0
    %76 = vmatpush.msra.mxu0 0.0
    %77 = vmatpush.msra.mxu0 0.0
    %78 = vmatpush.msra.mxu0 0.0
    %79 = vmatpush.msra.mxu0 0.0
    %80 = vmatpush.msra.mxu0 0.0
    %81 = vmatpush.msra.mxu0 0.0
    %82 = vmatpush.msra.mxu0 0.0
    %83 = vmatpush.msra.mxu0 0.0
    %84 = vmatpush.msra.mxu0 0.0
    %85 = vmatpush.msra.mxu0 0.0
    %86 = vmatpush.msra.mxu0 0.0
    %87 = vmatpush.msra.mxu0 0.0
    %88 = vmatpush.msra.mxu0 %v46
    %89 = vmatpush.msra.mxu0 %v45
    %90 = vmatpush.msra.mxu0 %v44
    %91 = vmatpush.msra.mxu0 %v43
    %92 = vmatmul.f32.gmra.mxu0 %v74
    %v93 = vpop.f32.mrf.mxu0
    %v94 = vadd.f32 0.0, %v93
    %95 = vdwg.mxu0
    %v96 = vsub.f32 %v47, %v70
    %v97 = vmul.f32 %v70, %v70
    %v98 = vsub.f32 %v94, %v97
    %v99 = vadd.f32 %v98, 1e-05
    %v100 = vrsqrt.pop %v99
    %v101 = vmul.f32 %v100, %v99
    %v102 = vmul.f32 %v101, %v100
    %v103 = vmul.f32 0.5, %v102
    %v104 = vsub.f32 1.5, %v103
    %v105 = vmul.f32 %v100, %v104
    %vm106 = vweird.f32 %v99
    %vm107 = vweird.f32 %v100
    %vm108 = vmor %vm106, %vm107
    %v109 = vsel %vm108, %v100, %v105
    %v110 = vmul.f32 %v96, %v109
    %v111 = vpack.c.bf16 %v110, %v110
    %v112 = vld [vmem:[%s2] sm:$0xff]
    %v113 = vld [vmem:[%s2 + $0x8] sm:$0xff]
    %v114 = vld [vmem:[%s2 + $0x10] sm:$0xff]
    %v115 = vld [vmem:[%s2 + $0x18] sm:$0xff]
    %v116 = vld [vmem:[%s3] ss:$8 sm:$0x3]
    %v118 = vperm.slane %v116, 0
    %v119 = vperm.slane %v116, 1
    %v126 = vunpack.c.l.b16 %v112
    %v127 = vunpack.c.h.b16 %v112
    %v128 = vunpack.c.l.b16 %v113
    %v129 = vunpack.c.h.b16 %v113
    %v130 = vunpack.c.l.b16 %v114
    %v131 = vunpack.c.h.b16 %v114
    %v132 = vunpack.c.l.b16 %v115
    %v133 = vunpack.c.h.b16 %v115
    %v134 = vpack.c.b16 %v128, %v126
    %v135 = vpack.c.b16 %v129, %v127
    %v136 = vpack.c.b16 %v132, %v130
    %v137 = vpack.c.b16 %v133, %v131
    %v143 = vsel %vm48, %v111, 0
    %145 = vmatpush.bf16.msra.mxu0 0
    %146 = vmatpush.bf16.msra.mxu0 0
    %147 = vmatpush.bf16.msra.mxu0 0
    %148 = vmatpush.bf16.msra.mxu0 0
    %149 = vmatpush.bf16.msra.mxu0 0
    %150 = vmatpush.bf16.msra.mxu0 0
    %151 = vmatpush.bf16.msra.mxu0 %v136
    %152 = vmatpush.bf16.msra.mxu0 %v134
    %153 = vmatmul.bf16.gmra.mxu0 %v143
    %v154 = vpop.f32.mrf.mxu0
    %v155 = vadd.f32 %v118, %v154
    %v156 = vpop.f32.mrf.mxu0
    %157 = vdwg.mxu0
    %158 = vmatpush.bf16.msra.mxu0 0
    %159 = vmatpush.bf16.msra.mxu0 0
    %160 = vmatpush.bf16.msra.mxu0 0
    %161 = vmatpush.bf16.msra.mxu0 0
    %162 = vmatpush.bf16.msra.mxu0 0
    %163 = vmatpush.bf16.msra.mxu0 0
    %164 = vmatpush.bf16.msra.mxu0 %v137
    %165 = vmatpush.bf16.msra.mxu0 %v135
    %166 = vmatmul.bf16.gmra.mxu0 %v143
    %v167 = vpop.f32.mrf.mxu0
    %v168 = vadd.f32 %v119, %v167
    %v169 = vpop.f32.mrf.mxu0
    %170 = vdwg.mxu0
    %v171 = vmul.f32 %v155, 0.5
    %v172 = vmul.f32 %v168, 0.5
    %v173 = vmul.f32 %v155, 0.044715
    %v174 = vmul.f32 %v168, 0.044715
    %v175 = vmul.f32 %v173, %v155
    %v176 = vmul.f32 %v174, %v168
    %v177 = vmul.f32 %v175, %v155
    %v178 = vmul.f32 %v176, %v168
    %v179 = vadd.f32 %v155, %v177
    %v180 = vadd.f32 %v168, %v178
    %v181 = vmul.f32 %v179, 0.7978846
    %v182 = vmul.f32 %v180, 0.7978846
    %v183 = vtanh.pop %v181
    %v184 = vtanh.pop %v182
    %v185 = vadd.f32 %v183, 1.0
    %v186 = vadd.f32 %v184, 1.0
    %v187 = vmul.f32 %v171, %v185
    %v188 = vmul.f32 %v172, %v186
    %v189 = vpack.c.bf16 %v187, %v187
    %v190 = vpack.c.bf16 %v188, %v188
    %v191 = vld [vmem:[%s4] sm:$0xf]
    %v192 = vld [vmem:[%s4 + $0x4] sm:$0xf]
    %v193 = vld [vmem:[%s4 + $0x8] sm:$0xf]
    %v194 = vld [vmem:[%s4 + $0xc] sm:$0xf]
    %v195 = vld [vmem:[%s4 + $0x10] sm:$0xf]
    %v196 = vld [vmem:[%s4 + $0x14] sm:$0xf]
    %v197 = vld [vmem:[%s4 + $0x18] sm:$0xf]
    %v198 = vld [vmem:[%s4 + $0x1c] sm:$0xf]
    %v199 = vld [vmem:[%s4 + $0x20] sm:$0xf]
    %v200 = vld [vmem:[%s4 + $0x24] sm:$0xf]
    %v201 = vld [vmem:[%s4 + $0x28] sm:$0xf]
    %v202 = vld [vmem:[%s4 + $0x2c] sm:$0xf]
    %v203 = vld [vmem:[%s4 + $0x30] sm:$0xf]
    %v204 = vld [vmem:[%s4 + $0x34] sm:$0xf]
    %v205 = vld [vmem:[%s4 + $0x38] sm:$0xf]
    %v206 = vld [vmem:[%s4 + $0x3c] sm:$0xf]
    %v207 = vld [vmem:[%s4 + $0x40] sm:$0xf]
    %v208 = vld [vmem:[%s4 + $0x44] sm:$0xf]
    %v209 = vld [vmem:[%s4 + $0x48] sm:$0xf]
    %v210 = vld [vmem:[%s4 + $0x4c] sm:$0xf]
    %v211 = vld [vmem:[%s4 + $0x50] sm:$0xf]
    %v212 = vld [vmem:[%s4 + $0x54] sm:$0xf]
    %v213 = vld [vmem:[%s4 + $0x58] sm:$0xf]
    %v214 = vld [vmem:[%s4 + $0x5c] sm:$0xf]
    %v215 = vld [vmem:[%s4 + $0x60] sm:$0xf]
    %v216 = vld [vmem:[%s4 + $0x64] sm:$0xf]
    %v217 = vld [vmem:[%s4 + $0x68] sm:$0xf]
    %v218 = vld [vmem:[%s4 + $0x6c] sm:$0xf]
    %v219 = vld [vmem:[%s4 + $0x70] sm:$0xf]
    %v220 = vld [vmem:[%s4 + $0x74] sm:$0xf]
    %v221 = vld [vmem:[%s4 + $0x78] sm:$0xf]
    %v222 = vld [vmem:[%s4 + $0x7c] sm:$0xf]
    %v255 = vunpack.c.l.b16 %v191
    %v256 = vunpack.c.l.b16 %v192
    %v257 = vunpack.c.l.b16 %v193
    %v258 = vunpack.c.l.b16 %v194
    %v259 = vunpack.c.l.b16 %v195
    %v260 = vunpack.c.l.b16 %v196
    %v261 = vunpack.c.l.b16 %v197
    %v262 = vunpack.c.l.b16 %v198
    %v263 = vunpack.c.l.b16 %v199
    %v264 = vunpack.c.l.b16 %v200
    %v265 = vunpack.c.l.b16 %v201
    %v266 = vunpack.c.l.b16 %v202
    %v267 = vunpack.c.l.b16 %v203
    %v268 = vunpack.c.l.b16 %v204
    %v269 = vunpack.c.l.b16 %v205
    %v270 = vunpack.c.l.b16 %v206
    %v271 = vunpack.c.l.b16 %v207
    %v272 = vunpack.c.l.b16 %v208
    %v273 = vunpack.c.l.b16 %v209
    %v274 = vunpack.c.l.b16 %v210
    %v275 = vunpack.c.l.b16 %v211
    %v276 = vunpack.c.l.b16 %v212
    %v277 = vunpack.c.l.b16 %v213
    %v278 = vunpack.c.l.b16 %v214
    %v279 = vunpack.c.l.b16 %v215
    %v280 = vunpack.c.l.b16 %v216
    %v281 = vunpack.c.l.b16 %v217
    %v282 = vunpack.c.l.b16 %v218
    %v283 = vunpack.c.l.b16 %v219
    %v284 = vunpack.c.l.b16 %v220
    %v285 = vunpack.c.l.b16 %v221
    %v286 = vunpack.c.l.b16 %v222
    %v287 = vpack.c.b16 %v256, %v255
    %v288 = vpack.c.b16 %v258, %v257
    %v289 = vpack.c.b16 %v260, %v259
    %v290 = vpack.c.b16 %v262, %v261
    %v291 = vpack.c.b16 %v264, %v263
    %v292 = vpack.c.b16 %v266, %v265
    %v293 = vpack.c.b16 %v268, %v267
    %v294 = vpack.c.b16 %v270, %v269
    %v295 = vpack.c.b16 %v272, %v271
    %v296 = vpack.c.b16 %v274, %v273
    %v297 = vpack.c.b16 %v276, %v275
    %v298 = vpack.c.b16 %v278, %v277
    %v299 = vpack.c.b16 %v280, %v279
    %v300 = vpack.c.b16 %v282, %v281
    %v301 = vpack.c.b16 %v284, %v283
    %v302 = vpack.c.b16 %v286, %v285
    %319 = vmatpush.bf16.msra.mxu0 %v294
    %320 = vmatpush.bf16.msra.mxu0 %v293
    %321 = vmatpush.bf16.msra.mxu0 %v292
    %322 = vmatpush.bf16.msra.mxu0 %v291
    %323 = vmatpush.bf16.msra.mxu0 %v290
    %324 = vmatpush.bf16.msra.mxu0 %v289
    %325 = vmatpush.bf16.msra.mxu0 %v288
    %326 = vmatpush.bf16.msra.mxu0 %v287
    %327 = vmatmul.bf16.gmra.mxu0 %v189
    %v328 = vpop.f32.mrf.mxu0
    %v329 = vadd.f32 0.0, %v328
    %v330 = vpop.f32.mrf.mxu0
    %331 = vdwg.mxu0
    %332 = vmatpush.bf16.msra.mxu0 %v302
    %333 = vmatpush.bf16.msra.mxu0 %v301
    %334 = vmatpush.bf16.msra.mxu0 %v300
    %335 = vmatpush.bf16.msra.mxu0 %v299
    %336 = vmatpush.bf16.msra.mxu0 %v298
    %337 = vmatpush.bf16.msra.mxu0 %v297
    %338 = vmatpush.bf16.msra.mxu0 %v296
    %339 = vmatpush.bf16.msra.mxu0 %v295
    %340 = vmatmul.bf16.gmra.mxu0 %v190
    %v341 = vpop.f32.mrf.mxu0
    %v342 = vadd.f32 %v329, %v341
    %v343 = vpop.f32.mrf.mxu0
    %344 = vdwg.mxu0
    %v345 = vadd.f32 %v47, %v342
    %v346 = vld [vmem:[%s5] sm:$0x1]
    %v347 = vperm.slane %v346, 0
    %v348 = vadd.f32 %v345, %v347
    %v350 = vsel %vm48, %v348, 0
    %352 = vmatpush.msra.mxu0 0.0
    %353 = vmatpush.msra.mxu0 0.0
    %354 = vmatpush.msra.mxu0 0.0
    %355 = vmatpush.msra.mxu0 0.0
    %356 = vmatpush.msra.mxu0 0.0
    %357 = vmatpush.msra.mxu0 0.0
    %358 = vmatpush.msra.mxu0 0.0
    %359 = vmatpush.msra.mxu0 0.0
    %360 = vmatpush.msra.mxu0 0.0
    %361 = vmatpush.msra.mxu0 0.0
    %362 = vmatpush.msra.mxu0 0.0
    %363 = vmatpush.msra.mxu0 0.0
    %364 = vmatpush.msra.mxu0 %v46
    %365 = vmatpush.msra.mxu0 %v45
    %366 = vmatpush.msra.mxu0 %v44
    %367 = vmatpush.msra.mxu0 %v43
    %368 = vmatmul.f32.gmra.mxu0 %v350
    %v369 = vpop.f32.mrf.mxu0
    %v370 = vadd.f32 0.0, %v369
    %371 = vdwg.mxu0
    %v372 = vmul.f32 %v348, %v348
    %v374 = vsel %vm48, %v372, 0
    %376 = vmatpush.msra.mxu0 0.0
    %377 = vmatpush.msra.mxu0 0.0
    %378 = vmatpush.msra.mxu0 0.0
    %379 = vmatpush.msra.mxu0 0.0
    %380 = vmatpush.msra.mxu0 0.0
    %381 = vmatpush.msra.mxu0 0.0
    %382 = vmatpush.msra.mxu0 0.0
    %383 = vmatpush.msra.mxu0 0.0
    %384 = vmatpush.msra.mxu0 0.0
    %385 = vmatpush.msra.mxu0 0.0
    %386 = vmatpush.msra.mxu0 0.0
    %387 = vmatpush.msra.mxu0 0.0
    %388 = vmatpush.msra.mxu0 %v46
    %389 = vmatpush.msra.mxu0 %v45
    %390 = vmatpush.msra.mxu0 %v44
    %391 = vmatpush.msra.mxu0 %v43
    %392 = vmatmul.f32.gmra.mxu0 %v374
    %v393 = vpop.f32.mrf.mxu0
    %v394 = vadd.f32 0.0, %v393
    %395 = vdwg.mxu0
    %v396 = vsub.f32 %v348, %v370
    %v397 = vmul.f32 %v370, %v370
    %v398 = vsub.f32 %v394, %v397
    %v399 = vadd.f32 %v398, 1e-05
    %v400 = vrsqrt.pop %v399
    %v401 = vmul.f32 %v400, %v399
    %v402 = vmul.f32 %v401, %v400
    %v403 = vmul.f32 0.5, %v402
    %v404 = vsub.f32 1.5, %v403
    %v405 = vmul.f32 %v400, %v404
    %vm406 = vweird.f32 %v399
    %vm407 = vweird.f32 %v400
    %vm408 = vmor %vm406, %vm407
    %v409 = vsel %vm408, %v400, %v405
    %v410 = vmul.f32 %v396, %v409
    %v411 = vpack.c.bf16 %v410, %v410
    %v412 = vld [vmem:[%s6] sm:$0xf]
    %v413 = vld [vmem:[%s6 + $0x4] sm:$0xf]
    %v414 = vld [vmem:[%s6 + $0x8] sm:$0xf]
    %v415 = vld [vmem:[%s6 + $0xc] sm:$0xf]
    %v416 = vld [vmem:[%s7] sm:$0x1]
    %v417 = vperm.slane %v416, 0
    %v422 = vunpack.c.l.b16 %v412
    %v423 = vunpack.c.l.b16 %v413
    %v424 = vunpack.c.l.b16 %v414
    %v425 = vunpack.c.l.b16 %v415
    %v426 = vpack.c.b16 %v423, %v422
    %v427 = vpack.c.b16 %v425, %v424
    %v431 = vsel %vm48, %v411, 0
    %433 = vmatpush.bf16.msra.mxu0 0
    %434 = vmatpush.bf16.msra.mxu0 0
    %435 = vmatpush.bf16.msra.mxu0 0
    %436 = vmatpush.bf16.msra.mxu0 0
    %437 = vmatpush.bf16.msra.mxu0 0
    %438 = vmatpush.bf16.msra.mxu0 0
    %439 = vmatpush.bf16.msra.mxu0 %v427
    %440 = vmatpush.bf16.msra.mxu0 %v426
    %441 = vmatmul.bf16.gmra.mxu0 %v431
    %v442 = vpop.f32.mrf.mxu0
    %v443 = vadd.f32 %v417, %v442
    %v444 = vpop.f32.mrf.mxu0
    %445 = vdwg.mxu0
    %v446 = vmul.f32 %v443, 0.5
    %v447 = vmul.f32 %v443, 0.044715
    %v448 = vmul.f32 %v447, %v443
    %v449 = vmul.f32 %v448, %v443
    %v450 = vadd.f32 %v443, %v449
    %v451 = vmul.f32 %v450, 0.7978846
    %v452 = vtanh.pop %v451
    %v453 = vadd.f32 %v452, 1.0
    %v454 = vmul.f32 %v446, %v453
    %v455 = vpack.c.bf16 %v454, %v454
    %v456 = vld [vmem:[%s8] sm:$0xf]
    %v457 = vld [vmem:[%s8 + $0x4] sm:$0xf]
    %v458 = vld [vmem:[%s8 + $0x8] sm:$0xf]
    %v459 = vld [vmem:[%s8 + $0xc] sm:$0xf]
    %v460 = vld [vmem:[%s8 + $0x10] sm:$0xf]
    %v461 = vld [vmem:[%s8 + $0x14] sm:$0xf]
    %v462 = vld [vmem:[%s8 + $0x18] sm:$0xf]
    %v463 = vld [vmem:[%s8 + $0x1c] sm:$0xf]
    %v464 = vld [vmem:[%s8 + $0x20] sm:$0xf]
    %v465 = vld [vmem:[%s8 + $0x24] sm:$0xf]
    %v466 = vld [vmem:[%s8 + $0x28] sm:$0xf]
    %v467 = vld [vmem:[%s8 + $0x2c] sm:$0xf]
    %v468 = vld [vmem:[%s8 + $0x30] sm:$0xf]
    %v469 = vld [vmem:[%s8 + $0x34] sm:$0xf]
    %v470 = vld [vmem:[%s8 + $0x38] sm:$0xf]
    %v471 = vld [vmem:[%s8 + $0x3c] sm:$0xf]
    %v488 = vunpack.c.l.b16 %v456
    %v489 = vunpack.c.l.b16 %v457
    %v490 = vunpack.c.l.b16 %v458
    %v491 = vunpack.c.l.b16 %v459
    %v492 = vunpack.c.l.b16 %v460
    %v493 = vunpack.c.l.b16 %v461
    %v494 = vunpack.c.l.b16 %v462
    %v495 = vunpack.c.l.b16 %v463
    %v496 = vunpack.c.l.b16 %v464
    %v497 = vunpack.c.l.b16 %v465
    %v498 = vunpack.c.l.b16 %v466
    %v499 = vunpack.c.l.b16 %v467
    %v500 = vunpack.c.l.b16 %v468
    %v501 = vunpack.c.l.b16 %v469
    %v502 = vunpack.c.l.b16 %v470
    %v503 = vunpack.c.l.b16 %v471
    %v504 = vpack.c.b16 %v489, %v488
    %v505 = vpack.c.b16 %v491, %v490
    %v506 = vpack.c.b16 %v493, %v492
    %v507 = vpack.c.b16 %v495, %v494
    %v508 = vpack.c.b16 %v497, %v496
    %v509 = vpack.c.b16 %v499, %v498
    %v510 = vpack.c.b16 %v501, %v500
    %v511 = vpack.c.b16 %v503, %v502
    %520 = vmatpush.bf16.msra.mxu0 %v511
    %521 = vmatpush.bf16.msra.mxu0 %v510
    %522 = vmatpush.bf16.msra.mxu0 %v509
    %523 = vmatpush.bf16.msra.mxu0 %v508
    %524 = vmatpush.bf16.msra.mxu0 %v507
    %525 = vmatpush.bf16.msra.mxu0 %v506
    %526 = vmatpush.bf16.msra.mxu0 %v505
    %527 = vmatpush.bf16.msra.mxu0 %v504
    %528 = vmatmul.bf16.gmra.mxu0 %v455
    %v529 = vpop.f32.mrf.mxu0
    %v530 = vadd.f32 0.0, %v529
    %v531 = vpop.f32.mrf.mxu0
    %532 = vdwg.mxu0
    %v533 = vadd.f32 %v348, %v530
    %v534 = vld [vmem:[%s9] sm:$0x1]
    %v535 = vperm.slane %v534, 0
    %v536 = vadd.f32 %v533, %v535
    %v537 = vpack.c.bf16 %v536, %v536
    %v538 = vld [vmem:[%s10] sm:$0xf]
    %v539 = vld [vmem:[%s10 + $0x4] sm:$0xf]
    %v540 = vld [vmem:[%s10 + $0x8] sm:$0xf]
    %v541 = vld [vmem:[%s10 + $0xc] sm:$0xf]
    %v542 = vld [vmem:[%s11] sm:$0x1]
    %v543 = vperm.slane %v542, 0
    %v548 = vunpack.c.l.b16 %v538
    %v549 = vunpack.c.l.b16 %v539
    %v550 = vunpack.c.l.b16 %v540
    %v551 = vunpack.c.l.b16 %v541
    %v552 = vpack.c.b16 %v549, %v548
    %v553 = vpack.c.b16 %v551, %v550
    %v557 = vsel %vm48, %v537, 0
    %559 = vmatpush.bf16.msra.mxu0 0
    %560 = vmatpush.bf16.msra.mxu0 0
    %561 = vmatpush.bf16.msra.mxu0 0
    %562 = vmatpush.bf16.msra.mxu0 0
    %563 = vmatpush.bf16.msra.mxu0 0
    %564 = vmatpush.bf16.msra.mxu0 0
    %565 = vmatpush.bf16.msra.mxu0 %v553
    %566 = vmatpush.bf16.msra.mxu0 %v552
    %567 = vmatmul.bf16.gmra.mxu0 %v557
    %v568 = vpop.f32.mrf.mxu0
    %v569 = vadd.f32 %v543, %v568
    %v570 = vpop.f32.mrf.mxu0
    %571 = vdwg.mxu0
    %v572 = vsub.f32 %v47, %v569
    %v573 = vadd.f32 %v569, 0.0
    %v575 = vsel %vm48, %v572, 0
    %577 = vmatpush.msra.mxu0 0.0
    %578 = vmatpush.msra.mxu0 0.0
    %579 = vmatpush.msra.mxu0 0.0
    %580 = vmatpush.msra.mxu0 0.0
    %581 = vmatpush.msra.mxu0 0.0
    %582 = vmatpush.msra.mxu0 0.0
    %583 = vmatpush.msra.mxu0 0.0
    %584 = vmatpush.msra.mxu0 0.0
    %585 = vmatpush.msra.mxu0 0.0
    %586 = vmatpush.msra.mxu0 0.0
    %587 = vmatpush.msra.mxu0 0.0
    %588 = vmatpush.msra.mxu0 0.0
    %589 = vmatpush.msra.mxu0 %v46
    %590 = vmatpush.msra.mxu0 %v45
    %591 = vmatpush.msra.mxu0 %v44
    %592 = vmatpush.msra.mxu0 %v43
    %593 = vmatmul.f32.gmra.mxu0 %v575
    %v594 = vpop.f32.mrf.mxu0
    %v595 = vadd.f32 0.0, %v594
    %596 = vdwg.mxu0
    %v597 = vmul.f32 %v572, %v572
    %v599 = vsel %vm48, %v597, 0
    %601 = vmatpush.msra.mxu0 0.0
    %602 = vmatpush.msra.mxu0 0.0
    %603 = vmatpush.msra.mxu0 0.0
    %604 = vmatpush.msra.mxu0 0.0
    %605 = vmatpush.msra.mxu0 0.0
    %606 = vmatpush.msra.mxu0 0.0
    %607 = vmatpush.msra.mxu0 0.0
    %608 = vmatpush.msra.mxu0 0.0
    %609 = vmatpush.msra.mxu0 0.0
    %610 = vmatpush.msra.mxu0 0.0
    %611 = vmatpush.msra.mxu0 0.0
    %612 = vmatpush.msra.mxu0 0.0
    %613 = vmatpush.msra.mxu0 %v46
    %614 = vmatpush.msra.mxu0 %v45
    %615 = vmatpush.msra.mxu0 %v44
    %616 = vmatpush.msra.mxu0 %v43
    %617 = vmatmul.f32.gmra.mxu0 %v599
    %v618 = vpop.f32.mrf.mxu0
    %v619 = vadd.f32 0.0, %v618
    %620 = vdwg.mxu0
    %v621 = vsub.f32 %v572, %v595
    %v622 = vmul.f32 %v595, %v595
    %v623 = vsub.f32 %v619, %v622
    %v624 = vadd.f32 %v623, 1e-05
    %v625 = vrsqrt.pop %v624
    %v626 = vmul.f32 %v625, %v624
    %v627 = vmul.f32 %v626, %v625
    %v628 = vmul.f32 0.5, %v627
    %v629 = vsub.f32 1.5, %v628
    %v630 = vmul.f32 %v625, %v629
    %vm631 = vweird.f32 %v624
    %vm632 = vweird.f32 %v625
    %vm633 = vmor %vm631, %vm632
    %v634 = vsel %vm633, %v625, %v630
    %v635 = vmul.f32 %v621, %v634
    %v636 = vpack.c.bf16 %v635, %v635
    %s637 = scalar_lea.vmem %s2, 32
    %v638 = vld [vmem:[%s637] sm:$0xff]
    %v639 = vld [vmem:[%s637 + $0x8] sm:$0xff]
    %v640 = vld [vmem:[%s637 + $0x10] sm:$0xff]
    %v641 = vld [vmem:[%s637 + $0x18] sm:$0xff]
    %s642 = scalar_lea.vmem %s3, 1
    %v643 = vld [vmem:[%s642] ss:$8 sm:$0x3]
    %v645 = vperm.slane %v643, 0
    %v646 = vperm.slane %v643, 1
    %v653 = vunpack.c.l.b16 %v638
    %v654 = vunpack.c.h.b16 %v638
    %v655 = vunpack.c.l.b16 %v639
    %v656 = vunpack.c.h.b16 %v639
    %v657 = vunpack.c.l.b16 %v640
    %v658 = vunpack.c.h.b16 %v640
    %v659 = vunpack.c.l.b16 %v641
    %v660 = vunpack.c.h.b16 %v641
    %v661 = vpack.c.b16 %v655, %v653
    %v662 = vpack.c.b16 %v656, %v654
    %v663 = vpack.c.b16 %v659, %v657
    %v664 = vpack.c.b16 %v660, %v658
    %v670 = vsel %vm48, %v636, 0
    %672 = vmatpush.bf16.msra.mxu0 0
    %673 = vmatpush.bf16.msra.mxu0 0
    %674 = vmatpush.bf16.msra.mxu0 0
    %675 = vmatpush.bf16.msra.mxu0 0
    %676 = vmatpush.bf16.msra.mxu0 0
    %677 = vmatpush.bf16.msra.mxu0 0
    %678 = vmatpush.bf16.msra.mxu0 %v663
    %679 = vmatpush.bf16.msra.mxu0 %v661
    %680 = vmatmul.bf16.gmra.mxu0 %v670
    %v681 = vpop.f32.mrf.mxu0
    %v682 = vadd.f32 %v645, %v681
    %v683 = vpop.f32.mrf.mxu0
    %684 = vdwg.mxu0
    %685 = vmatpush.bf16.msra.mxu0 0
    %686 = vmatpush.bf16.msra.mxu0 0
    %687 = vmatpush.bf16.msra.mxu0 0
    %688 = vmatpush.bf16.msra.mxu0 0
    %689 = vmatpush.bf16.msra.mxu0 0
    %690 = vmatpush.bf16.msra.mxu0 0
    %691 = vmatpush.bf16.msra.mxu0 %v664
    %692 = vmatpush.bf16.msra.mxu0 %v662
    %693 = vmatmul.bf16.gmra.mxu0 %v670
    %v694 = vpop.f32.mrf.mxu0
    %v695 = vadd.f32 %v646, %v694
    %v696 = vpop.f32.mrf.mxu0
    %697 = vdwg.mxu0
    %v698 = vmul.f32 %v682, 0.5
    %v699 = vmul.f32 %v695, 0.5
    %v700 = vmul.f32 %v682, 0.044715
    %v701 = vmul.f32 %v695, 0.044715
    %v702 = vmul.f32 %v700, %v682
    %v703 = vmul.f32 %v701, %v695
    %v704 = vmul.f32 %v702, %v682
    %v705 = vmul.f32 %v703, %v695
    %v706 = vadd.f32 %v682, %v704
    %v707 = vadd.f32 %v695, %v705
    %v708 = vmul.f32 %v706, 0.7978846
    %v709 = vmul.f32 %v707, 0.7978846
    %v710 = vtanh.pop %v708
    %v711 = vtanh.pop %v709
    %v712 = vadd.f32 %v710, 1.0
    %v713 = vadd.f32 %v711, 1.0
    %v714 = vmul.f32 %v698, %v712
    %v715 = vmul.f32 %v699, %v713
    %v716 = vpack.c.bf16 %v714, %v714
    %v717 = vpack.c.bf16 %v715, %v715
    %s718 = scalar_lea.vmem %s4, 128
    %v719 = vld [vmem:[%s718] sm:$0xf]
    %v720 = vld [vmem:[%s718 + $0x4] sm:$0xf]
    %v721 = vld [vmem:[%s718 + $0x8] sm:$0xf]
    %v722 = vld [vmem:[%s718 + $0xc] sm:$0xf]
    %v723 = vld [vmem:[%s718 + $0x10] sm:$0xf]
    %v724 = vld [vmem:[%s718 + $0x14] sm:$0xf]
    %v725 = vld [vmem:[%s718 + $0x18] sm:$0xf]
    %v726 = vld [vmem:[%s718 + $0x1c] sm:$0xf]
    %v727 = vld [vmem:[%s718 + $0x20] sm:$0xf]
    %v728 = vld [vmem:[%s718 + $0x24] sm:$0xf]
    %v729 = vld [vmem:[%s718 + $0x28] sm:$0xf]
    %v730 = vld [vmem:[%s718 + $0x2c] sm:$0xf]
    %v731 = vld [vmem:[%s718 + $0x30] sm:$0xf]
    %v732 = vld [vmem:[%s718 + $0x34] sm:$0xf]
    %v733 = vld [vmem:[%s718 + $0x38] sm:$0xf]
    %v734 = vld [vmem:[%s718 + $0x3c] sm:$0xf]
    %v735 = vld [vmem:[%s718 + $0x40] sm:$0xf]
    %v736 = vld [vmem:[%s718 + $0x44] sm:$0xf]
    %v737 = vld [vmem:[%s718 + $0x48] sm:$0xf]
    %v738 = vld [vmem:[%s718 + $0x4c] sm:$0xf]
    %v739 = vld [vmem:[%s718 + $0x50] sm:$0xf]
    %v740 = vld [vmem:[%s718 + $0x54] sm:$0xf]
    %v741 = vld [vmem:[%s718 + $0x58] sm:$0xf]
    %v742 = vld [vmem:[%s718 + $0x5c] sm:$0xf]
    %v743 = vld [vmem:[%s718 + $0x60] sm:$0xf]
    %v744 = vld [vmem:[%s718 + $0x64] sm:$0xf]
    %v745 = vld [vmem:[%s718 + $0x68] sm:$0xf]
    %v746 = vld [vmem:[%s718 + $0x6c] sm:$0xf]
    %v747 = vld [vmem:[%s718 + $0x70] sm:$0xf]
    %v748 = vld [vmem:[%s718 + $0x74] sm:$0xf]
    %v749 = vld [vmem:[%s718 + $0x78] sm:$0xf]
    %v750 = vld [vmem:[%s718 + $0x7c] sm:$0xf]
    %v783 = vunpack.c.l.b16 %v719
    %v784 = vunpack.c.l.b16 %v720
    %v785 = vunpack.c.l.b16 %v721
    %v786 = vunpack.c.l.b16 %v722
    %v787 = vunpack.c.l.b16 %v723
    %v788 = vunpack.c.l.b16 %v724
    %v789 = vunpack.c.l.b16 %v725
    %v790 = vunpack.c.l.b16 %v726
    %v791 = vunpack.c.l.b16 %v727
    %v792 = vunpack.c.l.b16 %v728
    %v793 = vunpack.c.l.b16 %v729
    %v794 = vunpack.c.l.b16 %v730
    %v795 = vunpack.c.l.b16 %v731
    %v796 = vunpack.c.l.b16 %v732
    %v797 = vunpack.c.l.b16 %v733
    %v798 = vunpack.c.l.b16 %v734
    %v799 = vunpack.c.l.b16 %v735
    %v800 = vunpack.c.l.b16 %v736
    %v801 = vunpack.c.l.b16 %v737
    %v802 = vunpack.c.l.b16 %v738
    %v803 = vunpack.c.l.b16 %v739
    %v804 = vunpack.c.l.b16 %v740
    %v805 = vunpack.c.l.b16 %v741
    %v806 = vunpack.c.l.b16 %v742
    %v807 = vunpack.c.l.b16 %v743
    %v808 = vunpack.c.l.b16 %v744
    %v809 = vunpack.c.l.b16 %v745
    %v810 = vunpack.c.l.b16 %v746
    %v811 = vunpack.c.l.b16 %v747
    %v812 = vunpack.c.l.b16 %v748
    %v813 = vunpack.c.l.b16 %v749
    %v814 = vunpack.c.l.b16 %v750
    %v815 = vpack.c.b16 %v784, %v783
    %v816 = vpack.c.b16 %v786, %v785
    %v817 = vpack.c.b16 %v788, %v787
    %v818 = vpack.c.b16 %v790, %v789
    %v819 = vpack.c.b16 %v792, %v791
    %v820 = vpack.c.b16 %v794, %v793
    %v821 = vpack.c.b16 %v796, %v795
    %v822 = vpack.c.b16 %v798, %v797
    %v823 = vpack.c.b16 %v800, %v799
    %v824 = vpack.c.b16 %v802, %v801
    %v825 = vpack.c.b16 %v804, %v803
    %v826 = vpack.c.b16 %v806, %v805
    %v827 = vpack.c.b16 %v808, %v807
    %v828 = vpack.c.b16 %v810, %v809
    %v829 = vpack.c.b16 %v812, %v811
    %v830 = vpack.c.b16 %v814, %v813
    %847 = vmatpush.bf16.msra.mxu0 %v822
    %848 = vmatpush.bf16.msra.mxu0 %v821
    %849 = vmatpush.bf16.msra.mxu0 %v820
    %850 = vmatpush.bf16.msra.mxu0 %v819
    %851 = vmatpush.bf16.msra.mxu0 %v818
    %852 = vmatpush.bf16.msra.mxu0 %v817
    %853 = vmatpush.bf16.msra.mxu0 %v816
    %854 = vmatpush.bf16.msra.mxu0 %v815
    %855 = vmatmul.bf16.gmra.mxu0 %v716
    %v856 = vpop.f32.mrf.mxu0
    %v857 = vadd.f32 0.0, %v856
    %v858 = vpop.f32.mrf.mxu0
    %859 = vdwg.mxu0
    %860 = vmatpush.bf16.msra.mxu0 %v830
    %861 = vmatpush.bf16.msra.mxu0 %v829
    %862 = vmatpush.bf16.msra.mxu0 %v828
    %863 = vmatpush.bf16.msra.mxu0 %v827
    %864 = vmatpush.bf16.msra.mxu0 %v826
    %865 = vmatpush.bf16.msra.mxu0 %v825
    %866 = vmatpush.bf16.msra.mxu0 %v824
    %867 = vmatpush.bf16.msra.mxu0 %v823
    %868 = vmatmul.bf16.gmra.mxu0 %v717
    %v869 = vpop.f32.mrf.mxu0
    %v870 = vadd.f32 %v857, %v869
    %v871 = vpop.f32.mrf.mxu0
    %872 = vdwg.mxu0
    %v873 = vadd.f32 %v572, %v870
    %v874 = vld [vmem:[%s5 + $0x1] sm:$0x1]
    %v875 = vperm.slane %v874, 0
    %v876 = vadd.f32 %v873, %v875
    %v878 = vsel %vm48, %v876, 0
    %880 = vmatpush.msra.mxu0 0.0
    %881 = vmatpush.msra.mxu0 0.0
    %882 = vmatpush.msra.mxu0 0.0
    %883 = vmatpush.msra.mxu0 0.0
    %884 = vmatpush.msra.mxu0 0.0
    %885 = vmatpush.msra.mxu0 0.0
    %886 = vmatpush.msra.mxu0 0.0
    %887 = vmatpush.msra.mxu0 0.0
    %888 = vmatpush.msra.mxu0 0.0
    %889 = vmatpush.msra.mxu0 0.0
    %890 = vmatpush.msra.mxu0 0.0
    %891 = vmatpush.msra.mxu0 0.0
    %892 = vmatpush.msra.mxu0 %v46
    %893 = vmatpush.msra.mxu0 %v45
    %894 = vmatpush.msra.mxu0 %v44
    %895 = vmatpush.msra.mxu0 %v43
    %896 = vmatmul.f32.gmra.mxu0 %v878
    %v897 = vpop.f32.mrf.mxu0
    %v898 = vadd.f32 0.0, %v897
    %899 = vdwg.mxu0
    %v900 = vmul.f32 %v876, %v876
    %v902 = vsel %vm48, %v900, 0
    %904 = vmatpush.msra.mxu0 0.0
    %905 = vmatpush.msra.mxu0 0.0
    %906 = vmatpush.msra.mxu0 0.0
    %907 = vmatpush.msra.mxu0 0.0
    %908 = vmatpush.msra.mxu0 0.0
    %909 = vmatpush.msra.mxu0 0.0
    %910 = vmatpush.msra.mxu0 0.0
    %911 = vmatpush.msra.mxu0 0.0
    %912 = vmatpush.msra.mxu0 0.0
    %913 = vmatpush.msra.mxu0 0.0
    %914 = vmatpush.msra.mxu0 0.0
    %915 = vmatpush.msra.mxu0 0.0
    %916 = vmatpush.msra.mxu0 %v46
    %917 = vmatpush.msra.mxu0 %v45
    %918 = vmatpush.msra.mxu0 %v44
    %919 = vmatpush.msra.mxu0 %v43
    %920 = vmatmul.f32.gmra.mxu0 %v902
    %v921 = vpop.f32.mrf.mxu0
    %v922 = vadd.f32 0.0, %v921
    %923 = vdwg.mxu0
    %v924 = vsub.f32 %v876, %v898
    %v925 = vmul.f32 %v898, %v898
    %v926 = vsub.f32 %v922, %v925
    %v927 = vadd.f32 %v926, 1e-05
    %v928 = vrsqrt.pop %v927
    %v929 = vmul.f32 %v928, %v927
    %v930 = vmul.f32 %v929, %v928
    %v931 = vmul.f32 0.5, %v930
    %v932 = vsub.f32 1.5, %v931
    %v933 = vmul.f32 %v928, %v932
    %vm934 = vweird.f32 %v927
    %vm935 = vweird.f32 %v928
    %vm936 = vmor %vm934, %vm935
    %v937 = vsel %vm936, %v928, %v933
    %v938 = vmul.f32 %v924, %v937
    %v939 = vpack.c.bf16 %v938, %v938
    %s940 = scalar_lea.vmem %s6, 16
    %v941 = vld [vmem:[%s940] sm:$0xf]
    %v942 = vld [vmem:[%s940 + $0x4] sm:$0xf]
    %v943 = vld [vmem:[%s940 + $0x8] sm:$0xf]
    %v944 = vld [vmem:[%s940 + $0xc] sm:$0xf]
    %v945 = vld [vmem:[%s7 + $0x1] sm:$0x1]
    %v946 = vperm.slane %v945, 0
    %v951 = vunpack.c.l.b16 %v941
    %v952 = vunpack.c.l.b16 %v942
    %v953 = vunpack.c.l.b16 %v943
    %v954 = vunpack.c.l.b16 %v944
    %v955 = vpack.c.b16 %v952, %v951
    %v956 = vpack.c.b16 %v954, %v953
    %v960 = vsel %vm48, %v939, 0
    %962 = vmatpush.bf16.msra.mxu0 0
    %963 = vmatpush.bf16.msra.mxu0 0
    %964 = vmatpush.bf16.msra.mxu0 0
    %965 = vmatpush.bf16.msra.mxu0 0
    %966 = vmatpush.bf16.msra.mxu0 0
    %967 = vmatpush.bf16.msra.mxu0 0
    %968 = vmatpush.bf16.msra.mxu0 %v956
    %969 = vmatpush.bf16.msra.mxu0 %v955
    %970 = vmatmul.bf16.gmra.mxu0 %v960
    %v971 = vpop.f32.mrf.mxu0
    %v972 = vadd.f32 %v946, %v971
    %v973 = vpop.f32.mrf.mxu0
    %974 = vdwg.mxu0
    %v975 = vmul.f32 %v972, 0.5
    %v976 = vmul.f32 %v972, 0.044715
    %v977 = vmul.f32 %v976, %v972
    %v978 = vmul.f32 %v977, %v972
    %v979 = vadd.f32 %v972, %v978
    %v980 = vmul.f32 %v979, 0.7978846
    %v981 = vtanh.pop %v980
    %v982 = vadd.f32 %v981, 1.0
    %v983 = vmul.f32 %v975, %v982
    %v984 = vpack.c.bf16 %v983, %v983
    %s985 = scalar_lea.vmem %s8, 64
    %v986 = vld [vmem:[%s985] sm:$0xf]
    %v987 = vld [vmem:[%s985 + $0x4] sm:$0xf]
    %v988 = vld [vmem:[%s985 + $0x8] sm:$0xf]
    %v989 = vld [vmem:[%s985 + $0xc] sm:$0xf]
    %v990 = vld [vmem:[%s985 + $0x10] sm:$0xf]
    %v991 = vld [vmem:[%s985 + $0x14] sm:$0xf]
    %v992 = vld [vmem:[%s985 + $0x18] sm:$0xf]
    %v993 = vld [vmem:[%s985 + $0x1c] sm:$0xf]
    %v994 = vld [vmem:[%s985 + $0x20] sm:$0xf]
    %v995 = vld [vmem:[%s985 + $0x24] sm:$0xf]
    %v996 = vld [vmem:[%s985 + $0x28] sm:$0xf]
    %v997 = vld [vmem:[%s985 + $0x2c] sm:$0xf]
    %v998 = vld [vmem:[%s985 + $0x30] sm:$0xf]
    %v999 = vld [vmem:[%s985 + $0x34] sm:$0xf]
    %v1000 = vld [vmem:[%s985 + $0x38] sm:$0xf]
    %v1001 = vld [vmem:[%s985 + $0x3c] sm:$0xf]
    %v1018 = vunpack.c.l.b16 %v986
    %v1019 = vunpack.c.l.b16 %v987
    %v1020 = vunpack.c.l.b16 %v988
    %v1021 = vunpack.c.l.b16 %v989
    %v1022 = vunpack.c.l.b16 %v990
    %v1023 = vunpack.c.l.b16 %v991
    %v1024 = vunpack.c.l.b16 %v992
    %v1025 = vunpack.c.l.b16 %v993
    %v1026 = vunpack.c.l.b16 %v994
    %v1027 = vunpack.c.l.b16 %v995
    %v1028 = vunpack.c.l.b16 %v996
    %v1029 = vunpack.c.l.b16 %v997
    %v1030 = vunpack.c.l.b16 %v998
    %v1031 = vunpack.c.l.b16 %v999
    %v1032 = vunpack.c.l.b16 %v1000
    %v1033 = vunpack.c.l.b16 %v1001
    %v1034 = vpack.c.b16 %v1019, %v1018
    %v1035 = vpack.c.b16 %v1021, %v1020
    %v1036 = vpack.c.b16 %v1023, %v1022
    %v1037 = vpack.c.b16 %v1025, %v1024
    %v1038 = vpack.c.b16 %v1027, %v1026
    %v1039 = vpack.c.b16 %v1029, %v1028
    %v1040 = vpack.c.b16 %v1031, %v1030
    %v1041 = vpack.c.b16 %v1033, %v1032
    %1050 = vmatpush.bf16.msra.mxu0 %v1041
    %1051 = vmatpush.bf16.msra.mxu0 %v1040
    %1052 = vmatpush.bf16.msra.mxu0 %v1039
    %1053 = vmatpush.bf16.msra.mxu0 %v1038
    %1054 = vmatpush.bf16.msra.mxu0 %v1037
    %1055 = vmatpush.bf16.msra.mxu0 %v1036
    %1056 = vmatpush.bf16.msra.mxu0 %v1035
    %1057 = vmatpush.bf16.msra.mxu0 %v1034
    %1058 = vmatmul.bf16.gmra.mxu0 %v984
    %v1059 = vpop.f32.mrf.mxu0
    %v1060 = vadd.f32 0.0, %v1059
    %v1061 = vpop.f32.mrf.mxu0
    %1062 = vdwg.mxu0
    %v1063 = vadd.f32 %v876, %v1060
    %v1064 = vld [vmem:[%s9 + $0x1] sm:$0x1]
    %v1065 = vperm.slane %v1064, 0
    %v1066 = vadd.f32 %v1063, %v1065
    %v1067 = vpack.c.bf16 %v1066, %v1066
    %s1068 = scalar_lea.vmem %s10, 16
    %v1069 = vld [vmem:[%s1068] sm:$0xf]
    %v1070 = vld [vmem:[%s1068 + $0x4] sm:$0xf]
    %v1071 = vld [vmem:[%s1068 + $0x8] sm:$0xf]
    %v1072 = vld [vmem:[%s1068 + $0xc] sm:$0xf]
    %v1073 = vld [vmem:[%s11 + $0x1] sm:$0x1]
    %v1074 = vperm.slane %v1073, 0
    %v1079 = vunpack.c.l.b16 %v1069
    %v1080 = vunpack.c.l.b16 %v1070
    %v1081 = vunpack.c.l.b16 %v1071
    %v1082 = vunpack.c.l.b16 %v1072
    %v1083 = vpack.c.b16 %v1080, %v1079
    %v1084 = vpack.c.b16 %v1082, %v1081
    %v1088 = vsel %vm48, %v1067, 0
    %1090 = vmatpush.bf16.msra.mxu0 0
    %1091 = vmatpush.bf16.msra.mxu0 0
    %1092 = vmatpush.bf16.msra.mxu0 0
    %1093 = vmatpush.bf16.msra.mxu0 0
    %1094 = vmatpush.bf16.msra.mxu0 0
    %1095 = vmatpush.bf16.msra.mxu0 0
    %1096 = vmatpush.bf16.msra.mxu0 %v1084
    %1097 = vmatpush.bf16.msra.mxu0 %v1083
    %1098 = vmatmul.bf16.gmra.mxu0 %v1088
    %v1099 = vpop.f32.mrf.mxu0
    %v1100 = vadd.f32 %v1074, %v1099
    %v1101 = vpop.f32.mrf.mxu0
    %1102 = vdwg.mxu0
    %v1103 = vsub.f32 %v572, %v1100
    %v1104 = vadd.f32 %v573, %v1100
    %v1106 = vsel %vm48, %v1103, 0
    %1108 = vmatpush.msra.mxu0 0.0
    %1109 = vmatpush.msra.mxu0 0.0
    %1110 = vmatpush.msra.mxu0 0.0
    %1111 = vmatpush.msra.mxu0 0.0
    %1112 = vmatpush.msra.mxu0 0.0
    %1113 = vmatpush.msra.mxu0 0.0
    %1114 = vmatpush.msra.mxu0 0.0
    %1115 = vmatpush.msra.mxu0 0.0
    %1116 = vmatpush.msra.mxu0 0.0
    %1117 = vmatpush.msra.mxu0 0.0
    %1118 = vmatpush.msra.mxu0 0.0
    %1119 = vmatpush.msra.mxu0 0.0
    %1120 = vmatpush.msra.mxu0 %v46
    %1121 = vmatpush.msra.mxu0 %v45
    %1122 = vmatpush.msra.mxu0 %v44
    %1123 = vmatpush.msra.mxu0 %v43
    %1124 = vmatmul.f32.gmra.mxu0 %v1106
    %v1125 = vpop.f32.mrf.mxu0
    %v1126 = vadd.f32 0.0, %v1125
    %1127 = vdwg.mxu0
    %v1128 = vmul.f32 %v1103, %v1103
    %v1130 = vsel %vm48, %v1128, 0
    %1132 = vmatpush.msra.mxu0 0.0
    %1133 = vmatpush.msra.mxu0 0.0
    %1134 = vmatpush.msra.mxu0 0.0
    %1135 = vmatpush.msra.mxu0 0.0
    %1136 = vmatpush.msra.mxu0 0.0
    %1137 = vmatpush.msra.mxu0 0.0
    %1138 = vmatpush.msra.mxu0 0.0
    %1139 = vmatpush.msra.mxu0 0.0
    %1140 = vmatpush.msra.mxu0 0.0
    %1141 = vmatpush.msra.mxu0 0.0
    %1142 = vmatpush.msra.mxu0 0.0
    %1143 = vmatpush.msra.mxu0 0.0
    %1144 = vmatpush.msra.mxu0 %v46
    %1145 = vmatpush.msra.mxu0 %v45
    %1146 = vmatpush.msra.mxu0 %v44
    %1147 = vmatpush.msra.mxu0 %v43
    %1148 = vmatmul.f32.gmra.mxu0 %v1130
    %v1149 = vpop.f32.mrf.mxu0
    %v1150 = vadd.f32 0.0, %v1149
    %1151 = vdwg.mxu0
    %v1152 = vsub.f32 %v1103, %v1126
    %v1153 = vmul.f32 %v1126, %v1126
    %v1154 = vsub.f32 %v1150, %v1153
    %v1155 = vadd.f32 %v1154, 1e-05
    %v1156 = vrsqrt.pop %v1155
    %v1157 = vmul.f32 %v1156, %v1155
    %v1158 = vmul.f32 %v1157, %v1156
    %v1159 = vmul.f32 0.5, %v1158
    %v1160 = vsub.f32 1.5, %v1159
    %v1161 = vmul.f32 %v1156, %v1160
    %vm1162 = vweird.f32 %v1155
    %vm1163 = vweird.f32 %v1156
    %vm1164 = vmor %vm1162, %vm1163
    %v1165 = vsel %vm1164, %v1156, %v1161
    %v1166 = vmul.f32 %v1152, %v1165
    %v1167 = vpack.c.bf16 %v1166, %v1166
    %s1168 = scalar_lea.vmem %s2, 64
    %v1169 = vld [vmem:[%s1168] sm:$0xff]
    %v1170 = vld [vmem:[%s1168 + $0x8] sm:$0xff]
    %v1171 = vld [vmem:[%s1168 + $0x10] sm:$0xff]
    %v1172 = vld [vmem:[%s1168 + $0x18] sm:$0xff]
    %s1173 = scalar_lea.vmem %s3, 2
    %v1174 = vld [vmem:[%s1173] ss:$8 sm:$0x3]
    %v1176 = vperm.slane %v1174, 0
    %v1177 = vperm.slane %v1174, 1
    %v1184 = vunpack.c.l.b16 %v1169
    %v1185 = vunpack.c.h.b16 %v1169
    %v1186 = vunpack.c.l.b16 %v1170
    %v1187 = vunpack.c.h.b16 %v1170
    %v1188 = vunpack.c.l.b16 %v1171
    %v1189 = vunpack.c.h.b16 %v1171
    %v1190 = vunpack.c.l.b16 %v1172
    %v1191 = vunpack.c.h.b16 %v1172
    %v1192 = vpack.c.b16 %v1186, %v1184
    %v1193 = vpack.c.b16 %v1187, %v1185
    %v1194 = vpack.c.b16 %v1190, %v1188
    %v1195 = vpack.c.b16 %v1191, %v1189
    %v1201 = vsel %vm48, %v1167, 0
    %1203 = vmatpush.bf16.msra.mxu0 0
    %1204 = vmatpush.bf16.msra.mxu0 0
    %1205 = vmatpush.bf16.msra.mxu0 0
    %1206 = vmatpush.bf16.msra.mxu0 0
    %1207 = vmatpush.bf16.msra.mxu0 0
    %1208 = vmatpush.bf16.msra.mxu0 0
    %1209 = vmatpush.bf16.msra.mxu0 %v1194
    %1210 = vmatpush.bf16.msra.mxu0 %v1192
    %1211 = vmatmul.bf16.gmra.mxu0 %v1201
    %v1212 = vpop.f32.mrf.mxu0
    %v1213 = vadd.f32 %v1176, %v1212
    %v1214 = vpop.f32.mrf.mxu0
    %1215 = vdwg.mxu0
    %1216 = vmatpush.bf16.msra.mxu0 0
    %1217 = vmatpush.bf16.msra.mxu0 0
    %1218 = vmatpush.bf16.msra.mxu0 0
    %1219 = vmatpush.bf16.msra.mxu0 0
    %1220 = vmatpush.bf16.msra.mxu0 0
    %1221 = vmatpush.bf16.msra.mxu0 0
    %1222 = vmatpush.bf16.msra.mxu0 %v1195
    %1223 = vmatpush.bf16.msra.mxu0 %v1193
    %1224 = vmatmul.bf16.gmra.mxu0 %v1201
    %v1225 = vpop.f32.mrf.mxu0
    %v1226 = vadd.f32 %v1177, %v1225
    %v1227 = vpop.f32.mrf.mxu0
    %1228 = vdwg.mxu0
    %v1229 = vmul.f32 %v1213, 0.5
    %v1230 = vmul.f32 %v1226, 0.5
    %v1231 = vmul.f32 %v1213, 0.044715
    %v1232 = vmul.f32 %v1226, 0.044715
    %v1233 = vmul.f32 %v1231, %v1213
    %v1234 = vmul.f32 %v1232, %v1226
    %v1235 = vmul.f32 %v1233, %v1213
    %v1236 = vmul.f32 %v1234, %v1226
    %v1237 = vadd.f32 %v1213, %v1235
    %v1238 = vadd.f32 %v1226, %v1236
    %v1239 = vmul.f32 %v1237, 0.7978846
    %v1240 = vmul.f32 %v1238, 0.7978846
    %v1241 = vtanh.pop %v1239
    %v1242 = vtanh.pop %v1240
    %v1243 = vadd.f32 %v1241, 1.0
    %v1244 = vadd.f32 %v1242, 1.0
    %v1245 = vmul.f32 %v1229, %v1243
    %v1246 = vmul.f32 %v1230, %v1244
    %v1247 = vpack.c.bf16 %v1245, %v1245
    %v1248 = vpack.c.bf16 %v1246, %v1246
    %s1249 = scalar_lea.vmem %s4, 256
    %v1250 = vld [vmem:[%s1249] sm:$0xf]
    %v1251 = vld [vmem:[%s1249 + $0x4] sm:$0xf]
    %v1252 = vld [vmem:[%s1249 + $0x8] sm:$0xf]
    %v1253 = vld [vmem:[%s1249 + $0xc] sm:$0xf]
    %v1254 = vld [vmem:[%s1249 + $0x10] sm:$0xf]
    %v1255 = vld [vmem:[%s1249 + $0x14] sm:$0xf]
    %v1256 = vld [vmem:[%s1249 + $0x18] sm:$0xf]
    %v1257 = vld [vmem:[%s1249 + $0x1c] sm:$0xf]
    %v1258 = vld [vmem:[%s1249 + $0x20] sm:$0xf]
    %v1259 = vld [vmem:[%s1249 + $0x24] sm:$0xf]
    %v1260 = vld [vmem:[%s1249 + $0x28] sm:$0xf]
    %v1261 = vld [vmem:[%s1249 + $0x2c] sm:$0xf]
    %v1262 = vld [vmem:[%s1249 + $0x30] sm:$0xf]
    %v1263 = vld [vmem:[%s1249 + $0x34] sm:$0xf]
    %v1264 = vld [vmem:[%s1249 + $0x38] sm:$0xf]
    %v1265 = vld [vmem:[%s1249 + $0x3c] sm:$0xf]
    %v1266 = vld [vmem:[%s1249 + $0x40] sm:$0xf]
    %v1267 = vld [vmem:[%s1249 + $0x44] sm:$0xf]
    %v1268 = vld [vmem:[%s1249 + $0x48] sm:$0xf]
    %v1269 = vld [vmem:[%s1249 + $0x4c] sm:$0xf]
    %v1270 = vld [vmem:[%s1249 + $0x50] sm:$0xf]
    %v1271 = vld [vmem:[%s1249 + $0x54] sm:$0xf]
    %v1272 = vld [vmem:[%s1249 + $0x58] sm:$0xf]
    %v1273 = vld [vmem:[%s1249 + $0x5c] sm:$0xf]
    %v1274 = vld [vmem:[%s1249 + $0x60] sm:$0xf]
    %v1275 = vld [vmem:[%s1249 + $0x64] sm:$0xf]
    %v1276 = vld [vmem:[%s1249 + $0x68] sm:$0xf]
    %v1277 = vld [vmem:[%s1249 + $0x6c] sm:$0xf]
    %v1278 = vld [vmem:[%s1249 + $0x70] sm:$0xf]
    %v1279 = vld [vmem:[%s1249 + $0x74] sm:$0xf]
    %v1280 = vld [vmem:[%s1249 + $0x78] sm:$0xf]
    %v1281 = vld [vmem:[%s1249 + $0x7c] sm:$0xf]
    %v1314 = vunpack.c.l.b16 %v1250
    %v1315 = vunpack.c.l.b16 %v1251
    %v1316 = vunpack.c.l.b16 %v1252
    %v1317 = vunpack.c.l.b16 %v1253
    %v1318 = vunpack.c.l.b16 %v1254
    %v1319 = vunpack.c.l.b16 %v1255
    %v1320 = vunpack.c.l.b16 %v1256
    %v1321 = vunpack.c.l.b16 %v1257
    %v1322 = vunpack.c.l.b16 %v1258
    %v1323 = vunpack.c.l.b16 %v1259
    %v1324 = vunpack.c.l.b16 %v1260
    %v1325 = vunpack.c.l.b16 %v1261
    %v1326 = vunpack.c.l.b16 %v1262
    %v1327 = vunpack.c.l.b16 %v1263
    %v1328 = vunpack.c.l.b16 %v1264
    %v1329 = vunpack.c.l.b16 %v1265
    %v1330 = vunpack.c.l.b16 %v1266
    %v1331 = vunpack.c.l.b16 %v1267
    %v1332 = vunpack.c.l.b16 %v1268
    %v1333 = vunpack.c.l.b16 %v1269
    %v1334 = vunpack.c.l.b16 %v1270
    %v1335 = vunpack.c.l.b16 %v1271
    %v1336 = vunpack.c.l.b16 %v1272
    %v1337 = vunpack.c.l.b16 %v1273
    %v1338 = vunpack.c.l.b16 %v1274
    %v1339 = vunpack.c.l.b16 %v1275
    %v1340 = vunpack.c.l.b16 %v1276
    %v1341 = vunpack.c.l.b16 %v1277
    %v1342 = vunpack.c.l.b16 %v1278
    %v1343 = vunpack.c.l.b16 %v1279
    %v1344 = vunpack.c.l.b16 %v1280
    %v1345 = vunpack.c.l.b16 %v1281
    %v1346 = vpack.c.b16 %v1315, %v1314
    %v1347 = vpack.c.b16 %v1317, %v1316
    %v1348 = vpack.c.b16 %v1319, %v1318
    %v1349 = vpack.c.b16 %v1321, %v1320
    %v1350 = vpack.c.b16 %v1323, %v1322
    %v1351 = vpack.c.b16 %v1325, %v1324
    %v1352 = vpack.c.b16 %v1327, %v1326
    %v1353 = vpack.c.b16 %v1329, %v1328
    %v1354 = vpack.c.b16 %v1331, %v1330
    %v1355 = vpack.c.b16 %v1333, %v1332
    %v1356 = vpack.c.b16 %v1335, %v1334
    %v1357 = vpack.c.b16 %v1337, %v1336
    %v1358 = vpack.c.b16 %v1339, %v1338
    %v1359 = vpack.c.b16 %v1341, %v1340
    %v1360 = vpack.c.b16 %v1343, %v1342
    %v1361 = vpack.c.b16 %v1345, %v1344
    %1378 = vmatpush.bf16.msra.mxu0 %v1353
    %1379 = vmatpush.bf16.msra.mxu0 %v1352
    %1380 = vmatpush.bf16.msra.mxu0 %v1351
    %1381 = vmatpush.bf16.msra.mxu0 %v1350
    %1382 = vmatpush.bf16.msra.mxu0 %v1349
    %1383 = vmatpush.bf16.msra.mxu0 %v1348
    %1384 = vmatpush.bf16.msra.mxu0 %v1347
    %1385 = vmatpush.bf16.msra.mxu0 %v1346
    %1386 = vmatmul.bf16.gmra.mxu0 %v1247
    %v1387 = vpop.f32.mrf.mxu0
    %v1388 = vadd.f32 0.0, %v1387
    %v1389 = vpop.f32.mrf.mxu0
    %1390 = vdwg.mxu0
    %1391 = vmatpush.bf16.msra.mxu0 %v1361
    %1392 = vmatpush.bf16.msra.mxu0 %v1360
    %1393 = vmatpush.bf16.msra.mxu0 %v1359
    %1394 = vmatpush.bf16.msra.mxu0 %v1358
    %1395 = vmatpush.bf16.msra.mxu0 %v1357
    %1396 = vmatpush.bf16.msra.mxu0 %v1356
    %1397 = vmatpush.bf16.msra.mxu0 %v1355
    %1398 = vmatpush.bf16.msra.mxu0 %v1354
    %1399 = vmatmul.bf16.gmra.mxu0 %v1248
    %v1400 = vpop.f32.mrf.mxu0
    %v1401 = vadd.f32 %v1388, %v1400
    %v1402 = vpop.f32.mrf.mxu0
    %1403 = vdwg.mxu0
    %v1404 = vadd.f32 %v1103, %v1401
    %v1405 = vld [vmem:[%s5 + $0x2] sm:$0x1]
    %v1406 = vperm.slane %v1405, 0
    %v1407 = vadd.f32 %v1404, %v1406
    %v1409 = vsel %vm48, %v1407, 0
    %1411 = vmatpush.msra.mxu0 0.0
    %1412 = vmatpush.msra.mxu0 0.0
    %1413 = vmatpush.msra.mxu0 0.0
    %1414 = vmatpush.msra.mxu0 0.0
    %1415 = vmatpush.msra.mxu0 0.0
    %1416 = vmatpush.msra.mxu0 0.0
    %1417 = vmatpush.msra.mxu0 0.0
    %1418 = vmatpush.msra.mxu0 0.0
    %1419 = vmatpush.msra.mxu0 0.0
    %1420 = vmatpush.msra.mxu0 0.0
    %1421 = vmatpush.msra.mxu0 0.0
    %1422 = vmatpush.msra.mxu0 0.0
    %1423 = vmatpush.msra.mxu0 %v46
    %1424 = vmatpush.msra.mxu0 %v45
    %1425 = vmatpush.msra.mxu0 %v44
    %1426 = vmatpush.msra.mxu0 %v43
    %1427 = vmatmul.f32.gmra.mxu0 %v1409
    %v1428 = vpop.f32.mrf.mxu0
    %v1429 = vadd.f32 0.0, %v1428
    %1430 = vdwg.mxu0
    %v1431 = vmul.f32 %v1407, %v1407
    %v1433 = vsel %vm48, %v1431, 0
    %1435 = vmatpush.msra.mxu0 0.0
    %1436 = vmatpush.msra.mxu0 0.0
    %1437 = vmatpush.msra.mxu0 0.0
    %1438 = vmatpush.msra.mxu0 0.0
    %1439 = vmatpush.msra.mxu0 0.0
    %1440 = vmatpush.msra.mxu0 0.0
    %1441 = vmatpush.msra.mxu0 0.0
    %1442 = vmatpush.msra.mxu0 0.0
    %1443 = vmatpush.msra.mxu0 0.0
    %1444 = vmatpush.msra.mxu0 0.0
    %1445 = vmatpush.msra.mxu0 0.0
    %1446 = vmatpush.msra.mxu0 0.0
    %1447 = vmatpush.msra.mxu0 %v46
    %1448 = vmatpush.msra.mxu0 %v45
    %1449 = vmatpush.msra.mxu0 %v44
    %1450 = vmatpush.msra.mxu0 %v43
    %1451 = vmatmul.f32.gmra.mxu0 %v1433
    %v1452 = vpop.f32.mrf.mxu0
    %v1453 = vadd.f32 0.0, %v1452
    %1454 = vdwg.mxu0
    %v1455 = vsub.f32 %v1407, %v1429
    %v1456 = vmul.f32 %v1429, %v1429
    %v1457 = vsub.f32 %v1453, %v1456
    %v1458 = vadd.f32 %v1457, 1e-05
    %v1459 = vrsqrt.pop %v1458
    %v1460 = vmul.f32 %v1459, %v1458
    %v1461 = vmul.f32 %v1460, %v1459
    %v1462 = vmul.f32 0.5, %v1461
    %v1463 = vsub.f32 1.5, %v1462
    %v1464 = vmul.f32 %v1459, %v1463
    %vm1465 = vweird.f32 %v1458
    %vm1466 = vweird.f32 %v1459
    %vm1467 = vmor %vm1465, %vm1466
    %v1468 = vsel %vm1467, %v1459, %v1464
    %v1469 = vmul.f32 %v1455, %v1468
    %v1470 = vpack.c.bf16 %v1469, %v1469
    %s1471 = scalar_lea.vmem %s6, 32
    %v1472 = vld [vmem:[%s1471] sm:$0xf]
    %v1473 = vld [vmem:[%s1471 + $0x4] sm:$0xf]
    %v1474 = vld [vmem:[%s1471 + $0x8] sm:$0xf]
    %v1475 = vld [vmem:[%s1471 + $0xc] sm:$0xf]
    %v1476 = vld [vmem:[%s7 + $0x2] sm:$0x1]
    %v1477 = vperm.slane %v1476, 0
    %v1482 = vunpack.c.l.b16 %v1472
    %v1483 = vunpack.c.l.b16 %v1473
    %v1484 = vunpack.c.l.b16 %v1474
    %v1485 = vunpack.c.l.b16 %v1475
    %v1486 = vpack.c.b16 %v1483, %v1482
    %v1487 = vpack.c.b16 %v1485, %v1484
    %v1491 = vsel %vm48, %v1470, 0
    %1493 = vmatpush.bf16.msra.mxu0 0
    %1494 = vmatpush.bf16.msra.mxu0 0
    %1495 = vmatpush.bf16.msra.mxu0 0
    %1496 = vmatpush.bf16.msra.mxu0 0
    %1497 = vmatpush.bf16.msra.mxu0 0
    %1498 = vmatpush.bf16.msra.mxu0 0
    %1499 = vmatpush.bf16.msra.mxu0 %v1487
    %1500 = vmatpush.bf16.msra.mxu0 %v1486
    %1501 = vmatmul.bf16.gmra.mxu0 %v1491
    %v1502 = vpop.f32.mrf.mxu0
    %v1503 = vadd.f32 %v1477, %v1502
    %v1504 = vpop.f32.mrf.mxu0
    %1505 = vdwg.mxu0
    %v1506 = vmul.f32 %v1503, 0.5
    %v1507 = vmul.f32 %v1503, 0.044715
    %v1508 = vmul.f32 %v1507, %v1503
    %v1509 = vmul.f32 %v1508, %v1503
    %v1510 = vadd.f32 %v1503, %v1509
    %v1511 = vmul.f32 %v1510, 0.7978846
    %v1512 = vtanh.pop %v1511
    %v1513 = vadd.f32 %v1512, 1.0
    %v1514 = vmul.f32 %v1506, %v1513
    %v1515 = vpack.c.bf16 %v1514, %v1514
    %s1516 = scalar_lea.vmem %s8, 128
    %v1517 = vld [vmem:[%s1516] sm:$0xf]
    %v1518 = vld [vmem:[%s1516 + $0x4] sm:$0xf]
    %v1519 = vld [vmem:[%s1516 + $0x8] sm:$0xf]
    %v1520 = vld [vmem:[%s1516 + $0xc] sm:$0xf]
    %v1521 = vld [vmem:[%s1516 + $0x10] sm:$0xf]
    %v1522 = vld [vmem:[%s1516 + $0x14] sm:$0xf]
    %v1523 = vld [vmem:[%s1516 + $0x18] sm:$0xf]
    %v1524 = vld [vmem:[%s1516 + $0x1c] sm:$0xf]
    %v1525 = vld [vmem:[%s1516 + $0x20] sm:$0xf]
    %v1526 = vld [vmem:[%s1516 + $0x24] sm:$0xf]
    %v1527 = vld [vmem:[%s1516 + $0x28] sm:$0xf]
    %v1528 = vld [vmem:[%s1516 + $0x2c] sm:$0xf]
    %v1529 = vld [vmem:[%s1516 + $0x30] sm:$0xf]
    %v1530 = vld [vmem:[%s1516 + $0x34] sm:$0xf]
    %v1531 = vld [vmem:[%s1516 + $0x38] sm:$0xf]
    %v1532 = vld [vmem:[%s1516 + $0x3c] sm:$0xf]
    %v1549 = vunpack.c.l.b16 %v1517
    %v1550 = vunpack.c.l.b16 %v1518
    %v1551 = vunpack.c.l.b16 %v1519
    %v1552 = vunpack.c.l.b16 %v1520
    %v1553 = vunpack.c.l.b16 %v1521
    %v1554 = vunpack.c.l.b16 %v1522
    %v1555 = vunpack.c.l.b16 %v1523
    %v1556 = vunpack.c.l.b16 %v1524
    %v1557 = vunpack.c.l.b16 %v1525
    %v1558 = vunpack.c.l.b16 %v1526
    %v1559 = vunpack.c.l.b16 %v1527
    %v1560 = vunpack.c.l.b16 %v1528
    %v1561 = vunpack.c.l.b16 %v1529
    %v1562 = vunpack.c.l.b16 %v1530
    %v1563 = vunpack.c.l.b16 %v1531
    %v1564 = vunpack.c.l.b16 %v1532
    %v1565 = vpack.c.b16 %v1550, %v1549
    %v1566 = vpack.c.b16 %v1552, %v1551
    %v1567 = vpack.c.b16 %v1554, %v1553
    %v1568 = vpack.c.b16 %v1556, %v1555
    %v1569 = vpack.c.b16 %v1558, %v1557
    %v1570 = vpack.c.b16 %v1560, %v1559
    %v1571 = vpack.c.b16 %v1562, %v1561
    %v1572 = vpack.c.b16 %v1564, %v1563
    %1581 = vmatpush.bf16.msra.mxu0 %v1572
    %1582 = vmatpush.bf16.msra.mxu0 %v1571
    %1583 = vmatpush.bf16.msra.mxu0 %v1570
    %1584 = vmatpush.bf16.msra.mxu0 %v1569
    %1585 = vmatpush.bf16.msra.mxu0 %v1568
    %1586 = vmatpush.bf16.msra.mxu0 %v1567
    %1587 = vmatpush.bf16.msra.mxu0 %v1566
    %1588 = vmatpush.bf16.msra.mxu0 %v1565
    %1589 = vmatmul.bf16.gmra.mxu0 %v1515
    %v1590 = vpop.f32.mrf.mxu0
    %v1591 = vadd.f32 0.0, %v1590
    %v1592 = vpop.f32.mrf.mxu0
    %1593 = vdwg.mxu0
    %v1594 = vadd.f32 %v1407, %v1591
    %v1595 = vld [vmem:[%s9 + $0x2] sm:$0x1]
    %v1596 = vperm.slane %v1595, 0
    %v1597 = vadd.f32 %v1594, %v1596
    %v1598 = vpack.c.bf16 %v1597, %v1597
    %s1599 = scalar_lea.vmem %s10, 32
    %v1600 = vld [vmem:[%s1599] sm:$0xf]
    %v1601 = vld [vmem:[%s1599 + $0x4] sm:$0xf]
    %v1602 = vld [vmem:[%s1599 + $0x8] sm:$0xf]
    %v1603 = vld [vmem:[%s1599 + $0xc] sm:$0xf]
    %v1604 = vld [vmem:[%s11 + $0x2] sm:$0x1]
    %v1605 = vperm.slane %v1604, 0
    %v1610 = vunpack.c.l.b16 %v1600
    %v1611 = vunpack.c.l.b16 %v1601
    %v1612 = vunpack.c.l.b16 %v1602
    %v1613 = vunpack.c.l.b16 %v1603
    %v1614 = vpack.c.b16 %v1611, %v1610
    %v1615 = vpack.c.b16 %v1613, %v1612
    %v1619 = vsel %vm48, %v1598, 0
    %1621 = vmatpush.bf16.msra.mxu0 0
    %1622 = vmatpush.bf16.msra.mxu0 0
    %1623 = vmatpush.bf16.msra.mxu0 0
    %1624 = vmatpush.bf16.msra.mxu0 0
    %1625 = vmatpush.bf16.msra.mxu0 0
    %1626 = vmatpush.bf16.msra.mxu0 0
    %1627 = vmatpush.bf16.msra.mxu0 %v1615
    %1628 = vmatpush.bf16.msra.mxu0 %v1614
    %1629 = vmatmul.bf16.gmra.mxu0 %v1619
    %v1630 = vpop.f32.mrf.mxu0
    %v1631 = vadd.f32 %v1605, %v1630
    %v1632 = vpop.f32.mrf.mxu0
    %1633 = vdwg.mxu0
    %v1634 = vsub.f32 %v1103, %v1631
    %v1635 = vadd.f32 %v1104, %v1631
    %v1637 = vsel %vm48, %v1634, 0
    %1639 = vmatpush.msra.mxu0 0.0
    %1640 = vmatpush.msra.mxu0 0.0
    %1641 = vmatpush.msra.mxu0 0.0
    %1642 = vmatpush.msra.mxu0 0.0
    %1643 = vmatpush.msra.mxu0 0.0
    %1644 = vmatpush.msra.mxu0 0.0
    %1645 = vmatpush.msra.mxu0 0.0
    %1646 = vmatpush.msra.mxu0 0.0
    %1647 = vmatpush.msra.mxu0 0.0
    %1648 = vmatpush.msra.mxu0 0.0
    %1649 = vmatpush.msra.mxu0 0.0
    %1650 = vmatpush.msra.mxu0 0.0
    %1651 = vmatpush.msra.mxu0 %v46
    %1652 = vmatpush.msra.mxu0 %v45
    %1653 = vmatpush.msra.mxu0 %v44
    %1654 = vmatpush.msra.mxu0 %v43
    %1655 = vmatmul.f32.gmra.mxu0 %v1637
    %v1656 = vpop.f32.mrf.mxu0
    %v1657 = vadd.f32 0.0, %v1656
    %1658 = vdwg.mxu0
    %v1659 = vmul.f32 %v1634, %v1634
    %v1661 = vsel %vm48, %v1659, 0
    %1663 = vmatpush.msra.mxu0 0.0
    %1664 = vmatpush.msra.mxu0 0.0
    %1665 = vmatpush.msra.mxu0 0.0
    %1666 = vmatpush.msra.mxu0 0.0
    %1667 = vmatpush.msra.mxu0 0.0
    %1668 = vmatpush.msra.mxu0 0.0
    %1669 = vmatpush.msra.mxu0 0.0
    %1670 = vmatpush.msra.mxu0 0.0
    %1671 = vmatpush.msra.mxu0 0.0
    %1672 = vmatpush.msra.mxu0 0.0
    %1673 = vmatpush.msra.mxu0 0.0
    %1674 = vmatpush.msra.mxu0 0.0
    %1675 = vmatpush.msra.mxu0 %v46
    %1676 = vmatpush.msra.mxu0 %v45
    %1677 = vmatpush.msra.mxu0 %v44
    %1678 = vmatpush.msra.mxu0 %v43
    %1679 = vmatmul.f32.gmra.mxu0 %v1661
    %v1680 = vpop.f32.mrf.mxu0
    %v1681 = vadd.f32 0.0, %v1680
    %1682 = vdwg.mxu0
    %v1683 = vsub.f32 %v1634, %v1657
    %v1684 = vmul.f32 %v1657, %v1657
    %v1685 = vsub.f32 %v1681, %v1684
    %v1686 = vadd.f32 %v1685, 1e-05
    %v1687 = vrsqrt.pop %v1686
    %v1688 = vmul.f32 %v1687, %v1686
    %v1689 = vmul.f32 %v1688, %v1687
    %v1690 = vmul.f32 0.5, %v1689
    %v1691 = vsub.f32 1.5, %v1690
    %v1692 = vmul.f32 %v1687, %v1691
    %vm1693 = vweird.f32 %v1686
    %vm1694 = vweird.f32 %v1687
    %vm1695 = vmor %vm1693, %vm1694
    %v1696 = vsel %vm1695, %v1687, %v1692
    %v1697 = vmul.f32 %v1683, %v1696
    %v1698 = vpack.c.bf16 %v1697, %v1697
    %s1699 = scalar_lea.vmem %s2, 96
    %v1700 = vld [vmem:[%s1699] sm:$0xff]
    %v1701 = vld [vmem:[%s1699 + $0x8] sm:$0xff]
    %v1702 = vld [vmem:[%s1699 + $0x10] sm:$0xff]
    %v1703 = vld [vmem:[%s1699 + $0x18] sm:$0xff]
    %s1704 = scalar_lea.vmem %s3, 3
    %v1705 = vld [vmem:[%s1704] ss:$8 sm:$0x3]
    %v1707 = vperm.slane %v1705, 0
    %v1708 = vperm.slane %v1705, 1
    %v1715 = vunpack.c.l.b16 %v1700
    %v1716 = vunpack.c.h.b16 %v1700
    %v1717 = vunpack.c.l.b16 %v1701
    %v1718 = vunpack.c.h.b16 %v1701
    %v1719 = vunpack.c.l.b16 %v1702
    %v1720 = vunpack.c.h.b16 %v1702
    %v1721 = vunpack.c.l.b16 %v1703
    %v1722 = vunpack.c.h.b16 %v1703
    %v1723 = vpack.c.b16 %v1717, %v1715
    %v1724 = vpack.c.b16 %v1718, %v1716
    %v1725 = vpack.c.b16 %v1721, %v1719
    %v1726 = vpack.c.b16 %v1722, %v1720
    %v1732 = vsel %vm48, %v1698, 0
    %1734 = vmatpush.bf16.msra.mxu0 0
    %1735 = vmatpush.bf16.msra.mxu0 0
    %1736 = vmatpush.bf16.msra.mxu0 0
    %1737 = vmatpush.bf16.msra.mxu0 0
    %1738 = vmatpush.bf16.msra.mxu0 0
    %1739 = vmatpush.bf16.msra.mxu0 0
    %1740 = vmatpush.bf16.msra.mxu0 %v1725
    %1741 = vmatpush.bf16.msra.mxu0 %v1723
    %1742 = vmatmul.bf16.gmra.mxu0 %v1732
    %v1743 = vpop.f32.mrf.mxu0
    %v1744 = vadd.f32 %v1707, %v1743
    %v1745 = vpop.f32.mrf.mxu0
    %1746 = vdwg.mxu0
    %1747 = vmatpush.bf16.msra.mxu0 0
    %1748 = vmatpush.bf16.msra.mxu0 0
    %1749 = vmatpush.bf16.msra.mxu0 0
    %1750 = vmatpush.bf16.msra.mxu0 0
    %1751 = vmatpush.bf16.msra.mxu0 0
    %1752 = vmatpush.bf16.msra.mxu0 0
    %1753 = vmatpush.bf16.msra.mxu0 %v1726
    %1754 = vmatpush.bf16.msra.mxu0 %v1724
    %1755 = vmatmul.bf16.gmra.mxu0 %v1732
    %v1756 = vpop.f32.mrf.mxu0
    %v1757 = vadd.f32 %v1708, %v1756
    %v1758 = vpop.f32.mrf.mxu0
    %1759 = vdwg.mxu0
    %v1760 = vmul.f32 %v1744, 0.5
    %v1761 = vmul.f32 %v1757, 0.5
    %v1762 = vmul.f32 %v1744, 0.044715
    %v1763 = vmul.f32 %v1757, 0.044715
    %v1764 = vmul.f32 %v1762, %v1744
    %v1765 = vmul.f32 %v1763, %v1757
    %v1766 = vmul.f32 %v1764, %v1744
    %v1767 = vmul.f32 %v1765, %v1757
    %v1768 = vadd.f32 %v1744, %v1766
    %v1769 = vadd.f32 %v1757, %v1767
    %v1770 = vmul.f32 %v1768, 0.7978846
    %v1771 = vmul.f32 %v1769, 0.7978846
    %v1772 = vtanh.pop %v1770
    %v1773 = vtanh.pop %v1771
    %v1774 = vadd.f32 %v1772, 1.0
    %v1775 = vadd.f32 %v1773, 1.0
    %v1776 = vmul.f32 %v1760, %v1774
    %v1777 = vmul.f32 %v1761, %v1775
    %v1778 = vpack.c.bf16 %v1776, %v1776
    %v1779 = vpack.c.bf16 %v1777, %v1777
    %s1780 = scalar_lea.vmem %s4, 384
    %v1781 = vld [vmem:[%s1780] sm:$0xf]
    %v1782 = vld [vmem:[%s1780 + $0x4] sm:$0xf]
    %v1783 = vld [vmem:[%s1780 + $0x8] sm:$0xf]
    %v1784 = vld [vmem:[%s1780 + $0xc] sm:$0xf]
    %v1785 = vld [vmem:[%s1780 + $0x10] sm:$0xf]
    %v1786 = vld [vmem:[%s1780 + $0x14] sm:$0xf]
    %v1787 = vld [vmem:[%s1780 + $0x18] sm:$0xf]
    %v1788 = vld [vmem:[%s1780 + $0x1c] sm:$0xf]
    %v1789 = vld [vmem:[%s1780 + $0x20] sm:$0xf]
    %v1790 = vld [vmem:[%s1780 + $0x24] sm:$0xf]
    %v1791 = vld [vmem:[%s1780 + $0x28] sm:$0xf]
    %v1792 = vld [vmem:[%s1780 + $0x2c] sm:$0xf]
    %v1793 = vld [vmem:[%s1780 + $0x30] sm:$0xf]
    %v1794 = vld [vmem:[%s1780 + $0x34] sm:$0xf]
    %v1795 = vld [vmem:[%s1780 + $0x38] sm:$0xf]
    %v1796 = vld [vmem:[%s1780 + $0x3c] sm:$0xf]
    %v1797 = vld [vmem:[%s1780 + $0x40] sm:$0xf]
    %v1798 = vld [vmem:[%s1780 + $0x44] sm:$0xf]
    %v1799 = vld [vmem:[%s1780 + $0x48] sm:$0xf]
    %v1800 = vld [vmem:[%s1780 + $0x4c] sm:$0xf]
    %v1801 = vld [vmem:[%s1780 + $0x50] sm:$0xf]
    %v1802 = vld [vmem:[%s1780 + $0x54] sm:$0xf]
    %v1803 = vld [vmem:[%s1780 + $0x58] sm:$0xf]
    %v1804 = vld [vmem:[%s1780 + $0x5c] sm:$0xf]
    %v1805 = vld [vmem:[%s1780 + $0x60] sm:$0xf]
    %v1806 = vld [vmem:[%s1780 + $0x64] sm:$0xf]
    %v1807 = vld [vmem:[%s1780 + $0x68] sm:$0xf]
    %v1808 = vld [vmem:[%s1780 + $0x6c] sm:$0xf]
    %v1809 = vld [vmem:[%s1780 + $0x70] sm:$0xf]
    %v1810 = vld [vmem:[%s1780 + $0x74] sm:$0xf]
    %v1811 = vld [vmem:[%s1780 + $0x78] sm:$0xf]
    %v1812 = vld [vmem:[%s1780 + $0x7c] sm:$0xf]
    %v1845 = vunpack.c.l.b16 %v1781
    %v1846 = vunpack.c.l.b16 %v1782
    %v1847 = vunpack.c.l.b16 %v1783
    %v1848 = vunpack.c.l.b16 %v1784
    %v1849 = vunpack.c.l.b16 %v1785
    %v1850 = vunpack.c.l.b16 %v1786
    %v1851 = vunpack.c.l.b16 %v1787
    %v1852 = vunpack.c.l.b16 %v1788
    %v1853 = vunpack.c.l.b16 %v1789
    %v1854 = vunpack.c.l.b16 %v1790
    %v1855 = vunpack.c.l.b16 %v1791
    %v1856 = vunpack.c.l.b16 %v1792
    %v1857 = vunpack.c.l.b16 %v1793
    %v1858 = vunpack.c.l.b16 %v1794
    %v1859 = vunpack.c.l.b16 %v1795
    %v1860 = vunpack.c.l.b16 %v1796
    %v1861 = vunpack.c.l.b16 %v1797
    %v1862 = vunpack.c.l.b16 %v1798
    %v1863 = vunpack.c.l.b16 %v1799
    %v1864 = vunpack.c.l.b16 %v1800
    %v1865 = vunpack.c.l.b16 %v1801
    %v1866 = vunpack.c.l.b16 %v1802
    %v1867 = vunpack.c.l.b16 %v1803
    %v1868 = vunpack.c.l.b16 %v1804
    %v1869 = vunpack.c.l.b16 %v1805
    %v1870 = vunpack.c.l.b16 %v1806
    %v1871 = vunpack.c.l.b16 %v1807
    %v1872 = vunpack.c.l.b16 %v1808
    %v1873 = vunpack.c.l.b16 %v1809
    %v1874 = vunpack.c.l.b16 %v1810
    %v1875 = vunpack.c.l.b16 %v1811
    %v1876 = vunpack.c.l.b16 %v1812
    %v1877 = vpack.c.b16 %v1846, %v1845
    %v1878 = vpack.c.b16 %v1848, %v1847
    %v1879 = vpack.c.b16 %v1850, %v1849
    %v1880 = vpack.c.b16 %v1852, %v1851
    %v1881 = vpack.c.b16 %v1854, %v1853
    %v1882 = vpack.c.b16 %v1856, %v1855
    %v1883 = vpack.c.b16 %v1858, %v1857
    %v1884 = vpack.c.b16 %v1860, %v1859
    %v1885 = vpack.c.b16 %v1862, %v1861
    %v1886 = vpack.c.b16 %v1864, %v1863
    %v1887 = vpack.c.b16 %v1866, %v1865
    %v1888 = vpack.c.b16 %v1868, %v1867
    %v1889 = vpack.c.b16 %v1870, %v1869
    %v1890 = vpack.c.b16 %v1872, %v1871
    %v1891 = vpack.c.b16 %v1874, %v1873
    %v1892 = vpack.c.b16 %v1876, %v1875
    %1909 = vmatpush.bf16.msra.mxu0 %v1884
    %1910 = vmatpush.bf16.msra.mxu0 %v1883
    %1911 = vmatpush.bf16.msra.mxu0 %v1882
    %1912 = vmatpush.bf16.msra.mxu0 %v1881
    %1913 = vmatpush.bf16.msra.mxu0 %v1880
    %1914 = vmatpush.bf16.msra.mxu0 %v1879
    %1915 = vmatpush.bf16.msra.mxu0 %v1878
    %1916 = vmatpush.bf16.msra.mxu0 %v1877
    %1917 = vmatmul.bf16.gmra.mxu0 %v1778
    %v1918 = vpop.f32.mrf.mxu0
    %v1919 = vadd.f32 0.0, %v1918
    %v1920 = vpop.f32.mrf.mxu0
    %1921 = vdwg.mxu0
    %1922 = vmatpush.bf16.msra.mxu0 %v1892
    %1923 = vmatpush.bf16.msra.mxu0 %v1891
    %1924 = vmatpush.bf16.msra.mxu0 %v1890
    %1925 = vmatpush.bf16.msra.mxu0 %v1889
    %1926 = vmatpush.bf16.msra.mxu0 %v1888
    %1927 = vmatpush.bf16.msra.mxu0 %v1887
    %1928 = vmatpush.bf16.msra.mxu0 %v1886
    %1929 = vmatpush.bf16.msra.mxu0 %v1885
    %1930 = vmatmul.bf16.gmra.mxu0 %v1779
    %v1931 = vpop.f32.mrf.mxu0
    %v1932 = vadd.f32 %v1919, %v1931
    %v1933 = vpop.f32.mrf.mxu0
    %1934 = vdwg.mxu0
    %v1935 = vadd.f32 %v1634, %v1932
    %v1936 = vld [vmem:[%s5 + $0x3] sm:$0x1]
    %v1937 = vperm.slane %v1936, 0
    %v1938 = vadd.f32 %v1935, %v1937
    %v1940 = vsel %vm48, %v1938, 0
    %1942 = vmatpush.msra.mxu0 0.0
    %1943 = vmatpush.msra.mxu0 0.0
    %1944 = vmatpush.msra.mxu0 0.0
    %1945 = vmatpush.msra.mxu0 0.0
    %1946 = vmatpush.msra.mxu0 0.0
    %1947 = vmatpush.msra.mxu0 0.0
    %1948 = vmatpush.msra.mxu0 0.0
    %1949 = vmatpush.msra.mxu0 0.0
    %1950 = vmatpush.msra.mxu0 0.0
    %1951 = vmatpush.msra.mxu0 0.0
    %1952 = vmatpush.msra.mxu0 0.0
    %1953 = vmatpush.msra.mxu0 0.0
    %1954 = vmatpush.msra.mxu0 %v46
    %1955 = vmatpush.msra.mxu0 %v45
    %1956 = vmatpush.msra.mxu0 %v44
    %1957 = vmatpush.msra.mxu0 %v43
    %1958 = vmatmul.f32.gmra.mxu0 %v1940
    %v1959 = vpop.f32.mrf.mxu0
    %v1960 = vadd.f32 0.0, %v1959
    %1961 = vdwg.mxu0
    %v1962 = vmul.f32 %v1938, %v1938
    %v1964 = vsel %vm48, %v1962, 0
    %1966 = vmatpush.msra.mxu0 0.0
    %1967 = vmatpush.msra.mxu0 0.0
    %1968 = vmatpush.msra.mxu0 0.0
    %1969 = vmatpush.msra.mxu0 0.0
    %1970 = vmatpush.msra.mxu0 0.0
    %1971 = vmatpush.msra.mxu0 0.0
    %1972 = vmatpush.msra.mxu0 0.0
    %1973 = vmatpush.msra.mxu0 0.0
    %1974 = vmatpush.msra.mxu0 0.0
    %1975 = vmatpush.msra.mxu0 0.0
    %1976 = vmatpush.msra.mxu0 0.0
    %1977 = vmatpush.msra.mxu0 0.0
    %1978 = vmatpush.msra.mxu0 %v46
    %1979 = vmatpush.msra.mxu0 %v45
    %1980 = vmatpush.msra.mxu0 %v44
    %1981 = vmatpush.msra.mxu0 %v43
    %1982 = vmatmul.f32.gmra.mxu0 %v1964
    %v1983 = vpop.f32.mrf.mxu0
    %v1984 = vadd.f32 0.0, %v1983
    %1985 = vdwg.mxu0
    %v1986 = vsub.f32 %v1938, %v1960
    %v1987 = vmul.f32 %v1960, %v1960
    %v1988 = vsub.f32 %v1984, %v1987
    %v1989 = vadd.f32 %v1988, 1e-05
    %v1990 = vrsqrt.pop %v1989
    %v1991 = vmul.f32 %v1990, %v1989
    %v1992 = vmul.f32 %v1991, %v1990
    %v1993 = vmul.f32 0.5, %v1992
    %v1994 = vsub.f32 1.5, %v1993
    %v1995 = vmul.f32 %v1990, %v1994
    %vm1996 = vweird.f32 %v1989
    %vm1997 = vweird.f32 %v1990
    %vm1998 = vmor %vm1996, %vm1997
    %v1999 = vsel %vm1998, %v1990, %v1995
    %v2000 = vmul.f32 %v1986, %v1999
    %v2001 = vpack.c.bf16 %v2000, %v2000
    %s2002 = scalar_lea.vmem %s6, 48
    %v2003 = vld [vmem:[%s2002] sm:$0xf]
    %v2004 = vld [vmem:[%s2002 + $0x4] sm:$0xf]
    %v2005 = vld [vmem:[%s2002 + $0x8] sm:$0xf]
    %v2006 = vld [vmem:[%s2002 + $0xc] sm:$0xf]
    %v2007 = vld [vmem:[%s7 + $0x3] sm:$0x1]
    %v2008 = vperm.slane %v2007, 0
    %v2013 = vunpack.c.l.b16 %v2003
    %v2014 = vunpack.c.l.b16 %v2004
    %v2015 = vunpack.c.l.b16 %v2005
    %v2016 = vunpack.c.l.b16 %v2006
    %v2017 = vpack.c.b16 %v2014, %v2013
    %v2018 = vpack.c.b16 %v2016, %v2015
    %v2022 = vsel %vm48, %v2001, 0
    %2024 = vmatpush.bf16.msra.mxu0 0
    %2025 = vmatpush.bf16.msra.mxu0 0
    %2026 = vmatpush.bf16.msra.mxu0 0
    %2027 = vmatpush.bf16.msra.mxu0 0
    %2028 = vmatpush.bf16.msra.mxu0 0
    %2029 = vmatpush.bf16.msra.mxu0 0
    %2030 = vmatpush.bf16.msra.mxu0 %v2018
    %2031 = vmatpush.bf16.msra.mxu0 %v2017
    %2032 = vmatmul.bf16.gmra.mxu0 %v2022
    %v2033 = vpop.f32.mrf.mxu0
    %v2034 = vadd.f32 %v2008, %v2033
    %v2035 = vpop.f32.mrf.mxu0
    %2036 = vdwg.mxu0
    %v2037 = vmul.f32 %v2034, 0.5
    %v2038 = vmul.f32 %v2034, 0.044715
    %v2039 = vmul.f32 %v2038, %v2034
    %v2040 = vmul.f32 %v2039, %v2034
    %v2041 = vadd.f32 %v2034, %v2040
    %v2042 = vmul.f32 %v2041, 0.7978846
    %v2043 = vtanh.pop %v2042
    %v2044 = vadd.f32 %v2043, 1.0
    %v2045 = vmul.f32 %v2037, %v2044
    %v2046 = vpack.c.bf16 %v2045, %v2045
    %s2047 = scalar_lea.vmem %s8, 192
    %v2048 = vld [vmem:[%s2047] sm:$0xf]
    %v2049 = vld [vmem:[%s2047 + $0x4] sm:$0xf]
    %v2050 = vld [vmem:[%s2047 + $0x8] sm:$0xf]
    %v2051 = vld [vmem:[%s2047 + $0xc] sm:$0xf]
    %v2052 = vld [vmem:[%s2047 + $0x10] sm:$0xf]
    %v2053 = vld [vmem:[%s2047 + $0x14] sm:$0xf]
    %v2054 = vld [vmem:[%s2047 + $0x18] sm:$0xf]
    %v2055 = vld [vmem:[%s2047 + $0x1c] sm:$0xf]
    %v2056 = vld [vmem:[%s2047 + $0x20] sm:$0xf]
    %v2057 = vld [vmem:[%s2047 + $0x24] sm:$0xf]
    %v2058 = vld [vmem:[%s2047 + $0x28] sm:$0xf]
    %v2059 = vld [vmem:[%s2047 + $0x2c] sm:$0xf]
    %v2060 = vld [vmem:[%s2047 + $0x30] sm:$0xf]
    %v2061 = vld [vmem:[%s2047 + $0x34] sm:$0xf]
    %v2062 = vld [vmem:[%s2047 + $0x38] sm:$0xf]
    %v2063 = vld [vmem:[%s2047 + $0x3c] sm:$0xf]
    %v2080 = vunpack.c.l.b16 %v2048
    %v2081 = vunpack.c.l.b16 %v2049
    %v2082 = vunpack.c.l.b16 %v2050
    %v2083 = vunpack.c.l.b16 %v2051
    %v2084 = vunpack.c.l.b16 %v2052
    %v2085 = vunpack.c.l.b16 %v2053
    %v2086 = vunpack.c.l.b16 %v2054
    %v2087 = vunpack.c.l.b16 %v2055
    %v2088 = vunpack.c.l.b16 %v2056
    %v2089 = vunpack.c.l.b16 %v2057
    %v2090 = vunpack.c.l.b16 %v2058
    %v2091 = vunpack.c.l.b16 %v2059
    %v2092 = vunpack.c.l.b16 %v2060
    %v2093 = vunpack.c.l.b16 %v2061
    %v2094 = vunpack.c.l.b16 %v2062
    %v2095 = vunpack.c.l.b16 %v2063
    %v2096 = vpack.c.b16 %v2081, %v2080
    %v2097 = vpack.c.b16 %v2083, %v2082
    %v2098 = vpack.c.b16 %v2085, %v2084
    %v2099 = vpack.c.b16 %v2087, %v2086
    %v2100 = vpack.c.b16 %v2089, %v2088
    %v2101 = vpack.c.b16 %v2091, %v2090
    %v2102 = vpack.c.b16 %v2093, %v2092
    %v2103 = vpack.c.b16 %v2095, %v2094
    %2112 = vmatpush.bf16.msra.mxu0 %v2103
    %2113 = vmatpush.bf16.msra.mxu0 %v2102
    %2114 = vmatpush.bf16.msra.mxu0 %v2101
    %2115 = vmatpush.bf16.msra.mxu0 %v2100
    %2116 = vmatpush.bf16.msra.mxu0 %v2099
    %2117 = vmatpush.bf16.msra.mxu0 %v2098
    %2118 = vmatpush.bf16.msra.mxu0 %v2097
    %2119 = vmatpush.bf16.msra.mxu0 %v2096
    %2120 = vmatmul.bf16.gmra.mxu0 %v2046
    %v2121 = vpop.f32.mrf.mxu0
    %v2122 = vadd.f32 0.0, %v2121
    %v2123 = vpop.f32.mrf.mxu0
    %2124 = vdwg.mxu0
    %v2125 = vadd.f32 %v1938, %v2122
    %v2126 = vld [vmem:[%s9 + $0x3] sm:$0x1]
    %v2127 = vperm.slane %v2126, 0
    %v2128 = vadd.f32 %v2125, %v2127
    %v2129 = vpack.c.bf16 %v2128, %v2128
    %s2130 = scalar_lea.vmem %s10, 48
    %v2131 = vld [vmem:[%s2130] sm:$0xf]
    %v2132 = vld [vmem:[%s2130 + $0x4] sm:$0xf]
    %v2133 = vld [vmem:[%s2130 + $0x8] sm:$0xf]
    %v2134 = vld [vmem:[%s2130 + $0xc] sm:$0xf]
    %v2135 = vld [vmem:[%s11 + $0x3] sm:$0x1]
    %v2136 = vperm.slane %v2135, 0
    %v2141 = vunpack.c.l.b16 %v2131
    %v2142 = vunpack.c.l.b16 %v2132
    %v2143 = vunpack.c.l.b16 %v2133
    %v2144 = vunpack.c.l.b16 %v2134
    %v2145 = vpack.c.b16 %v2142, %v2141
    %v2146 = vpack.c.b16 %v2144, %v2143
    %v2150 = vsel %vm48, %v2129, 0
    %2152 = vmatpush.bf16.msra.mxu0 0
    %2153 = vmatpush.bf16.msra.mxu0 0
    %2154 = vmatpush.bf16.msra.mxu0 0
    %2155 = vmatpush.bf16.msra.mxu0 0
    %2156 = vmatpush.bf16.msra.mxu0 0
    %2157 = vmatpush.bf16.msra.mxu0 0
    %2158 = vmatpush.bf16.msra.mxu0 %v2146
    %2159 = vmatpush.bf16.msra.mxu0 %v2145
    %2160 = vmatmul.bf16.gmra.mxu0 %v2150
    %v2161 = vpop.f32.mrf.mxu0
    %v2162 = vadd.f32 %v2136, %v2161
    %v2163 = vpop.f32.mrf.mxu0
    %2164 = vdwg.mxu0
    %v2165 = vsub.f32 %v1634, %v2162
    %v2166 = vadd.f32 %v1635, %v2162
    %v2168 = vsel %vm48, %v2165, 0
    %2170 = vmatpush.msra.mxu0 0.0
    %2171 = vmatpush.msra.mxu0 0.0
    %2172 = vmatpush.msra.mxu0 0.0
    %2173 = vmatpush.msra.mxu0 0.0
    %2174 = vmatpush.msra.mxu0 0.0
    %2175 = vmatpush.msra.mxu0 0.0
    %2176 = vmatpush.msra.mxu0 0.0
    %2177 = vmatpush.msra.mxu0 0.0
    %2178 = vmatpush.msra.mxu0 0.0
    %2179 = vmatpush.msra.mxu0 0.0
    %2180 = vmatpush.msra.mxu0 0.0
    %2181 = vmatpush.msra.mxu0 0.0
    %2182 = vmatpush.msra.mxu0 %v46
    %2183 = vmatpush.msra.mxu0 %v45
    %2184 = vmatpush.msra.mxu0 %v44
    %2185 = vmatpush.msra.mxu0 %v43
    %2186 = vmatmul.f32.gmra.mxu0 %v2168
    %v2187 = vpop.f32.mrf.mxu0
    %v2188 = vadd.f32 0.0, %v2187
    %2189 = vdwg.mxu0
    %v2190 = vmul.f32 %v2165, %v2165
    %v2192 = vsel %vm48, %v2190, 0
    %2194 = vmatpush.msra.mxu0 0.0
    %2195 = vmatpush.msra.mxu0 0.0
    %2196 = vmatpush.msra.mxu0 0.0
    %2197 = vmatpush.msra.mxu0 0.0
    %2198 = vmatpush.msra.mxu0 0.0
    %2199 = vmatpush.msra.mxu0 0.0
    %2200 = vmatpush.msra.mxu0 0.0
    %2201 = vmatpush.msra.mxu0 0.0
    %2202 = vmatpush.msra.mxu0 0.0
    %2203 = vmatpush.msra.mxu0 0.0
    %2204 = vmatpush.msra.mxu0 0.0
    %2205 = vmatpush.msra.mxu0 0.0
    %2206 = vmatpush.msra.mxu0 %v46
    %2207 = vmatpush.msra.mxu0 %v45
    %2208 = vmatpush.msra.mxu0 %v44
    %2209 = vmatpush.msra.mxu0 %v43
    %2210 = vmatmul.f32.gmra.mxu0 %v2192
    %v2211 = vpop.f32.mrf.mxu0
    %v2212 = vadd.f32 0.0, %v2211
    %2213 = vdwg.mxu0
    %v2214 = vsub.f32 %v2165, %v2188
    %v2215 = vmul.f32 %v2188, %v2188
    %v2216 = vsub.f32 %v2212, %v2215
    %v2217 = vadd.f32 %v2216, 1e-05
    %v2218 = vrsqrt.pop %v2217
    %v2219 = vmul.f32 %v2218, %v2217
    %v2220 = vmul.f32 %v2219, %v2218
    %v2221 = vmul.f32 0.5, %v2220
    %v2222 = vsub.f32 1.5, %v2221
    %v2223 = vmul.f32 %v2218, %v2222
    %vm2224 = vweird.f32 %v2217
    %vm2225 = vweird.f32 %v2218
    %vm2226 = vmor %vm2224, %vm2225
    %v2227 = vsel %vm2226, %v2218, %v2223
    %v2228 = vmul.f32 %v2214, %v2227
    %v2229 = vpack.c.bf16 %v2228, %v2228
    %s2230 = scalar_lea.vmem %s2, 128
    %v2231 = vld [vmem:[%s2230] sm:$0xff]
    %v2232 = vld [vmem:[%s2230 + $0x8] sm:$0xff]
    %v2233 = vld [vmem:[%s2230 + $0x10] sm:$0xff]
    %v2234 = vld [vmem:[%s2230 + $0x18] sm:$0xff]
    %s2235 = scalar_lea.vmem %s3, 4
    %v2236 = vld [vmem:[%s2235] ss:$8 sm:$0x3]
    %v2238 = vperm.slane %v2236, 0
    %v2239 = vperm.slane %v2236, 1
    %v2246 = vunpack.c.l.b16 %v2231
    %v2247 = vunpack.c.h.b16 %v2231
    %v2248 = vunpack.c.l.b16 %v2232
    %v2249 = vunpack.c.h.b16 %v2232
    %v2250 = vunpack.c.l.b16 %v2233
    %v2251 = vunpack.c.h.b16 %v2233
    %v2252 = vunpack.c.l.b16 %v2234
    %v2253 = vunpack.c.h.b16 %v2234
    %v2254 = vpack.c.b16 %v2248, %v2246
    %v2255 = vpack.c.b16 %v2249, %v2247
    %v2256 = vpack.c.b16 %v2252, %v2250
    %v2257 = vpack.c.b16 %v2253, %v2251
    %v2263 = vsel %vm48, %v2229, 0
    %2265 = vmatpush.bf16.msra.mxu0 0
    %2266 = vmatpush.bf16.msra.mxu0 0
    %2267 = vmatpush.bf16.msra.mxu0 0
    %2268 = vmatpush.bf16.msra.mxu0 0
    %2269 = vmatpush.bf16.msra.mxu0 0
    %2270 = vmatpush.bf16.msra.mxu0 0
    %2271 = vmatpush.bf16.msra.mxu0 %v2256
    %2272 = vmatpush.bf16.msra.mxu0 %v2254
    %2273 = vmatmul.bf16.gmra.mxu0 %v2263
    %v2274 = vpop.f32.mrf.mxu0
    %v2275 = vadd.f32 %v2238, %v2274
    %v2276 = vpop.f32.mrf.mxu0
    %2277 = vdwg.mxu0
    %2278 = vmatpush.bf16.msra.mxu0 0
    %2279 = vmatpush.bf16.msra.mxu0 0
    %2280 = vmatpush.bf16.msra.mxu0 0
    %2281 = vmatpush.bf16.msra.mxu0 0
    %2282 = vmatpush.bf16.msra.mxu0 0
    %2283 = vmatpush.bf16.msra.mxu0 0
    %2284 = vmatpush.bf16.msra.mxu0 %v2257
    %2285 = vmatpush.bf16.msra.mxu0 %v2255
    %2286 = vmatmul.bf16.gmra.mxu0 %v2263
    %v2287 = vpop.f32.mrf.mxu0
    %v2288 = vadd.f32 %v2239, %v2287
    %v2289 = vpop.f32.mrf.mxu0
    %2290 = vdwg.mxu0
    %v2291 = vmul.f32 %v2275, 0.5
    %v2292 = vmul.f32 %v2288, 0.5
    %v2293 = vmul.f32 %v2275, 0.044715
    %v2294 = vmul.f32 %v2288, 0.044715
    %v2295 = vmul.f32 %v2293, %v2275
    %v2296 = vmul.f32 %v2294, %v2288
    %v2297 = vmul.f32 %v2295, %v2275
    %v2298 = vmul.f32 %v2296, %v2288
    %v2299 = vadd.f32 %v2275, %v2297
    %v2300 = vadd.f32 %v2288, %v2298
    %v2301 = vmul.f32 %v2299, 0.7978846
    %v2302 = vmul.f32 %v2300, 0.7978846
    %v2303 = vtanh.pop %v2301
    %v2304 = vtanh.pop %v2302
    %v2305 = vadd.f32 %v2303, 1.0
    %v2306 = vadd.f32 %v2304, 1.0
    %v2307 = vmul.f32 %v2291, %v2305
    %v2308 = vmul.f32 %v2292, %v2306
    %v2309 = vpack.c.bf16 %v2307, %v2307
    %v2310 = vpack.c.bf16 %v2308, %v2308
    %s2311 = scalar_lea.vmem %s4, 512
    %v2312 = vld [vmem:[%s2311] sm:$0xf]
    %v2313 = vld [vmem:[%s2311 + $0x4] sm:$0xf]
    %v2314 = vld [vmem:[%s2311 + $0x8] sm:$0xf]
    %v2315 = vld [vmem:[%s2311 + $0xc] sm:$0xf]
    %v2316 = vld [vmem:[%s2311 + $0x10] sm:$0xf]
    %v2317 = vld [vmem:[%s2311 + $0x14] sm:$0xf]
    %v2318 = vld [vmem:[%s2311 + $0x18] sm:$0xf]
    %v2319 = vld [vmem:[%s2311 + $0x1c] sm:$0xf]
    %v2320 = vld [vmem:[%s2311 + $0x20] sm:$0xf]
    %v2321 = vld [vmem:[%s2311 + $0x24] sm:$0xf]
    %v2322 = vld [vmem:[%s2311 + $0x28] sm:$0xf]
    %v2323 = vld [vmem:[%s2311 + $0x2c] sm:$0xf]
    %v2324 = vld [vmem:[%s2311 + $0x30] sm:$0xf]
    %v2325 = vld [vmem:[%s2311 + $0x34] sm:$0xf]
    %v2326 = vld [vmem:[%s2311 + $0x38] sm:$0xf]
    %v2327 = vld [vmem:[%s2311 + $0x3c] sm:$0xf]
    %v2328 = vld [vmem:[%s2311 + $0x40] sm:$0xf]
    %v2329 = vld [vmem:[%s2311 + $0x44] sm:$0xf]
    %v2330 = vld [vmem:[%s2311 + $0x48] sm:$0xf]
    %v2331 = vld [vmem:[%s2311 + $0x4c] sm:$0xf]
    %v2332 = vld [vmem:[%s2311 + $0x50] sm:$0xf]
    %v2333 = vld [vmem:[%s2311 + $0x54] sm:$0xf]
    %v2334 = vld [vmem:[%s2311 + $0x58] sm:$0xf]
    %v2335 = vld [vmem:[%s2311 + $0x5c] sm:$0xf]
    %v2336 = vld [vmem:[%s2311 + $0x60] sm:$0xf]
    %v2337 = vld [vmem:[%s2311 + $0x64] sm:$0xf]
    %v2338 = vld [vmem:[%s2311 + $0x68] sm:$0xf]
    %v2339 = vld [vmem:[%s2311 + $0x6c] sm:$0xf]
    %v2340 = vld [vmem:[%s2311 + $0x70] sm:$0xf]
    %v2341 = vld [vmem:[%s2311 + $0x74] sm:$0xf]
    %v2342 = vld [vmem:[%s2311 + $0x78] sm:$0xf]
    %v2343 = vld [vmem:[%s2311 + $0x7c] sm:$0xf]
    %v2376 = vunpack.c.l.b16 %v2312
    %v2377 = vunpack.c.l.b16 %v2313
    %v2378 = vunpack.c.l.b16 %v2314
    %v2379 = vunpack.c.l.b16 %v2315
    %v2380 = vunpack.c.l.b16 %v2316
    %v2381 = vunpack.c.l.b16 %v2317
    %v2382 = vunpack.c.l.b16 %v2318
    %v2383 = vunpack.c.l.b16 %v2319
    %v2384 = vunpack.c.l.b16 %v2320
    %v2385 = vunpack.c.l.b16 %v2321
    %v2386 = vunpack.c.l.b16 %v2322
    %v2387 = vunpack.c.l.b16 %v2323
    %v2388 = vunpack.c.l.b16 %v2324
    %v2389 = vunpack.c.l.b16 %v2325
    %v2390 = vunpack.c.l.b16 %v2326
    %v2391 = vunpack.c.l.b16 %v2327
    %v2392 = vunpack.c.l.b16 %v2328
    %v2393 = vunpack.c.l.b16 %v2329
    %v2394 = vunpack.c.l.b16 %v2330
    %v2395 = vunpack.c.l.b16 %v2331
    %v2396 = vunpack.c.l.b16 %v2332
    %v2397 = vunpack.c.l.b16 %v2333
    %v2398 = vunpack.c.l.b16 %v2334
    %v2399 = vunpack.c.l.b16 %v2335
    %v2400 = vunpack.c.l.b16 %v2336
    %v2401 = vunpack.c.l.b16 %v2337
    %v2402 = vunpack.c.l.b16 %v2338
    %v2403 = vunpack.c.l.b16 %v2339
    %v2404 = vunpack.c.l.b16 %v2340
    %v2405 = vunpack.c.l.b16 %v2341
    %v2406 = vunpack.c.l.b16 %v2342
    %v2407 = vunpack.c.l.b16 %v2343
    %v2408 = vpack.c.b16 %v2377, %v2376
    %v2409 = vpack.c.b16 %v2379, %v2378
    %v2410 = vpack.c.b16 %v2381, %v2380
    %v2411 = vpack.c.b16 %v2383, %v2382
    %v2412 = vpack.c.b16 %v2385, %v2384
    %v2413 = vpack.c.b16 %v2387, %v2386
    %v2414 = vpack.c.b16 %v2389, %v2388
    %v2415 = vpack.c.b16 %v2391, %v2390
    %v2416 = vpack.c.b16 %v2393, %v2392
    %v2417 = vpack.c.b16 %v2395, %v2394
    %v2418 = vpack.c.b16 %v2397, %v2396
    %v2419 = vpack.c.b16 %v2399, %v2398
    %v2420 = vpack.c.b16 %v2401, %v2400
    %v2421 = vpack.c.b16 %v2403, %v2402
    %v2422 = vpack.c.b16 %v2405, %v2404
    %v2423 = vpack.c.b16 %v2407, %v2406
    %2440 = vmatpush.bf16.msra.mxu0 %v2415
    %2441 = vmatpush.bf16.msra.mxu0 %v2414
    %2442 = vmatpush.bf16.msra.mxu0 %v2413
    %2443 = vmatpush.bf16.msra.mxu0 %v2412
    %2444 = vmatpush.bf16.msra.mxu0 %v2411
    %2445 = vmatpush.bf16.msra.mxu0 %v2410
    %2446 = vmatpush.bf16.msra.mxu0 %v2409
    %2447 = vmatpush.bf16.msra.mxu0 %v2408
    %2448 = vmatmul.bf16.gmra.mxu0 %v2309
    %v2449 = vpop.f32.mrf.mxu0
    %v2450 = vadd.f32 0.0, %v2449
    %v2451 = vpop.f32.mrf.mxu0
    %2452 = vdwg.mxu0
    %2453 = vmatpush.bf16.msra.mxu0 %v2423
    %2454 = vmatpush.bf16.msra.mxu0 %v2422
    %2455 = vmatpush.bf16.msra.mxu0 %v2421
    %2456 = vmatpush.bf16.msra.mxu0 %v2420
    %2457 = vmatpush.bf16.msra.mxu0 %v2419
    %2458 = vmatpush.bf16.msra.mxu0 %v2418
    %2459 = vmatpush.bf16.msra.mxu0 %v2417
    %2460 = vmatpush.bf16.msra.mxu0 %v2416
    %2461 = vmatmul.bf16.gmra.mxu0 %v2310
    %v2462 = vpop.f32.mrf.mxu0
    %v2463 = vadd.f32 %v2450, %v2462
    %v2464 = vpop.f32.mrf.mxu0
    %2465 = vdwg.mxu0
    %v2466 = vadd.f32 %v2165, %v2463
    %v2467 = vld [vmem:[%s5 + $0x4] sm:$0x1]
    %v2468 = vperm.slane %v2467, 0
    %v2469 = vadd.f32 %v2466, %v2468
    %v2471 = vsel %vm48, %v2469, 0
    %2473 = vmatpush.msra.mxu0 0.0
    %2474 = vmatpush.msra.mxu0 0.0
    %2475 = vmatpush.msra.mxu0 0.0
    %2476 = vmatpush.msra.mxu0 0.0
    %2477 = vmatpush.msra.mxu0 0.0
    %2478 = vmatpush.msra.mxu0 0.0
    %2479 = vmatpush.msra.mxu0 0.0
    %2480 = vmatpush.msra.mxu0 0.0
    %2481 = vmatpush.msra.mxu0 0.0
    %2482 = vmatpush.msra.mxu0 0.0
    %2483 = vmatpush.msra.mxu0 0.0
    %2484 = vmatpush.msra.mxu0 0.0
    %2485 = vmatpush.msra.mxu0 %v46
    %2486 = vmatpush.msra.mxu0 %v45
    %2487 = vmatpush.msra.mxu0 %v44
    %2488 = vmatpush.msra.mxu0 %v43
    %2489 = vmatmul.f32.gmra.mxu0 %v2471
    %v2490 = vpop.f32.mrf.mxu0
    %v2491 = vadd.f32 0.0, %v2490
    %2492 = vdwg.mxu0
    %v2493 = vmul.f32 %v2469, %v2469
    %v2495 = vsel %vm48, %v2493, 0
    %2497 = vmatpush.msra.mxu0 0.0
    %2498 = vmatpush.msra.mxu0 0.0
    %2499 = vmatpush.msra.mxu0 0.0
    %2500 = vmatpush.msra.mxu0 0.0
    %2501 = vmatpush.msra.mxu0 0.0
    %2502 = vmatpush.msra.mxu0 0.0
    %2503 = vmatpush.msra.mxu0 0.0
    %2504 = vmatpush.msra.mxu0 0.0
    %2505 = vmatpush.msra.mxu0 0.0
    %2506 = vmatpush.msra.mxu0 0.0
    %2507 = vmatpush.msra.mxu0 0.0
    %2508 = vmatpush.msra.mxu0 0.0
    %2509 = vmatpush.msra.mxu0 %v46
    %2510 = vmatpush.msra.mxu0 %v45
    %2511 = vmatpush.msra.mxu0 %v44
    %2512 = vmatpush.msra.mxu0 %v43
    %2513 = vmatmul.f32.gmra.mxu0 %v2495
    %v2514 = vpop.f32.mrf.mxu0
    %v2515 = vadd.f32 0.0, %v2514
    %2516 = vdwg.mxu0
    %v2517 = vsub.f32 %v2469, %v2491
    %v2518 = vmul.f32 %v2491, %v2491
    %v2519 = vsub.f32 %v2515, %v2518
    %v2520 = vadd.f32 %v2519, 1e-05
    %v2521 = vrsqrt.pop %v2520
    %v2522 = vmul.f32 %v2521, %v2520
    %v2523 = vmul.f32 %v2522, %v2521
    %v2524 = vmul.f32 0.5, %v2523
    %v2525 = vsub.f32 1.5, %v2524
    %v2526 = vmul.f32 %v2521, %v2525
    %vm2527 = vweird.f32 %v2520
    %vm2528 = vweird.f32 %v2521
    %vm2529 = vmor %vm2527, %vm2528
    %v2530 = vsel %vm2529, %v2521, %v2526
    %v2531 = vmul.f32 %v2517, %v2530
    %v2532 = vpack.c.bf16 %v2531, %v2531
    %s2533 = scalar_lea.vmem %s6, 64
    %v2534 = vld [vmem:[%s2533] sm:$0xf]
    %v2535 = vld [vmem:[%s2533 + $0x4] sm:$0xf]
    %v2536 = vld [vmem:[%s2533 + $0x8] sm:$0xf]
    %v2537 = vld [vmem:[%s2533 + $0xc] sm:$0xf]
    %v2538 = vld [vmem:[%s7 + $0x4] sm:$0x1]
    %v2539 = vperm.slane %v2538, 0
    %v2544 = vunpack.c.l.b16 %v2534
    %v2545 = vunpack.c.l.b16 %v2535
    %v2546 = vunpack.c.l.b16 %v2536
    %v2547 = vunpack.c.l.b16 %v2537
    %v2548 = vpack.c.b16 %v2545, %v2544
    %v2549 = vpack.c.b16 %v2547, %v2546
    %v2553 = vsel %vm48, %v2532, 0
    %2555 = vmatpush.bf16.msra.mxu0 0
    %2556 = vmatpush.bf16.msra.mxu0 0
    %2557 = vmatpush.bf16.msra.mxu0 0
    %2558 = vmatpush.bf16.msra.mxu0 0
    %2559 = vmatpush.bf16.msra.mxu0 0
    %2560 = vmatpush.bf16.msra.mxu0 0
    %2561 = vmatpush.bf16.msra.mxu0 %v2549
    %2562 = vmatpush.bf16.msra.mxu0 %v2548
    %2563 = vmatmul.bf16.gmra.mxu0 %v2553
    %v2564 = vpop.f32.mrf.mxu0
    %v2565 = vadd.f32 %v2539, %v2564
    %v2566 = vpop.f32.mrf.mxu0
    %2567 = vdwg.mxu0
    %v2568 = vmul.f32 %v2565, 0.5
    %v2569 = vmul.f32 %v2565, 0.044715
    %v2570 = vmul.f32 %v2569, %v2565
    %v2571 = vmul.f32 %v2570, %v2565
    %v2572 = vadd.f32 %v2565, %v2571
    %v2573 = vmul.f32 %v2572, 0.7978846
    %v2574 = vtanh.pop %v2573
    %v2575 = vadd.f32 %v2574, 1.0
    %v2576 = vmul.f32 %v2568, %v2575
    %v2577 = vpack.c.bf16 %v2576, %v2576
    %s2578 = scalar_lea.vmem %s8, 256
    %v2579 = vld [vmem:[%s2578] sm:$0xf]
    %v2580 = vld [vmem:[%s2578 + $0x4] sm:$0xf]
    %v2581 = vld [vmem:[%s2578 + $0x8] sm:$0xf]
    %v2582 = vld [vmem:[%s2578 + $0xc] sm:$0xf]
    %v2583 = vld [vmem:[%s2578 + $0x10] sm:$0xf]
    %v2584 = vld [vmem:[%s2578 + $0x14] sm:$0xf]
    %v2585 = vld [vmem:[%s2578 + $0x18] sm:$0xf]
    %v2586 = vld [vmem:[%s2578 + $0x1c] sm:$0xf]
    %v2587 = vld [vmem:[%s2578 + $0x20] sm:$0xf]
    %v2588 = vld [vmem:[%s2578 + $0x24] sm:$0xf]
    %v2589 = vld [vmem:[%s2578 + $0x28] sm:$0xf]
    %v2590 = vld [vmem:[%s2578 + $0x2c] sm:$0xf]
    %v2591 = vld [vmem:[%s2578 + $0x30] sm:$0xf]
    %v2592 = vld [vmem:[%s2578 + $0x34] sm:$0xf]
    %v2593 = vld [vmem:[%s2578 + $0x38] sm:$0xf]
    %v2594 = vld [vmem:[%s2578 + $0x3c] sm:$0xf]
    %v2611 = vunpack.c.l.b16 %v2579
    %v2612 = vunpack.c.l.b16 %v2580
    %v2613 = vunpack.c.l.b16 %v2581
    %v2614 = vunpack.c.l.b16 %v2582
    %v2615 = vunpack.c.l.b16 %v2583
    %v2616 = vunpack.c.l.b16 %v2584
    %v2617 = vunpack.c.l.b16 %v2585
    %v2618 = vunpack.c.l.b16 %v2586
    %v2619 = vunpack.c.l.b16 %v2587
    %v2620 = vunpack.c.l.b16 %v2588
    %v2621 = vunpack.c.l.b16 %v2589
    %v2622 = vunpack.c.l.b16 %v2590
    %v2623 = vunpack.c.l.b16 %v2591
    %v2624 = vunpack.c.l.b16 %v2592
    %v2625 = vunpack.c.l.b16 %v2593
    %v2626 = vunpack.c.l.b16 %v2594
    %v2627 = vpack.c.b16 %v2612, %v2611
    %v2628 = vpack.c.b16 %v2614, %v2613
    %v2629 = vpack.c.b16 %v2616, %v2615
    %v2630 = vpack.c.b16 %v2618, %v2617
    %v2631 = vpack.c.b16 %v2620, %v2619
    %v2632 = vpack.c.b16 %v2622, %v2621
    %v2633 = vpack.c.b16 %v2624, %v2623
    %v2634 = vpack.c.b16 %v2626, %v2625
    %2643 = vmatpush.bf16.msra.mxu0 %v2634
    %2644 = vmatpush.bf16.msra.mxu0 %v2633
    %2645 = vmatpush.bf16.msra.mxu0 %v2632
    %2646 = vmatpush.bf16.msra.mxu0 %v2631
    %2647 = vmatpush.bf16.msra.mxu0 %v2630
    %2648 = vmatpush.bf16.msra.mxu0 %v2629
    %2649 = vmatpush.bf16.msra.mxu0 %v2628
    %2650 = vmatpush.bf16.msra.mxu0 %v2627
    %2651 = vmatmul.bf16.gmra.mxu0 %v2577
    %v2652 = vpop.f32.mrf.mxu0
    %v2653 = vadd.f32 0.0, %v2652
    %v2654 = vpop.f32.mrf.mxu0
    %2655 = vdwg.mxu0
    %v2656 = vadd.f32 %v2469, %v2653
    %v2657 = vld [vmem:[%s9 + $0x4] sm:$0x1]
    %v2658 = vperm.slane %v2657, 0
    %v2659 = vadd.f32 %v2656, %v2658
    %v2660 = vpack.c.bf16 %v2659, %v2659
    %s2661 = scalar_lea.vmem %s10, 64
    %v2662 = vld [vmem:[%s2661] sm:$0xf]
    %v2663 = vld [vmem:[%s2661 + $0x4] sm:$0xf]
    %v2664 = vld [vmem:[%s2661 + $0x8] sm:$0xf]
    %v2665 = vld [vmem:[%s2661 + $0xc] sm:$0xf]
    %v2666 = vld [vmem:[%s11 + $0x4] sm:$0x1]
    %v2667 = vperm.slane %v2666, 0
    %v2672 = vunpack.c.l.b16 %v2662
    %v2673 = vunpack.c.l.b16 %v2663
    %v2674 = vunpack.c.l.b16 %v2664
    %v2675 = vunpack.c.l.b16 %v2665
    %v2676 = vpack.c.b16 %v2673, %v2672
    %v2677 = vpack.c.b16 %v2675, %v2674
    %v2681 = vsel %vm48, %v2660, 0
    %2683 = vmatpush.bf16.msra.mxu0 0
    %2684 = vmatpush.bf16.msra.mxu0 0
    %2685 = vmatpush.bf16.msra.mxu0 0
    %2686 = vmatpush.bf16.msra.mxu0 0
    %2687 = vmatpush.bf16.msra.mxu0 0
    %2688 = vmatpush.bf16.msra.mxu0 0
    %2689 = vmatpush.bf16.msra.mxu0 %v2677
    %2690 = vmatpush.bf16.msra.mxu0 %v2676
    %2691 = vmatmul.bf16.gmra.mxu0 %v2681
    %v2692 = vpop.f32.mrf.mxu0
    %v2693 = vadd.f32 %v2667, %v2692
    %v2694 = vpop.f32.mrf.mxu0
    %2695 = vdwg.mxu0
    %v2696 = vsub.f32 %v2165, %v2693
    %v2697 = vadd.f32 %v2166, %v2693
    %v2699 = vsel %vm48, %v2696, 0
    %2701 = vmatpush.msra.mxu0 0.0
    %2702 = vmatpush.msra.mxu0 0.0
    %2703 = vmatpush.msra.mxu0 0.0
    %2704 = vmatpush.msra.mxu0 0.0
    %2705 = vmatpush.msra.mxu0 0.0
    %2706 = vmatpush.msra.mxu0 0.0
    %2707 = vmatpush.msra.mxu0 0.0
    %2708 = vmatpush.msra.mxu0 0.0
    %2709 = vmatpush.msra.mxu0 0.0
    %2710 = vmatpush.msra.mxu0 0.0
    %2711 = vmatpush.msra.mxu0 0.0
    %2712 = vmatpush.msra.mxu0 0.0
    %2713 = vmatpush.msra.mxu0 %v46
    %2714 = vmatpush.msra.mxu0 %v45
    %2715 = vmatpush.msra.mxu0 %v44
    %2716 = vmatpush.msra.mxu0 %v43
    %2717 = vmatmul.f32.gmra.mxu0 %v2699
    %v2718 = vpop.f32.mrf.mxu0
    %v2719 = vadd.f32 0.0, %v2718
    %2720 = vdwg.mxu0
    %v2721 = vmul.f32 %v2696, %v2696
    %v2723 = vsel %vm48, %v2721, 0
    %2725 = vmatpush.msra.mxu0 0.0
    %2726 = vmatpush.msra.mxu0 0.0
    %2727 = vmatpush.msra.mxu0 0.0
    %2728 = vmatpush.msra.mxu0 0.0
    %2729 = vmatpush.msra.mxu0 0.0
    %2730 = vmatpush.msra.mxu0 0.0
    %2731 = vmatpush.msra.mxu0 0.0
    %2732 = vmatpush.msra.mxu0 0.0
    %2733 = vmatpush.msra.mxu0 0.0
    %2734 = vmatpush.msra.mxu0 0.0
    %2735 = vmatpush.msra.mxu0 0.0
    %2736 = vmatpush.msra.mxu0 0.0
    %2737 = vmatpush.msra.mxu0 %v46
    %2738 = vmatpush.msra.mxu0 %v45
    %2739 = vmatpush.msra.mxu0 %v44
    %2740 = vmatpush.msra.mxu0 %v43
    %2741 = vmatmul.f32.gmra.mxu0 %v2723
    %v2742 = vpop.f32.mrf.mxu0
    %v2743 = vadd.f32 0.0, %v2742
    %2744 = vdwg.mxu0
    %v2745 = vsub.f32 %v2696, %v2719
    %v2746 = vmul.f32 %v2719, %v2719
    %v2747 = vsub.f32 %v2743, %v2746
    %v2748 = vadd.f32 %v2747, 1e-05
    %v2749 = vrsqrt.pop %v2748
    %v2750 = vmul.f32 %v2749, %v2748
    %v2751 = vmul.f32 %v2750, %v2749
    %v2752 = vmul.f32 0.5, %v2751
    %v2753 = vsub.f32 1.5, %v2752
    %v2754 = vmul.f32 %v2749, %v2753
    %vm2755 = vweird.f32 %v2748
    %vm2756 = vweird.f32 %v2749
    %vm2757 = vmor %vm2755, %vm2756
    %v2758 = vsel %vm2757, %v2749, %v2754
    %v2759 = vmul.f32 %v2745, %v2758
    %v2760 = vpack.c.bf16 %v2759, %v2759
    %s2761 = scalar_lea.vmem %s2, 160
    %v2762 = vld [vmem:[%s2761] sm:$0xff]
    %v2763 = vld [vmem:[%s2761 + $0x8] sm:$0xff]
    %v2764 = vld [vmem:[%s2761 + $0x10] sm:$0xff]
    %v2765 = vld [vmem:[%s2761 + $0x18] sm:$0xff]
    %s2766 = scalar_lea.vmem %s3, 5
    %v2767 = vld [vmem:[%s2766] ss:$8 sm:$0x3]
    %v2769 = vperm.slane %v2767, 0
    %v2770 = vperm.slane %v2767, 1
    %v2777 = vunpack.c.l.b16 %v2762
    %v2778 = vunpack.c.h.b16 %v2762
    %v2779 = vunpack.c.l.b16 %v2763
    %v2780 = vunpack.c.h.b16 %v2763
    %v2781 = vunpack.c.l.b16 %v2764
    %v2782 = vunpack.c.h.b16 %v2764
    %v2783 = vunpack.c.l.b16 %v2765
    %v2784 = vunpack.c.h.b16 %v2765
    %v2785 = vpack.c.b16 %v2779, %v2777
    %v2786 = vpack.c.b16 %v2780, %v2778
    %v2787 = vpack.c.b16 %v2783, %v2781
    %v2788 = vpack.c.b16 %v2784, %v2782
    %v2794 = vsel %vm48, %v2760, 0
    %2796 = vmatpush.bf16.msra.mxu0 0
    %2797 = vmatpush.bf16.msra.mxu0 0
    %2798 = vmatpush.bf16.msra.mxu0 0
    %2799 = vmatpush.bf16.msra.mxu0 0
    %2800 = vmatpush.bf16.msra.mxu0 0
    %2801 = vmatpush.bf16.msra.mxu0 0
    %2802 = vmatpush.bf16.msra.mxu0 %v2787
    %2803 = vmatpush.bf16.msra.mxu0 %v2785
    %2804 = vmatmul.bf16.gmra.mxu0 %v2794
    %v2805 = vpop.f32.mrf.mxu0
    %v2806 = vadd.f32 %v2769, %v2805
    %v2807 = vpop.f32.mrf.mxu0
    %2808 = vdwg.mxu0
    %2809 = vmatpush.bf16.msra.mxu0 0
    %2810 = vmatpush.bf16.msra.mxu0 0
    %2811 = vmatpush.bf16.msra.mxu0 0
    %2812 = vmatpush.bf16.msra.mxu0 0
    %2813 = vmatpush.bf16.msra.mxu0 0
    %2814 = vmatpush.bf16.msra.mxu0 0
    %2815 = vmatpush.bf16.msra.mxu0 %v2788
    %2816 = vmatpush.bf16.msra.mxu0 %v2786
    %2817 = vmatmul.bf16.gmra.mxu0 %v2794
    %v2818 = vpop.f32.mrf.mxu0
    %v2819 = vadd.f32 %v2770, %v2818
    %v2820 = vpop.f32.mrf.mxu0
    %2821 = vdwg.mxu0
    %v2822 = vmul.f32 %v2806, 0.5
    %v2823 = vmul.f32 %v2819, 0.5
    %v2824 = vmul.f32 %v2806, 0.044715
    %v2825 = vmul.f32 %v2819, 0.044715
    %v2826 = vmul.f32 %v2824, %v2806
    %v2827 = vmul.f32 %v2825, %v2819
    %v2828 = vmul.f32 %v2826, %v2806
    %v2829 = vmul.f32 %v2827, %v2819
    %v2830 = vadd.f32 %v2806, %v2828
    %v2831 = vadd.f32 %v2819, %v2829
    %v2832 = vmul.f32 %v2830, 0.7978846
    %v2833 = vmul.f32 %v2831, 0.7978846
    %v2834 = vtanh.pop %v2832
    %v2835 = vtanh.pop %v2833
    %v2836 = vadd.f32 %v2834, 1.0
    %v2837 = vadd.f32 %v2835, 1.0
    %v2838 = vmul.f32 %v2822, %v2836
    %v2839 = vmul.f32 %v2823, %v2837
    %v2840 = vpack.c.bf16 %v2838, %v2838
    %v2841 = vpack.c.bf16 %v2839, %v2839
    %s2842 = scalar_lea.vmem %s4, 640
    %v2843 = vld [vmem:[%s2842] sm:$0xf]
    %v2844 = vld [vmem:[%s2842 + $0x4] sm:$0xf]
    %v2845 = vld [vmem:[%s2842 + $0x8] sm:$0xf]
    %v2846 = vld [vmem:[%s2842 + $0xc] sm:$0xf]
    %v2847 = vld [vmem:[%s2842 + $0x10] sm:$0xf]
    %v2848 = vld [vmem:[%s2842 + $0x14] sm:$0xf]
    %v2849 = vld [vmem:[%s2842 + $0x18] sm:$0xf]
    %v2850 = vld [vmem:[%s2842 + $0x1c] sm:$0xf]
    %v2851 = vld [vmem:[%s2842 + $0x20] sm:$0xf]
    %v2852 = vld [vmem:[%s2842 + $0x24] sm:$0xf]
    %v2853 = vld [vmem:[%s2842 + $0x28] sm:$0xf]
    %v2854 = vld [vmem:[%s2842 + $0x2c] sm:$0xf]
    %v2855 = vld [vmem:[%s2842 + $0x30] sm:$0xf]
    %v2856 = vld [vmem:[%s2842 + $0x34] sm:$0xf]
    %v2857 = vld [vmem:[%s2842 + $0x38] sm:$0xf]
    %v2858 = vld [vmem:[%s2842 + $0x3c] sm:$0xf]
    %v2859 = vld [vmem:[%s2842 + $0x40] sm:$0xf]
    %v2860 = vld [vmem:[%s2842 + $0x44] sm:$0xf]
    %v2861 = vld [vmem:[%s2842 + $0x48] sm:$0xf]
    %v2862 = vld [vmem:[%s2842 + $0x4c] sm:$0xf]
    %v2863 = vld [vmem:[%s2842 + $0x50] sm:$0xf]
    %v2864 = vld [vmem:[%s2842 + $0x54] sm:$0xf]
    %v2865 = vld [vmem:[%s2842 + $0x58] sm:$0xf]
    %v2866 = vld [vmem:[%s2842 + $0x5c] sm:$0xf]
    %v2867 = vld [vmem:[%s2842 + $0x60] sm:$0xf]
    %v2868 = vld [vmem:[%s2842 + $0x64] sm:$0xf]
    %v2869 = vld [vmem:[%s2842 + $0x68] sm:$0xf]
    %v2870 = vld [vmem:[%s2842 + $0x6c] sm:$0xf]
    %v2871 = vld [vmem:[%s2842 + $0x70] sm:$0xf]
    %v2872 = vld [vmem:[%s2842 + $0x74] sm:$0xf]
    %v2873 = vld [vmem:[%s2842 + $0x78] sm:$0xf]
    %v2874 = vld [vmem:[%s2842 + $0x7c] sm:$0xf]
    %v2907 = vunpack.c.l.b16 %v2843
    %v2908 = vunpack.c.l.b16 %v2844
    %v2909 = vunpack.c.l.b16 %v2845
    %v2910 = vunpack.c.l.b16 %v2846
    %v2911 = vunpack.c.l.b16 %v2847
    %v2912 = vunpack.c.l.b16 %v2848
    %v2913 = vunpack.c.l.b16 %v2849
    %v2914 = vunpack.c.l.b16 %v2850
    %v2915 = vunpack.c.l.b16 %v2851
    %v2916 = vunpack.c.l.b16 %v2852
    %v2917 = vunpack.c.l.b16 %v2853
    %v2918 = vunpack.c.l.b16 %v2854
    %v2919 = vunpack.c.l.b16 %v2855
    %v2920 = vunpack.c.l.b16 %v2856
    %v2921 = vunpack.c.l.b16 %v2857
    %v2922 = vunpack.c.l.b16 %v2858
    %v2923 = vunpack.c.l.b16 %v2859
    %v2924 = vunpack.c.l.b16 %v2860
    %v2925 = vunpack.c.l.b16 %v2861
    %v2926 = vunpack.c.l.b16 %v2862
    %v2927 = vunpack.c.l.b16 %v2863
    %v2928 = vunpack.c.l.b16 %v2864
    %v2929 = vunpack.c.l.b16 %v2865
    %v2930 = vunpack.c.l.b16 %v2866
    %v2931 = vunpack.c.l.b16 %v2867
    %v2932 = vunpack.c.l.b16 %v2868
    %v2933 = vunpack.c.l.b16 %v2869
    %v2934 = vunpack.c.l.b16 %v2870
    %v2935 = vunpack.c.l.b16 %v2871
    %v2936 = vunpack.c.l.b16 %v2872
    %v2937 = vunpack.c.l.b16 %v2873
    %v2938 = vunpack.c.l.b16 %v2874
    %v2939 = vpack.c.b16 %v2908, %v2907
    %v2940 = vpack.c.b16 %v2910, %v2909
    %v2941 = vpack.c.b16 %v2912, %v2911
    %v2942 = vpack.c.b16 %v2914, %v2913
    %v2943 = vpack.c.b16 %v2916, %v2915
    %v2944 = vpack.c.b16 %v2918, %v2917
    %v2945 = vpack.c.b16 %v2920, %v2919
    %v2946 = vpack.c.b16 %v2922, %v2921
    %v2947 = vpack.c.b16 %v2924, %v2923
    %v2948 = vpack.c.b16 %v2926, %v2925
    %v2949 = vpack.c.b16 %v2928, %v2927
    %v2950 = vpack.c.b16 %v2930, %v2929
    %v2951 = vpack.c.b16 %v2932, %v2931
    %v2952 = vpack.c.b16 %v2934, %v2933
    %v2953 = vpack.c.b16 %v2936, %v2935
    %v2954 = vpack.c.b16 %v2938, %v2937
    %2971 = vmatpush.bf16.msra.mxu0 %v2946
    %2972 = vmatpush.bf16.msra.mxu0 %v2945
    %2973 = vmatpush.bf16.msra.mxu0 %v2944
    %2974 = vmatpush.bf16.msra.mxu0 %v2943
    %2975 = vmatpush.bf16.msra.mxu0 %v2942
    %2976 = vmatpush.bf16.msra.mxu0 %v2941
    %2977 = vmatpush.bf16.msra.mxu0 %v2940
    %2978 = vmatpush.bf16.msra.mxu0 %v2939
    %2979 = vmatmul.bf16.gmra.mxu0 %v2840
    %v2980 = vpop.f32.mrf.mxu0
    %v2981 = vadd.f32 0.0, %v2980
    %v2982 = vpop.f32.mrf.mxu0
    %2983 = vdwg.mxu0
    %2984 = vmatpush.bf16.msra.mxu0 %v2954
    %2985 = vmatpush.bf16.msra.mxu0 %v2953
    %2986 = vmatpush.bf16.msra.mxu0 %v2952
    %2987 = vmatpush.bf16.msra.mxu0 %v2951
    %2988 = vmatpush.bf16.msra.mxu0 %v2950
    %2989 = vmatpush.bf16.msra.mxu0 %v2949
    %2990 = vmatpush.bf16.msra.mxu0 %v2948
    %2991 = vmatpush.bf16.msra.mxu0 %v2947
    %2992 = vmatmul.bf16.gmra.mxu0 %v2841
    %v2993 = vpop.f32.mrf.mxu0
    %v2994 = vadd.f32 %v2981, %v2993
    %v2995 = vpop.f32.mrf.mxu0
    %2996 = vdwg.mxu0
    %v2997 = vadd.f32 %v2696, %v2994
    %v2998 = vld [vmem:[%s5 + $0x5] sm:$0x1]
    %v2999 = vperm.slane %v2998, 0
    %v3000 = vadd.f32 %v2997, %v2999
    %v3002 = vsel %vm48, %v3000, 0
    %3004 = vmatpush.msra.mxu0 0.0
    %3005 = vmatpush.msra.mxu0 0.0
    %3006 = vmatpush.msra.mxu0 0.0
    %3007 = vmatpush.msra.mxu0 0.0
    %3008 = vmatpush.msra.mxu0 0.0
    %3009 = vmatpush.msra.mxu0 0.0
    %3010 = vmatpush.msra.mxu0 0.0
    %3011 = vmatpush.msra.mxu0 0.0
    %3012 = vmatpush.msra.mxu0 0.0
    %3013 = vmatpush.msra.mxu0 0.0
    %3014 = vmatpush.msra.mxu0 0.0
    %3015 = vmatpush.msra.mxu0 0.0
    %3016 = vmatpush.msra.mxu0 %v46
    %3017 = vmatpush.msra.mxu0 %v45
    %3018 = vmatpush.msra.mxu0 %v44
    %3019 = vmatpush.msra.mxu0 %v43
    %3020 = vmatmul.f32.gmra.mxu0 %v3002
    %v3021 = vpop.f32.mrf.mxu0
    %v3022 = vadd.f32 0.0, %v3021
    %3023 = vdwg.mxu0
    %v3024 = vmul.f32 %v3000, %v3000
    %v3026 = vsel %vm48, %v3024, 0
    %3028 = vmatpush.msra.mxu0 0.0
    %3029 = vmatpush.msra.mxu0 0.0
    %3030 = vmatpush.msra.mxu0 0.0
    %3031 = vmatpush.msra.mxu0 0.0
    %3032 = vmatpush.msra.mxu0 0.0
    %3033 = vmatpush.msra.mxu0 0.0
    %3034 = vmatpush.msra.mxu0 0.0
    %3035 = vmatpush.msra.mxu0 0.0
    %3036 = vmatpush.msra.mxu0 0.0
    %3037 = vmatpush.msra.mxu0 0.0
    %3038 = vmatpush.msra.mxu0 0.0
    %3039 = vmatpush.msra.mxu0 0.0
    %3040 = vmatpush.msra.mxu0 %v46
    %3041 = vmatpush.msra.mxu0 %v45
    %3042 = vmatpush.msra.mxu0 %v44
    %3043 = vmatpush.msra.mxu0 %v43
    %3044 = vmatmul.f32.gmra.mxu0 %v3026
    %v3045 = vpop.f32.mrf.mxu0
    %v3046 = vadd.f32 0.0, %v3045
    %3047 = vdwg.mxu0
    %v3048 = vsub.f32 %v3000, %v3022
    %v3049 = vmul.f32 %v3022, %v3022
    %v3050 = vsub.f32 %v3046, %v3049
    %v3051 = vadd.f32 %v3050, 1e-05
    %v3052 = vrsqrt.pop %v3051
    %v3053 = vmul.f32 %v3052, %v3051
    %v3054 = vmul.f32 %v3053, %v3052
    %v3055 = vmul.f32 0.5, %v3054
    %v3056 = vsub.f32 1.5, %v3055
    %v3057 = vmul.f32 %v3052, %v3056
    %vm3058 = vweird.f32 %v3051
    %vm3059 = vweird.f32 %v3052
    %vm3060 = vmor %vm3058, %vm3059
    %v3061 = vsel %vm3060, %v3052, %v3057
    %v3062 = vmul.f32 %v3048, %v3061
    %v3063 = vpack.c.bf16 %v3062, %v3062
    %s3064 = scalar_lea.vmem %s6, 80
    %v3065 = vld [vmem:[%s3064] sm:$0xf]
    %v3066 = vld [vmem:[%s3064 + $0x4] sm:$0xf]
    %v3067 = vld [vmem:[%s3064 + $0x8] sm:$0xf]
    %v3068 = vld [vmem:[%s3064 + $0xc] sm:$0xf]
    %v3069 = vld [vmem:[%s7 + $0x5] sm:$0x1]
    %v3070 = vperm.slane %v3069, 0
    %v3075 = vunpack.c.l.b16 %v3065
    %v3076 = vunpack.c.l.b16 %v3066
    %v3077 = vunpack.c.l.b16 %v3067
    %v3078 = vunpack.c.l.b16 %v3068
    %v3079 = vpack.c.b16 %v3076, %v3075
    %v3080 = vpack.c.b16 %v3078, %v3077
    %v3084 = vsel %vm48, %v3063, 0
    %3086 = vmatpush.bf16.msra.mxu0 0
    %3087 = vmatpush.bf16.msra.mxu0 0
    %3088 = vmatpush.bf16.msra.mxu0 0
    %3089 = vmatpush.bf16.msra.mxu0 0
    %3090 = vmatpush.bf16.msra.mxu0 0
    %3091 = vmatpush.bf16.msra.mxu0 0
    %3092 = vmatpush.bf16.msra.mxu0 %v3080
    %3093 = vmatpush.bf16.msra.mxu0 %v3079
    %3094 = vmatmul.bf16.gmra.mxu0 %v3084
    %v3095 = vpop.f32.mrf.mxu0
    %v3096 = vadd.f32 %v3070, %v3095
    %v3097 = vpop.f32.mrf.mxu0
    %3098 = vdwg.mxu0
    %v3099 = vmul.f32 %v3096, 0.5
    %v3100 = vmul.f32 %v3096, 0.044715
    %v3101 = vmul.f32 %v3100, %v3096
    %v3102 = vmul.f32 %v3101, %v3096
    %v3103 = vadd.f32 %v3096, %v3102
    %v3104 = vmul.f32 %v3103, 0.7978846
    %v3105 = vtanh.pop %v3104
    %v3106 = vadd.f32 %v3105, 1.0
    %v3107 = vmul.f32 %v3099, %v3106
    %v3108 = vpack.c.bf16 %v3107, %v3107
    %s3109 = scalar_lea.vmem %s8, 320
    %v3110 = vld [vmem:[%s3109] sm:$0xf]
    %v3111 = vld [vmem:[%s3109 + $0x4] sm:$0xf]
    %v3112 = vld [vmem:[%s3109 + $0x8] sm:$0xf]
    %v3113 = vld [vmem:[%s3109 + $0xc] sm:$0xf]
    %v3114 = vld [vmem:[%s3109 + $0x10] sm:$0xf]
    %v3115 = vld [vmem:[%s3109 + $0x14] sm:$0xf]
    %v3116 = vld [vmem:[%s3109 + $0x18] sm:$0xf]
    %v3117 = vld [vmem:[%s3109 + $0x1c] sm:$0xf]
    %v3118 = vld [vmem:[%s3109 + $0x20] sm:$0xf]
    %v3119 = vld [vmem:[%s3109 + $0x24] sm:$0xf]
    %v3120 = vld [vmem:[%s3109 + $0x28] sm:$0xf]
    %v3121 = vld [vmem:[%s3109 + $0x2c] sm:$0xf]
    %v3122 = vld [vmem:[%s3109 + $0x30] sm:$0xf]
    %v3123 = vld [vmem:[%s3109 + $0x34] sm:$0xf]
    %v3124 = vld [vmem:[%s3109 + $0x38] sm:$0xf]
    %v3125 = vld [vmem:[%s3109 + $0x3c] sm:$0xf]
    %v3142 = vunpack.c.l.b16 %v3110
    %v3143 = vunpack.c.l.b16 %v3111
    %v3144 = vunpack.c.l.b16 %v3112
    %v3145 = vunpack.c.l.b16 %v3113
    %v3146 = vunpack.c.l.b16 %v3114
    %v3147 = vunpack.c.l.b16 %v3115
    %v3148 = vunpack.c.l.b16 %v3116
    %v3149 = vunpack.c.l.b16 %v3117
    %v3150 = vunpack.c.l.b16 %v3118
    %v3151 = vunpack.c.l.b16 %v3119
    %v3152 = vunpack.c.l.b16 %v3120
    %v3153 = vunpack.c.l.b16 %v3121
    %v3154 = vunpack.c.l.b16 %v3122
    %v3155 = vunpack.c.l.b16 %v3123
    %v3156 = vunpack.c.l.b16 %v3124
    %v3157 = vunpack.c.l.b16 %v3125
    %v3158 = vpack.c.b16 %v3143, %v3142
    %v3159 = vpack.c.b16 %v3145, %v3144
    %v3160 = vpack.c.b16 %v3147, %v3146
    %v3161 = vpack.c.b16 %v3149, %v3148
    %v3162 = vpack.c.b16 %v3151, %v3150
    %v3163 = vpack.c.b16 %v3153, %v3152
    %v3164 = vpack.c.b16 %v3155, %v3154
    %v3165 = vpack.c.b16 %v3157, %v3156
    %3174 = vmatpush.bf16.msra.mxu0 %v3165
    %3175 = vmatpush.bf16.msra.mxu0 %v3164
    %3176 = vmatpush.bf16.msra.mxu0 %v3163
    %3177 = vmatpush.bf16.msra.mxu0 %v3162
    %3178 = vmatpush.bf16.msra.mxu0 %v3161
    %3179 = vmatpush.bf16.msra.mxu0 %v3160
    %3180 = vmatpush.bf16.msra.mxu0 %v3159
    %3181 = vmatpush.bf16.msra.mxu0 %v3158
    %3182 = vmatmul.bf16.gmra.mxu0 %v3108
    %v3183 = vpop.f32.mrf.mxu0
    %v3184 = vadd.f32 0.0, %v3183
    %v3185 = vpop.f32.mrf.mxu0
    %3186 = vdwg.mxu0
    %v3187 = vadd.f32 %v3000, %v3184
    %v3188 = vld [vmem:[%s9 + $0x5] sm:$0x1]
    %v3189 = vperm.slane %v3188, 0
    %v3190 = vadd.f32 %v3187, %v3189
    %v3191 = vpack.c.bf16 %v3190, %v3190
    %s3192 = scalar_lea.vmem %s10, 80
    %v3193 = vld [vmem:[%s3192] sm:$0xf]
    %v3194 = vld [vmem:[%s3192 + $0x4] sm:$0xf]
    %v3195 = vld [vmem:[%s3192 + $0x8] sm:$0xf]
    %v3196 = vld [vmem:[%s3192 + $0xc] sm:$0xf]
    %v3197 = vld [vmem:[%s11 + $0x5] sm:$0x1]
    %v3198 = vperm.slane %v3197, 0
    %v3203 = vunpack.c.l.b16 %v3193
    %v3204 = vunpack.c.l.b16 %v3194
    %v3205 = vunpack.c.l.b16 %v3195
    %v3206 = vunpack.c.l.b16 %v3196
    %v3207 = vpack.c.b16 %v3204, %v3203
    %v3208 = vpack.c.b16 %v3206, %v3205
    %v3212 = vsel %vm48, %v3191, 0
    %3214 = vmatpush.bf16.msra.mxu0 0
    %3215 = vmatpush.bf16.msra.mxu0 0
    %3216 = vmatpush.bf16.msra.mxu0 0
    %3217 = vmatpush.bf16.msra.mxu0 0
    %3218 = vmatpush.bf16.msra.mxu0 0
    %3219 = vmatpush.bf16.msra.mxu0 0
    %3220 = vmatpush.bf16.msra.mxu0 %v3208
    %3221 = vmatpush.bf16.msra.mxu0 %v3207
    %3222 = vmatmul.bf16.gmra.mxu0 %v3212
    %v3223 = vpop.f32.mrf.mxu0
    %v3224 = vadd.f32 %v3198, %v3223
    %v3225 = vpop.f32.mrf.mxu0
    %3226 = vdwg.mxu0
    %v3227 = vadd.f32 %v2697, %v3224
    %vm3228 = vcmask 388096
    %3229 = vst.msk [vmem:[#allocation2] sm:$0xf] %vm3228, %v3227
    // Predicated region
    $region50: #{tpu_custom_call.1} parent=1 // pred_check
      _
    $region51: #{tpu_custom_call.1} parent=1 // pred_check_branch
      %3231 = sbr.rel (0) target = $region53
    $region52: #{tpu_custom_call.1} parent=1 // pred_region
      %3233 = vsyncadd [#allocation3], 0
      %s3235 = sshll.u32 [#allocation2], 4
      %s3236 = int_to_ptr.vmem [resolvable:$true] %s3235
      %s3237 = sshll.u32 %s12, 4
      %s3238 = int_to_ptr.hbm [resolvable:$true] %s3237
      %3240 = dma.vmem_to_hbm [thread:$0]  %s3236, 64, %s3238, [#allocation3]
    $region53: #{tpu_custom_call.1} parent=1 // pred_fallthru
      _
    // Predicated region
    $region54: #{tpu_custom_call.1} parent=1 // pred_check
      _
    $region55: #{tpu_custom_call.1} parent=1 // pred_check_branch
      %3242 = sbr.rel (0) target = $region57
    $region56: #{tpu_custom_call.1} parent=1 // pred_region
      %3244 = dma.done [#allocation3], 64
    $region57: #{tpu_custom_call.1} parent=1 // pred_fallthru
      _
    %3245 = vsyncpa [#allocation3], 1

</llo_original>
